<compile_context>
chip_gen: v7x
topology: tpu7x:2x2x1
jax: 0.10.0
libtpu: 0.0.40
codegen_flags: <defaults>
</compile_context>

<pallas_src>
import functools

import jax
import jax.numpy as jnp
import numpy as np
from jax.experimental import pallas as pl
from jax.experimental.pallas import tpu as pltpu

LEAKY_SLOPE = 0.01   # nn.LeakyReLU default negative_slope
LN_EPS = 1e-5        # nn.LayerNorm default eps


def _mlp_denoiser_kernel(
    xc_ref,    # (TB, Fin)     bf16  cat([x, t_emb, x_cond], 1) tile
    wp_ref,    # (Fin, Wp)     bf16  packed xc-side weights [fc1 | blk fc1's]
    bp_ref,    # (1, Wp)       f32   packed biases        [fc1 | blk fc1's]
    bwh_ref,   # (NB, H, H)    bf16  block fc1, x_hidden part
    bw2_ref,   # (NB, H, H)    bf16  block fc2
    bb2_ref,   # (NB, 1, H)    f32   block fc2 bias
    g_ref,     # (NB, 1, H)    f32   block LayerNorm gamma
    bt_ref,    # (NB, 1, H)    f32   block LayerNorm beta
    w2xc_ref,  # (Fin, Fpad)   bf16  final fc2, xc part (lane padded)
    w2h_ref,   # (H,  Fpad)    bf16  final fc2, x_hidden part (lane padded)
    b2_ref,    # (1,  Fpad)    f32   final fc2 bias (lane padded)
    out_ref,   # (TB, Fpad)    f32
    proj_ref,  # (TB, Wp)      f32   VMEM scratch for the wide xc projection
    *,
    n_blocks,
    n_hidden,
):
    H = n_hidden
    bf16 = jnp.bfloat16

    xc = xc_ref[...]  # tiny (TB, Fin) bf16 tile, stays resident for final fc2

    # --- one K=Fin matmul for fc1 and every block's fc1 xc-part -------------
    # torch.cat([x, t_emb, x_cond], 1) is already folded in the wrapper.
    # Result is staged into VMEM scratch so the (TB, (NB+1)*H) f32 value does
    # not have to live in vregs across the whole block loop.
    proj_ref[...] = (
        jnp.dot(xc, wp_ref[...], preferred_element_type=jnp.float32)
        + bp_ref[...]
    )

    # x_hidden = fc1(cat([x, t_emb, x_cond]))    (bias already in bp)
    h = proj_ref[:, :H]

    # Recurrent blocks. n_blocks is tiny so a static unroll is fine.
    # TODO(synk): interleave two independent row sub-tiles here to hide each
    # LayerNorm behind the other sub-tile's MXU work if this kernel becomes
    # latency-bound at small batch sizes.
    for i in range(n_blocks):
        # block.fc1: xc-part (pre-biased) comes from the staged projection.
        z = proj_ref[:, (i + 1) * H:(i + 2) * H] + jnp.dot(
            h.astype(bf16), bwh_ref[i], preferred_element_type=jnp.float32)
        # LeakyReLU (f32 on the VPU): max(z, 0.01*z)
        z = jnp.maximum(z, LEAKY_SLOPE * z)
        # block.fc2
        z = jnp.dot(z.astype(bf16), bw2_ref[i],
                    preferred_element_type=jnp.float32) + bb2_ref[i]
        # LayerNorm over features (two-pass variance: robust to cancellation)
        mu = jnp.mean(z, axis=-1, keepdims=True)
        d = z - mu
        var = jnp.mean(d * d, axis=-1, keepdims=True)
        h = d * jax.lax.rsqrt(var + LN_EPS) * g_ref[i] + bt_ref[i]

    # x_out = fc2(cat([x, t_emb, x_cond, x_hidden]))
    # xc-part computed here (xc tile still resident) + hidden part + bias.
    out_ref[...] = (
        jnp.dot(xc, w2xc_ref[...], preferred_element_type=jnp.float32)
        + jnp.dot(h.astype(bf16), w2h_ref[...],
                  preferred_element_type=jnp.float32)
        + b2_ref[...]
    ).astype(out_ref.dtype)


def _choose_tile_b(B, max_tile=256, min_tiles=2):
    """Batch tile: <= max_tile, multiple of 8 (sublane), and — when the batch
    allows — at least `min_tiles` grid steps so both v7x TensorCores get work
    and cross-step DMA/compute overlap survives."""
    b8 = max(8, ((B + 7) // 8) * 8)
    per_tile = -(-b8 // min_tiles)                 # ceil(b8 / min_tiles)
    per_tile = ((per_tile + 7) // 8) * 8           # round up to sublane mult
    return max(8, min(max_tile, per_tile, b8))


def mlp_denoiser_pallas(x, t_emb, x_cond, packed, n_blocks, n_hidden,
                        tile_b=256):
    """Run the fused MLPDenoiser kernel over a 1-D batch-tile grid."""
    B, F = x.shape
    Fin = packed["wp"].shape[0]
    Wp = packed["wp"].shape[1]
    Fpad = packed["w2h"].shape[1]
    H = n_hidden
    NB = n_blocks

    # Fold torch.cat([x, t_emb, x_cond], 1) into one tiny wrapper concat and
    # stream it bf16 (matches the kernel's bf16-at-the-MXU policy).
    xc = jnp.concatenate([x, t_emb, x_cond], axis=1).astype(jnp.bfloat16)
    assert xc.shape[1] == Fin

    tb = _choose_tile_b(B, max_tile=tile_b)
    b_pad = ((B + tb - 1) // tb) * tb
    if b_pad != B:
        xc = jnp.pad(xc, ((0, b_pad - B), (0, 0)))

    grid = (b_pad // tb,)
    kernel = functools.partial(_mlp_denoiser_kernel, n_blocks=NB, n_hidden=H)

    const2 = lambda b: (0, 0)
    const3 = lambda b: (0, 0, 0)

    out = pl.pallas_call(
        kernel,
        grid=grid,
        in_specs=[
            # streamed per batch tile
            pl.BlockSpec((tb, Fin), lambda b: (b, 0)),
            # weights: constant block index -> DMA'd once, VMEM resident
            pl.BlockSpec((Fin, Wp), const2),
            pl.BlockSpec((1, Wp), const2),
            pl.BlockSpec((NB, H, H), const3),
            pl.BlockSpec((NB, H, H), const3),
            pl.BlockSpec((NB, 1, H), const3),
            pl.BlockSpec((NB, 1, H), const3),
            pl.BlockSpec((NB, 1, H), const3),
            pl.BlockSpec((Fin, Fpad), const2),
            pl.BlockSpec((H, Fpad), const2),
            pl.BlockSpec((1, Fpad), const2),
        ],
        out_specs=pl.BlockSpec((tb, Fpad), lambda b: (b, 0)),
        out_shape=jax.ShapeDtypeStruct((b_pad, Fpad), jnp.float32),
        scratch_shapes=[pltpu.VMEM((tb, Wp), jnp.float32)],
        compiler_params=pltpu.CompilerParams(
            # batch tiles are independent -> split across the 2 TCs on v7x
            dimension_semantics=("parallel",),
        ),
    )(xc, packed["wp"], packed["bp"],
      packed["bwh"], packed["bw2"], packed["bb2"],
      packed["g"], packed["bt"],
      packed["w2xc"], packed["w2h"], packed["b2"])

    return out[:B, :F]


def init_params(key, n_feature, n_time_feature, n_condition_feature,
                n_hidden, n_blocks):
    """Deterministic synthetic parameters (weights stored as (in, out), f32)."""
    Fin = n_feature + n_time_feature + n_condition_feature
    H = n_hidden
    F = n_feature
    ks = jax.random.split(key, 8)

    def w(k, shape, fan_in):
        return (jax.random.normal(k, shape, jnp.float32)
                / np.sqrt(fan_in)).astype(jnp.float32)

    return {
        # fc1: Linear(Fin, H)
        "fc1_w": w(ks[0], (Fin, H), Fin),
        "fc1_b": jnp.zeros((1, H), jnp.float32) + 0.01,
        # block fc1: Linear(Fin + H, H) split into xc / hidden row blocks
        "blk_fc1_wxc": w(ks[1], (n_blocks, Fin, H), Fin + H),
        "blk_fc1_wh":  w(ks[2], (n_blocks, H, H), Fin + H),
        "blk_fc1_b":   jnp.zeros((n_blocks, 1, H), jnp.float32) + 0.02,
        # block fc2: Linear(H, H)
        "blk_fc2_w": w(ks[3], (n_blocks, H, H), H),
        "blk_fc2_b": jnp.zeros((n_blocks, 1, H), jnp.float32) - 0.01,
        # block LayerNorm(H)
        "blk_ln_g": jnp.ones((n_blocks, 1, H), jnp.float32),
        "blk_ln_b": jnp.zeros((n_blocks, 1, H), jnp.float32),
        # final fc2: Linear(Fin + H, F) split into xc / hidden row blocks
        "fc2_wxc": w(ks[4], (Fin, F), Fin + H),
        "fc2_wh":  w(ks[5], (H, F), Fin + H),
        "fc2_b":   jnp.zeros((1, F), jnp.float32),
    }


def pack_params(params, n_feature, n_time_feature, n_condition_feature,
                n_hidden, n_blocks):
    """Pack parameters into the kernel's fused / bf16 layout (done once)."""
    Fin = n_feature + n_time_feature + n_condition_feature
    H = n_hidden
    F = n_feature
    NB = n_blocks
    Fpad = ((F + 127) // 128) * 128   # lane-dense output width
    bf16 = jnp.bfloat16

    # wide xc-side weight: columns = [fc1 | blk_0.fc1 | ... | blk_{NB-1}.fc1]
    blk_wxc = jnp.transpose(params["blk_fc1_wxc"], (1, 0, 2)).reshape(Fin, NB * H)
    wp = jnp.concatenate([params["fc1_w"], blk_wxc], axis=1)
    bp = jnp.concatenate(
        [params["fc1_b"], params["blk_fc1_b"].reshape(1, NB * H)], axis=1)

    # final fc2, lane padded to a multiple of 128 output columns
    w2xc = jnp.pad(params["fc2_wxc"], ((0, 0), (0, Fpad - F)))
    w2h = jnp.pad(params["fc2_wh"], ((0, 0), (0, Fpad - F)))
    b2 = jnp.pad(params["fc2_b"], ((0, 0), (0, Fpad - F)))

    return {
        "wp": wp.astype(bf16),
        "bp": bp,                                     # f32
        "bwh": params["blk_fc1_wh"].astype(bf16),
        "bw2": params["blk_fc2_w"].astype(bf16),
        "bb2": params["blk_fc2_b"],                   # f32
        "g": params["blk_ln_g"],                      # f32
        "bt": params["blk_ln_b"],                     # f32
        "w2xc": w2xc.astype(bf16),
        "w2h": w2h.astype(bf16),
        "b2": b2,                                     # f32
    }


def mlp_denoiser_ref(x, t_emb, x_cond, params, n_blocks, dot_dtype=None):
    """Pure-JAX reference mirroring the PyTorch forward.

    dot_dtype=jnp.bfloat16 mirrors the kernel's bf16-at-the-MXU policy.
    """
    def dot(a, b):
        if dot_dtype is not None:
            a = a.astype(dot_dtype)
            b = b.astype(dot_dtype)
        return jnp.dot(a, b, preferred_element_type=jnp.float32)

    xc = jnp.concatenate([x, t_emb, x_cond], axis=1)
    h = dot(xc, params["fc1_w"]) + params["fc1_b"]
    for i in range(n_blocks):
        z = (dot(xc, params["blk_fc1_wxc"][i])
             + dot(h, params["blk_fc1_wh"][i]) + params["blk_fc1_b"][i])
        z = jnp.where(z >= 0, z, LEAKY_SLOPE * z)
        z = dot(z, params["blk_fc2_w"][i]) + params["blk_fc2_b"][i]
        mu = jnp.mean(z, axis=-1, keepdims=True)
        var = jnp.mean((z - mu) ** 2, axis=-1, keepdims=True)
        h = ((z - mu) / jnp.sqrt(var + LN_EPS) * params["blk_ln_g"][i]
             + params["blk_ln_b"][i])
    return dot(xc, params["fc2_wxc"]) + dot(h, params["fc2_wh"]) + params["fc2_b"]


if __name__ == "__main__":
    # Small shapes consistent with the module's forward.
    B = 512                    # 2 grid steps of 256 rows -> exercises grid + big tile
    n_feature = 16             # x:      (B, 16)
    n_time_feature = 8         # t_emb:  (B, 8)
    n_condition_feature = 8    # x_cond: (B, 8)
    n_hidden = 128             # small but lane-aligned
    n_blocks = 3

    key = jax.random.PRNGKey(0)
    kx, kt, kc, kp = jax.random.split(key, 4)
    x = jax.random.normal(kx, (B, n_feature), jnp.float32)
    t_emb = jax.random.normal(kt, (B, n_time_feature), jnp.float32)
    x_cond = jax.random.normal(kc, (B, n_condition_feature), jnp.float32)

    params = init_params(kp, n_feature, n_time_feature, n_condition_feature,
                         n_hidden, n_blocks)
    packed = pack_params(params, n_feature, n_time_feature,
                         n_condition_feature, n_hidden, n_blocks)

    out = mlp_denoiser_pallas(x, t_emb, x_cond, packed, n_blocks, n_hidden)
    out = np.asarray(jax.block_until_ready(out))

    # 1) numerics-matched reference (same bf16 operands, f32 accumulation)
    ref_bf16 = np.asarray(
        mlp_denoiser_ref(x, t_emb, x_cond, params, n_blocks,
                         dot_dtype=jnp.bfloat16))
    np.testing.assert_allclose(out, ref_bf16, atol=5e-3, rtol=5e-3)

    # 2) pure-f32 PyTorch-semantics reference (loose: bf16 operand rounding)
    ref_f32 = np.asarray(mlp_denoiser_ref(x, t_emb, x_cond, params, n_blocks))
    np.testing.assert_allclose(out, ref_f32, atol=2e-1, rtol=2e-1)

    print("KERNEL_OK")
</pallas_src>

<mosaic_0001>
module attributes {stable_mosaic.version = 11 : i64} {
  func.func @_mlp_denoiser_kernel(%arg0: i32, %arg1: memref<256x32xbf16, #tpu.memory_space<vmem>>, %arg2: memref<32x512xbf16, #tpu.memory_space<vmem>>, %arg3: memref<1x512xf32, #tpu.memory_space<vmem>>, %arg4: memref<3x128x128xbf16, #tpu.memory_space<vmem>>, %arg5: memref<3x128x128xbf16, #tpu.memory_space<vmem>>, %arg6: memref<3x1x128xf32, #tpu.memory_space<vmem>>, %arg7: memref<3x1x128xf32, #tpu.memory_space<vmem>>, %arg8: memref<3x1x128xf32, #tpu.memory_space<vmem>>, %arg9: memref<32x128xbf16, #tpu.memory_space<vmem>>, %arg10: memref<128x128xbf16, #tpu.memory_space<vmem>>, %arg11: memref<1x128xf32, #tpu.memory_space<vmem>>, %arg12: memref<256x128xf32, #tpu.memory_space<vmem>>, %arg13: memref<256x512xf32, #tpu.memory_space<vmem>>) attributes {dimension_semantics = [#tpu.dimension_semantics<parallel>], iteration_bounds = array<i64: 2>, scalar_prefetch = 0 : i64, scratch_operands = 1 : i64, tpu.core_type = #tpu.core_type<tc>, window_params = [{transform_indices = @transform_0, window_bounds = array<i64: 256, 32>}, {pipeline_mode = #tpu.pipeline_mode<synchronous>, transform_indices = @transform_1, window_bounds = array<i64: 32, 512>}, {pipeline_mode = #tpu.pipeline_mode<synchronous>, transform_indices = @transform_2, window_bounds = array<i64: 1, 512>}, {pipeline_mode = #tpu.pipeline_mode<synchronous>, transform_indices = @transform_3, window_bounds = array<i64: 3, 128, 128>}, {pipeline_mode = #tpu.pipeline_mode<synchronous>, transform_indices = @transform_4, window_bounds = array<i64: 3, 128, 128>}, {pipeline_mode = #tpu.pipeline_mode<synchronous>, transform_indices = @transform_5, window_bounds = array<i64: 3, 1, 128>}, {pipeline_mode = #tpu.pipeline_mode<synchronous>, transform_indices = @transform_6, window_bounds = array<i64: 3, 1, 128>}, {pipeline_mode = #tpu.pipeline_mode<synchronous>, transform_indices = @transform_7, window_bounds = array<i64: 3, 1, 128>}, {pipeline_mode = #tpu.pipeline_mode<synchronous>, transform_indices = @transform_8, window_bounds = array<i64: 32, 128>}, {pipeline_mode = #tpu.pipeline_mode<synchronous>, transform_indices = @transform_9, window_bounds = array<i64: 128, 128>}, {pipeline_mode = #tpu.pipeline_mode<synchronous>, transform_indices = @transform_10, window_bounds = array<i64: 1, 128>}, {transform_indices = @transform_11, window_bounds = array<i64: 256, 128>}]} {
    %c0 = arith.constant 0 : index
    %c0_0 = arith.constant 0 : index
    %0 = vector.load %arg1[%c0, %c0_0] : memref<256x32xbf16, #tpu.memory_space<vmem>>, vector<256x32xbf16>
    %c0_1 = arith.constant 0 : index
    %c0_2 = arith.constant 0 : index
    %1 = vector.load %arg2[%c0_1, %c0_2] : memref<32x512xbf16, #tpu.memory_space<vmem>>, vector<32x512xbf16>
    %cst = arith.constant dense<0.000000e+00> : vector<256x512xf32>
    %2 = tpu.matmul %0, %1, %cst {dimension_numbers = #tpu.dot_dimension_numbers<[1], [0], [0], [1], [0, 0, 1, 1], [], []>} : vector<256x32xbf16>, vector<32x512xbf16>, vector<256x512xf32> -> vector<256x512xf32>
    %c0_3 = arith.constant 0 : index
    %c0_4 = arith.constant 0 : index
    %3 = vector.load %arg3[%c0_3, %c0_4] : memref<1x512xf32, #tpu.memory_space<vmem>>, vector<1x512xf32>
    %4 = vector.broadcast %3 : vector<1x512xf32> to vector<256x512xf32>
    %5 = arith.addf %2, %4 : vector<256x512xf32>
    %c0_5 = arith.constant 0 : index
    %c0_6 = arith.constant 0 : index
    %6 = vector.load %arg13[%c0_5, %c0_6] : memref<256x512xf32, #tpu.memory_space<vmem>>, vector<256x512xf32>
    tpu.vector_store %arg13[%c0_5, %c0_6], %5 {strides = array<i32>} : memref<256x512xf32, #tpu.memory_space<vmem>>, vector<256x512xf32>,
    %c0_7 = arith.constant 0 : index
    %c0_8 = arith.constant 0 : index
    %7 = vector.load %arg13[%c0_7, %c0_8] : memref<256x512xf32, #tpu.memory_space<vmem>>, vector<256x128xf32>
    %c0_9 = arith.constant 0 : index
    %c128 = arith.constant 128 : index
    %8 = vector.load %arg13[%c0_9, %c128] : memref<256x512xf32, #tpu.memory_space<vmem>>, vector<256x128xf32>
    %9 = arith.truncf %7 : vector<256x128xf32> to vector<256x128xbf16>
    %c0_10 = arith.constant 0 : index
    %c0_11 = arith.constant 0 : index
    %c0_12 = arith.constant 0 : index
    %10 = vector.load %arg4[%c0_10, %c0_11, %c0_12] : memref<3x128x128xbf16, #tpu.memory_space<vmem>>, vector<1x128x128xbf16>
    %11 = vector.shape_cast %10 : vector<1x128x128xbf16> to vector<128x128xbf16>
    %cst_13 = arith.constant dense<0.000000e+00> : vector<256x128xf32>
    %12 = tpu.matmul %9, %11, %cst_13 {dimension_numbers = #tpu.dot_dimension_numbers<[1], [0], [0], [1], [0, 0, 1, 1], [], []>} : vector<256x128xbf16>, vector<128x128xbf16>, vector<256x128xf32> -> vector<256x128xf32>
    %13 = arith.addf %8, %12 : vector<256x128xf32>
    %cst_14 = arith.constant 0.00999999977 : f32
    %14 = vector.broadcast %cst_14 : f32 to vector<256x128xf32>
    %15 = arith.mulf %14, %13 : vector<256x128xf32>
    %16 = arith.maximumf %13, %15 : vector<256x128xf32>
    %17 = arith.truncf %16 : vector<256x128xf32> to vector<256x128xbf16>
    %c0_15 = arith.constant 0 : index
    %c0_16 = arith.constant 0 : index
    %c0_17 = arith.constant 0 : index
    %18 = vector.load %arg5[%c0_15, %c0_16, %c0_17] : memref<3x128x128xbf16, #tpu.memory_space<vmem>>, vector<1x128x128xbf16>
    %19 = vector.shape_cast %18 : vector<1x128x128xbf16> to vector<128x128xbf16>
    %cst_18 = arith.constant dense<0.000000e+00> : vector<256x128xf32>
    %20 = tpu.matmul %17, %19, %cst_18 {dimension_numbers = #tpu.dot_dimension_numbers<[1], [0], [0], [1], [0, 0, 1, 1], [], []>} : vector<256x128xbf16>, vector<128x128xbf16>, vector<256x128xf32> -> vector<256x128xf32>
    %c0_19 = arith.constant 0 : index
    %c0_20 = arith.constant 0 : index
    %c0_21 = arith.constant 0 : index
    %21 = vector.load %arg6[%c0_19, %c0_20, %c0_21] : memref<3x1x128xf32, #tpu.memory_space<vmem>>, vector<1x1x128xf32>
    %22 = vector.shape_cast %21 : vector<1x1x128xf32> to vector<1x128xf32>
    %23 = vector.broadcast %22 : vector<1x128xf32> to vector<256x128xf32>
    %24 = arith.addf %20, %23 : vector<256x128xf32>
    %cst_22 = arith.constant dense<0.000000e+00> : vector<256xf32>
    %25 = vector.multi_reduction <add>, %24, %cst_22 [1] : vector<256x128xf32> to vector<256xf32>
    %26 = vector.shape_cast %25 : vector<256xf32> to vector<256x1xf32>
    %cst_23 = arith.constant 1.280000e+02 : f32
    %27 = vector.broadcast %cst_23 : f32 to vector<256x1xf32>
    %28 = arith.divf %26, %27 : vector<256x1xf32>
    %29 = vector.broadcast %28 : vector<256x1xf32> to vector<256x128xf32>
    %30 = arith.subf %24, %29 : vector<256x128xf32>
    %31 = arith.mulf %30, %30 : vector<256x128xf32>
    %cst_24 = arith.constant dense<0.000000e+00> : vector<256xf32>
    %32 = vector.multi_reduction <add>, %31, %cst_24 [1] : vector<256x128xf32> to vector<256xf32>
    %33 = vector.shape_cast %32 : vector<256xf32> to vector<256x1xf32>
    %cst_25 = arith.constant 1.280000e+02 : f32
    %34 = vector.broadcast %cst_25 : f32 to vector<256x1xf32>
    %35 = arith.divf %33, %34 : vector<256x1xf32>
    %cst_26 = arith.constant 9.99999974E-6 : f32
    %36 = vector.broadcast %cst_26 : f32 to vector<256x1xf32>
    %37 = arith.addf %35, %36 : vector<256x1xf32>
    %38 = math.rsqrt %37 : vector<256x1xf32>
    %39 = vector.broadcast %38 : vector<256x1xf32> to vector<256x128xf32>
    %40 = arith.mulf %30, %39 : vector<256x128xf32>
    %c0_27 = arith.constant 0 : index
    %c0_28 = arith.constant 0 : index
    %c0_29 = arith.constant 0 : index
    %41 = vector.load %arg7[%c0_27, %c0_28, %c0_29] : memref<3x1x128xf32, #tpu.memory_space<vmem>>, vector<1x1x128xf32>
    %42 = vector.shape_cast %41 : vector<1x1x128xf32> to vector<1x128xf32>
    %43 = vector.broadcast %42 : vector<1x128xf32> to vector<256x128xf32>
    %44 = arith.mulf %40, %43 : vector<256x128xf32>
    %c0_30 = arith.constant 0 : index
    %c0_31 = arith.constant 0 : index
    %c0_32 = arith.constant 0 : index
    %45 = vector.load %arg8[%c0_30, %c0_31, %c0_32] : memref<3x1x128xf32, #tpu.memory_space<vmem>>, vector<1x1x128xf32>
    %46 = vector.shape_cast %45 : vector<1x1x128xf32> to vector<1x128xf32>
    %47 = vector.broadcast %46 : vector<1x128xf32> to vector<256x128xf32>
    %48 = arith.addf %44, %47 : vector<256x128xf32>
    %c0_33 = arith.constant 0 : index
    %c256 = arith.constant 256 : index
    %49 = vector.load %arg13[%c0_33, %c256] : memref<256x512xf32, #tpu.memory_space<vmem>>, vector<256x128xf32>
    %50 = arith.truncf %48 : vector<256x128xf32> to vector<256x128xbf16>
    %c1 = arith.constant 1 : index
    %c0_34 = arith.constant 0 : index
    %c0_35 = arith.constant 0 : index
    %51 = vector.load %arg4[%c1, %c0_34, %c0_35] : memref<3x128x128xbf16, #tpu.memory_space<vmem>>, vector<1x128x128xbf16>
    %52 = vector.shape_cast %51 : vector<1x128x128xbf16> to vector<128x128xbf16>
    %cst_36 = arith.constant dense<0.000000e+00> : vector<256x128xf32>
    %53 = tpu.matmul %50, %52, %cst_36 {dimension_numbers = #tpu.dot_dimension_numbers<[1], [0], [0], [1], [0, 0, 1, 1], [], []>} : vector<256x128xbf16>, vector<128x128xbf16>, vector<256x128xf32> -> vector<256x128xf32>
    %54 = arith.addf %49, %53 : vector<256x128xf32>
    %cst_37 = arith.constant 0.00999999977 : f32
    %55 = vector.broadcast %cst_37 : f32 to vector<256x128xf32>
    %56 = arith.mulf %55, %54 : vector<256x128xf32>
    %57 = arith.maximumf %54, %56 : vector<256x128xf32>
    %58 = arith.truncf %57 : vector<256x128xf32> to vector<256x128xbf16>
    %c1_38 = arith.constant 1 : index
    %c0_39 = arith.constant 0 : index
    %c0_40 = arith.constant 0 : index
    %59 = vector.load %arg5[%c1_38, %c0_39, %c0_40] : memref<3x128x128xbf16, #tpu.memory_space<vmem>>, vector<1x128x128xbf16>
    %60 = vector.shape_cast %59 : vector<1x128x128xbf16> to vector<128x128xbf16>
    %cst_41 = arith.constant dense<0.000000e+00> : vector<256x128xf32>
    %61 = tpu.matmul %58, %60, %cst_41 {dimension_numbers = #tpu.dot_dimension_numbers<[1], [0], [0], [1], [0, 0, 1, 1], [], []>} : vector<256x128xbf16>, vector<128x128xbf16>, vector<256x128xf32> -> vector<256x128xf32>
    %c1_42 = arith.constant 1 : index
    %c0_43 = arith.constant 0 : index
    %c0_44 = arith.constant 0 : index
    %62 = vector.load %arg6[%c1_42, %c0_43, %c0_44] : memref<3x1x128xf32, #tpu.memory_space<vmem>>, vector<1x1x128xf32>
    %63 = vector.shape_cast %62 : vector<1x1x128xf32> to vector<1x128xf32>
    %64 = vector.broadcast %63 : vector<1x128xf32> to vector<256x128xf32>
    %65 = arith.addf %61, %64 : vector<256x128xf32>
    %cst_45 = arith.constant dense<0.000000e+00> : vector<256xf32>
    %66 = vector.multi_reduction <add>, %65, %cst_45 [1] : vector<256x128xf32> to vector<256xf32>
    %67 = vector.shape_cast %66 : vector<256xf32> to vector<256x1xf32>
    %cst_46 = arith.constant 1.280000e+02 : f32
    %68 = vector.broadcast %cst_46 : f32 to vector<256x1xf32>
    %69 = arith.divf %67, %68 : vector<256x1xf32>
    %70 = vector.broadcast %69 : vector<256x1xf32> to vector<256x128xf32>
    %71 = arith.subf %65, %70 : vector<256x128xf32>
    %72 = arith.mulf %71, %71 : vector<256x128xf32>
    %cst_47 = arith.constant dense<0.000000e+00> : vector<256xf32>
    %73 = vector.multi_reduction <add>, %72, %cst_47 [1] : vector<256x128xf32> to vector<256xf32>
    %74 = vector.shape_cast %73 : vector<256xf32> to vector<256x1xf32>
    %cst_48 = arith.constant 1.280000e+02 : f32
    %75 = vector.broadcast %cst_48 : f32 to vector<256x1xf32>
    %76 = arith.divf %74, %75 : vector<256x1xf32>
    %cst_49 = arith.constant 9.99999974E-6 : f32
    %77 = vector.broadcast %cst_49 : f32 to vector<256x1xf32>
    %78 = arith.addf %76, %77 : vector<256x1xf32>
    %79 = math.rsqrt %78 : vector<256x1xf32>
    %80 = vector.broadcast %79 : vector<256x1xf32> to vector<256x128xf32>
    %81 = arith.mulf %71, %80 : vector<256x128xf32>
    %c1_50 = arith.constant 1 : index
    %c0_51 = arith.constant 0 : index
    %c0_52 = arith.constant 0 : index
    %82 = vector.load %arg7[%c1_50, %c0_51, %c0_52] : memref<3x1x128xf32, #tpu.memory_space<vmem>>, vector<1x1x128xf32>
    %83 = vector.shape_cast %82 : vector<1x1x128xf32> to vector<1x128xf32>
    %84 = vector.broadcast %83 : vector<1x128xf32> to vector<256x128xf32>
    %85 = arith.mulf %81, %84 : vector<256x128xf32>
    %c1_53 = arith.constant 1 : index
    %c0_54 = arith.constant 0 : index
    %c0_55 = arith.constant 0 : index
    %86 = vector.load %arg8[%c1_53, %c0_54, %c0_55] : memref<3x1x128xf32, #tpu.memory_space<vmem>>, vector<1x1x128xf32>
    %87 = vector.shape_cast %86 : vector<1x1x128xf32> to vector<1x128xf32>
    %88 = vector.broadcast %87 : vector<1x128xf32> to vector<256x128xf32>
    %89 = arith.addf %85, %88 : vector<256x128xf32>
    %c0_56 = arith.constant 0 : index
    %c384 = arith.constant 384 : index
    %90 = vector.load %arg13[%c0_56, %c384] : memref<256x512xf32, #tpu.memory_space<vmem>>, vector<256x128xf32>
    %91 = arith.truncf %89 : vector<256x128xf32> to vector<256x128xbf16>
    %c2 = arith.constant 2 : index
    %c0_57 = arith.constant 0 : index
    %c0_58 = arith.constant 0 : index
    %92 = vector.load %arg4[%c2, %c0_57, %c0_58] : memref<3x128x128xbf16, #tpu.memory_space<vmem>>, vector<1x128x128xbf16>
    %93 = vector.shape_cast %92 : vector<1x128x128xbf16> to vector<128x128xbf16>
    %cst_59 = arith.constant dense<0.000000e+00> : vector<256x128xf32>
    %94 = tpu.matmul %91, %93, %cst_59 {dimension_numbers = #tpu.dot_dimension_numbers<[1], [0], [0], [1], [0, 0, 1, 1], [], []>} : vector<256x128xbf16>, vector<128x128xbf16>, vector<256x128xf32> -> vector<256x128xf32>
    %95 = arith.addf %90, %94 : vector<256x128xf32>
    %cst_60 = arith.constant 0.00999999977 : f32
    %96 = vector.broadcast %cst_60 : f32 to vector<256x128xf32>
    %97 = arith.mulf %96, %95 : vector<256x128xf32>
    %98 = arith.maximumf %95, %97 : vector<256x128xf32>
    %99 = arith.truncf %98 : vector<256x128xf32> to vector<256x128xbf16>
    %c2_61 = arith.constant 2 : index
    %c0_62 = arith.constant 0 : index
    %c0_63 = arith.constant 0 : index
    %100 = vector.load %arg5[%c2_61, %c0_62, %c0_63] : memref<3x128x128xbf16, #tpu.memory_space<vmem>>, vector<1x128x128xbf16>
    %101 = vector.shape_cast %100 : vector<1x128x128xbf16> to vector<128x128xbf16>
    %cst_64 = arith.constant dense<0.000000e+00> : vector<256x128xf32>
    %102 = tpu.matmul %99, %101, %cst_64 {dimension_numbers = #tpu.dot_dimension_numbers<[1], [0], [0], [1], [0, 0, 1, 1], [], []>} : vector<256x128xbf16>, vector<128x128xbf16>, vector<256x128xf32> -> vector<256x128xf32>
    %c2_65 = arith.constant 2 : index
    %c0_66 = arith.constant 0 : index
    %c0_67 = arith.constant 0 : index
    %103 = vector.load %arg6[%c2_65, %c0_66, %c0_67] : memref<3x1x128xf32, #tpu.memory_space<vmem>>, vector<1x1x128xf32>
    %104 = vector.shape_cast %103 : vector<1x1x128xf32> to vector<1x128xf32>
    %105 = vector.broadcast %104 : vector<1x128xf32> to vector<256x128xf32>
    %106 = arith.addf %102, %105 : vector<256x128xf32>
    %cst_68 = arith.constant dense<0.000000e+00> : vector<256xf32>
    %107 = vector.multi_reduction <add>, %106, %cst_68 [1] : vector<256x128xf32> to vector<256xf32>
    %108 = vector.shape_cast %107 : vector<256xf32> to vector<256x1xf32>
    %cst_69 = arith.constant 1.280000e+02 : f32
    %109 = vector.broadcast %cst_69 : f32 to vector<256x1xf32>
    %110 = arith.divf %108, %109 : vector<256x1xf32>
    %111 = vector.broadcast %110 : vector<256x1xf32> to vector<256x128xf32>
    %112 = arith.subf %106, %111 : vector<256x128xf32>
    %113 = arith.mulf %112, %112 : vector<256x128xf32>
    %cst_70 = arith.constant dense<0.000000e+00> : vector<256xf32>
    %114 = vector.multi_reduction <add>, %113, %cst_70 [1] : vector<256x128xf32> to vector<256xf32>
    %115 = vector.shape_cast %114 : vector<256xf32> to vector<256x1xf32>
    %cst_71 = arith.constant 1.280000e+02 : f32
    %116 = vector.broadcast %cst_71 : f32 to vector<256x1xf32>
    %117 = arith.divf %115, %116 : vector<256x1xf32>
    %cst_72 = arith.constant 9.99999974E-6 : f32
    %118 = vector.broadcast %cst_72 : f32 to vector<256x1xf32>
    %119 = arith.addf %117, %118 : vector<256x1xf32>
    %120 = math.rsqrt %119 : vector<256x1xf32>
    %121 = vector.broadcast %120 : vector<256x1xf32> to vector<256x128xf32>
    %122 = arith.mulf %112, %121 : vector<256x128xf32>
    %c2_73 = arith.constant 2 : index
    %c0_74 = arith.constant 0 : index
    %c0_75 = arith.constant 0 : index
    %123 = vector.load %arg7[%c2_73, %c0_74, %c0_75] : memref<3x1x128xf32, #tpu.memory_space<vmem>>, vector<1x1x128xf32>
    %124 = vector.shape_cast %123 : vector<1x1x128xf32> to vector<1x128xf32>
    %125 = vector.broadcast %124 : vector<1x128xf32> to vector<256x128xf32>
    %126 = arith.mulf %122, %125 : vector<256x128xf32>
    %c2_76 = arith.constant 2 : index
    %c0_77 = arith.constant 0 : index
    %c0_78 = arith.constant 0 : index
    %127 = vector.load %arg8[%c2_76, %c0_77, %c0_78] : memref<3x1x128xf32, #tpu.memory_space<vmem>>, vector<1x1x128xf32>
    %128 = vector.shape_cast %127 : vector<1x1x128xf32> to vector<1x128xf32>
    %129 = vector.broadcast %128 : vector<1x128xf32> to vector<256x128xf32>
    %130 = arith.addf %126, %129 : vector<256x128xf32>
    %c0_79 = arith.constant 0 : index
    %c0_80 = arith.constant 0 : index
    %131 = vector.load %arg9[%c0_79, %c0_80] : memref<32x128xbf16, #tpu.memory_space<vmem>>, vector<32x128xbf16>
    %cst_81 = arith.constant dense<0.000000e+00> : vector<256x128xf32>
    %132 = tpu.matmul %0, %131, %cst_81 {dimension_numbers = #tpu.dot_dimension_numbers<[1], [0], [0], [1], [0, 0, 1, 1], [], []>} : vector<256x32xbf16>, vector<32x128xbf16>, vector<256x128xf32> -> vector<256x128xf32>
    %133 = arith.truncf %130 : vector<256x128xf32> to vector<256x128xbf16>
    %c0_82 = arith.constant 0 : index
    %c0_83 = arith.constant 0 : index
    %134 = vector.load %arg10[%c0_82, %c0_83] : memref<128x128xbf16, #tpu.memory_space<vmem>>, vector<128x128xbf16>
    %cst_84 = arith.constant dense<0.000000e+00> : vector<256x128xf32>
    %135 = tpu.matmul %133, %134, %cst_84 {dimension_numbers = #tpu.dot_dimension_numbers<[1], [0], [0], [1], [0, 0, 1, 1], [], []>} : vector<256x128xbf16>, vector<128x128xbf16>, vector<256x128xf32> -> vector<256x128xf32>
    %136 = arith.addf %132, %135 : vector<256x128xf32>
    %c0_85 = arith.constant 0 : index
    %c0_86 = arith.constant 0 : index
    %137 = vector.load %arg11[%c0_85, %c0_86] : memref<1x128xf32, #tpu.memory_space<vmem>>, vector<1x128xf32>
    %138 = vector.broadcast %137 : vector<1x128xf32> to vector<256x128xf32>
    %139 = arith.addf %136, %138 : vector<256x128xf32>
    %c0_87 = arith.constant 0 : index
    %c0_88 = arith.constant 0 : index
    %140 = vector.load %arg12[%c0_87, %c0_88] : memref<256x128xf32, #tpu.memory_space<vmem>>, vector<256x128xf32>
    tpu.vector_store %arg12[%c0_87, %c0_88], %139 {strides = array<i32>} : memref<256x128xf32, #tpu.memory_space<vmem>>, vector<256x128xf32>,
    return
  }
  func.func @transform_0(%arg0: i32) -> (i32, i32) {
    %c0_i32 = arith.constant 0 : i32
    %c0_i32_0 = arith.constant 0 : i32
    return %arg0, %c0_i32 : i32, i32
  }
  func.func @transform_1(%arg0: i32) -> (i32, i32) {
    %c0_i32 = arith.constant 0 : i32
    %c0_i32_0 = arith.constant 0 : i32
    %c0_i32_1 = arith.constant 0 : i32
    return %c0_i32, %c0_i32_0 : i32, i32
  }
  func.func @transform_2(%arg0: i32) -> (i32, i32) {
    %c0_i32 = arith.constant 0 : i32
    %c0_i32_0 = arith.constant 0 : i32
    %c0_i32_1 = arith.constant 0 : i32
    return %c0_i32, %c0_i32_0 : i32, i32
  }
  func.func @transform_3(%arg0: i32) -> (i32, i32, i32) {
    %c0_i32 = arith.constant 0 : i32
    %c0_i32_0 = arith.constant 0 : i32
    %c0_i32_1 = arith.constant 0 : i32
    %c0_i32_2 = arith.constant 0 : i32
    return %c0_i32, %c0_i32_0, %c0_i32_1 : i32, i32, i32
  }
  func.func @transform_4(%arg0: i32) -> (i32, i32, i32) {
    %c0_i32 = arith.constant 0 : i32
    %c0_i32_0 = arith.constant 0 : i32
    %c0_i32_1 = arith.constant 0 : i32
    %c0_i32_2 = arith.constant 0 : i32
    return %c0_i32, %c0_i32_0, %c0_i32_1 : i32, i32, i32
  }
  func.func @transform_5(%arg0: i32) -> (i32, i32, i32) {
    %c0_i32 = arith.constant 0 : i32
    %c0_i32_0 = arith.constant 0 : i32
    %c0_i32_1 = arith.constant 0 : i32
    %c0_i32_2 = arith.constant 0 : i32
    return %c0_i32, %c0_i32_0, %c0_i32_1 : i32, i32, i32
  }
  func.func @transform_6(%arg0: i32) -> (i32, i32, i32) {
    %c0_i32 = arith.constant 0 : i32
    %c0_i32_0 = arith.constant 0 : i32
    %c0_i32_1 = arith.constant 0 : i32
    %c0_i32_2 = arith.constant 0 : i32
    return %c0_i32, %c0_i32_0, %c0_i32_1 : i32, i32, i32
  }
  func.func @transform_7(%arg0: i32) -> (i32, i32, i32) {
    %c0_i32 = arith.constant 0 : i32
    %c0_i32_0 = arith.constant 0 : i32
    %c0_i32_1 = arith.constant 0 : i32
    %c0_i32_2 = arith.constant 0 : i32
    return %c0_i32, %c0_i32_0, %c0_i32_1 : i32, i32, i32
  }
  func.func @transform_8(%arg0: i32) -> (i32, i32) {
    %c0_i32 = arith.constant 0 : i32
    %c0_i32_0 = arith.constant 0 : i32
    %c0_i32_1 = arith.constant 0 : i32
    return %c0_i32, %c0_i32_0 : i32, i32
  }
  func.func @transform_9(%arg0: i32) -> (i32, i32) {
    %c0_i32 = arith.constant 0 : i32
    %c0_i32_0 = arith.constant 0 : i32
    %c0_i32_1 = arith.constant 0 : i32
    return %c0_i32, %c0_i32_0 : i32, i32
  }
  func.func @transform_10(%arg0: i32) -> (i32, i32) {
    %c0_i32 = arith.constant 0 : i32
    %c0_i32_0 = arith.constant 0 : i32
    %c0_i32_1 = arith.constant 0 : i32
    return %c0_i32, %c0_i32_0 : i32, i32
  }
  func.func @transform_11(%arg0: i32) -> (i32, i32) {
    %c0_i32 = arith.constant 0 : i32
    %c0_i32_0 = arith.constant 0 : i32
    return %arg0, %c0_i32 : i32, i32
  }
}

</mosaic_0001>

<llo_original>
// kernel: tpu_custom_call.1
$region0: #{tpu_custom_call.1}
  #allocation0 [shape = 'u32[]', space=smem, size = 0x4, offset = 0x4, fixed_abs, tag = 'smem constant byte address 0x4 - core index']
  #allocation1 [shape = 'u32[144,128]{1,0:T(1,128)}', space=vmem, size = 0x12000, scoped, tag = 'internal scratch']
  #allocation2 [shape = 'f32[256,512]{1,0:T(8,128)}', space=vmem, size = 0x80000, scoped, tag = 'scratch operand']
  %s0 = inlined_call_operand.vmem [shape: bf16[512,32], index: 0, kind: input, shape index: {}]
  %s1 = inlined_call_operand.vmem [shape: bf16[32,512], index: 1, kind: input, shape index: {}]
  %s2 = inlined_call_operand.hbm [shape: f32[1,512], index: 2, kind: input, shape index: {}]
  %s3 = inlined_call_operand.vmem [shape: bf16[3,128,128], index: 3, kind: input, shape index: {}]
  %s4 = inlined_call_operand.hbm [shape: bf16[3,128,128], index: 4, kind: input, shape index: {}]
  %s5 = inlined_call_operand.hbm [shape: f32[3,1,128], index: 5, kind: input, shape index: {}]
  %s6 = inlined_call_operand.vmem [shape: f32[3,1,128], index: 6, kind: input, shape index: {}]
  %s7 = inlined_call_operand.vmem [shape: f32[3,1,128], index: 7, kind: input, shape index: {}]
  %s8 = inlined_call_operand.vmem [shape: bf16[32,128], index: 8, kind: input, shape index: {}]
  %s9 = inlined_call_operand.vmem [shape: bf16[128,128], index: 9, kind: input, shape index: {}]
  %s10 = inlined_call_operand.vmem [shape: f32[1,128], index: 10, kind: input, shape index: {}]
  %s11 = inlined_call_operand.hbm [shape: f32[512,128], index: 11, kind: output, shape index: {}]
  %s12 = sld [smem:[#allocation0]]
  $region89: #{tpu_custom_call.1} parent=0
    _
  %s14 = ssub.s32 1, %s12
  %s15 = scalar_select 0, %s14, %s12
  $region1: #{tpu_custom_call.1} parent=0
    #allocation3 [shape = 'u8[2048]{0}', space=vmem, size = 0x800, scoped, tag = 'input window, operand 2, single buffered']
    #allocation4 [shape = 's32[2]{0}', space=sflag, size = 0x8, scoped, tag = 'scoped memory for tpu_custom_call.1']
    #allocation5 [shape = 's32[2]{0}', space=sflag, size = 0x8, scoped, tag = 'scoped memory for tpu_custom_call.1']
    #allocation6 [shape = 'u8[98304]{0}', space=vmem, size = 0x18000, scoped, tag = 'input window, operand 4, single buffered']
    #allocation7 [shape = 's32[1]{0}', space=sflag, size = 0x4, scoped, tag = 'scoped memory for tpu_custom_call.1']
    #allocation8 [shape = 'u8[1536]{0}', space=vmem, size = 0x800, scoped, tag = 'input window, operand 5, single buffered']
    #allocation9 [shape = 'u8[262144]{0}', space=vmem, size = 0x40000, scoped, tag = 'output window, operand 0']
    %16 = vsyncpa [#allocation4], 0
    %17 = vsyncpa [#allocation7], 0
    %18 = vsyncpa [#allocation5], 0
    %s19 = scalar_lea.sflag [#allocation5], 1
    %20 = vsyncpa %s19, 0
    loop: start=0, step=1, limit=4
    $region2: #{tpu_custom_call.1} parent=1 // loop_pre_header
      _
    $region3: #{tpu_custom_call.1} parent=1 // loop_header
      %s22 = sphi 0, %s26
      %p23 = scmp.ge.s32.totalorder %s22, 4
      %s32 = sphi 0, %s34
      %s35 = sphi 0, %s32
      %s36 = sphi 0, %s35
      %s52 = sphi 0, %s36
      %s56 = sphi 0, %s56
      %s58 = sphi 0, %s56
      %s59 = sphi 0, %s58
      %s73 = sphi 0, %s59
      %s77 = sphi 0, %s77
      %s79 = sphi 0, %s77
      %s80 = sphi 0, %s79
      %s94 = sphi 0, %s80
      %s98 = sphi 0, %s98
      %s100 = sphi 0, %s98
      %s101 = sphi 0, %s100
      %s115 = sphi 0, %s101
      %s119 = sphi 0, %s119
      %s121 = sphi 0, %s119
      %s122 = sphi 0, %s121
      %s136 = sphi 0, %s122
      %s140 = sphi 0, %s140
      %s142 = sphi 0, %s140
      %s143 = sphi 0, %s142
      %s157 = sphi 0, %s143
      %s161 = sphi 0, %s161
      %s163 = sphi 0, %s161
      %s164 = sphi 0, %s163
      %s178 = sphi 0, %s164
      %s182 = sphi 0, %s182
      %s184 = sphi 0, %s182
      %s185 = sphi 0, %s184
      %s199 = sphi 0, %s185
      %s203 = sphi 0, %s203
      %s205 = sphi 0, %s203
      %s206 = sphi 0, %s205
      %s220 = sphi 0, %s206
      %s224 = sphi 0, %s224
      %s226 = sphi 0, %s224
      %s227 = sphi 0, %s226
      %s241 = sphi 0, %s227
      %s245 = sphi 0, %s245
      %s247 = sphi 0, %s245
      %s248 = sphi 0, %s247
      %s262 = sphi 0, %s248
      %s268 = sphi 0, %s270
      %s271 = sphi 0, %s268
      %s272 = sphi 0, %s271
      %s288 = sphi 0, %s272
    $region4: #{tpu_custom_call.1} parent=1 // loop_header_branch
      %25 = sbr.rel (%p23) target = $region8
    $region5: #{tpu_custom_call.1} parent=1 // loop_body
      %s27 = ssub.s32 %s22, 1
      %s28 = ssub.s32 %s22, 2
      %s29 = sadd.s32 %s22, 1
      %s30 = ssub.s32 %s22, %s29
      %p31 = scmp.eq.s32.totalorder %s30, 0
      %s33 = sadd.s32 %s32, 1
      %s34 = scalar_select %p31, %s32, %s33
      %p37 = pneg %p31
      %p38 = scmp.eq.s32.totalorder %s22, 1
      %p39 = por %p37, %p38
      %p40 = scmp.ne.s32.totalorder %s32, %s35
      %p41 = scmp.eq.s32.totalorder %s22, 0
      %p42 = por %p40, %p41
      %p43 = scmp.ne.s32.totalorder %s32, %s35
      %p44 = scmp.eq.s32.totalorder %s27, 1
      %p45 = por %p43, %p44
      %p46 = scmp.ne.s32.totalorder %s35, %s36
      %p47 = scmp.eq.s32.totalorder %s27, 0
      %p48 = por %p46, %p47
      %p49 = scmp.ne.s32.totalorder %s35, %s36
      %p50 = scmp.eq.s32.totalorder %s28, 1
      %p51 = por %p49, %p50
      %p53 = scmp.ne.s32.totalorder %s36, %s52
      %p54 = scmp.eq.s32.totalorder %s28, 0
      %p55 = por %p53, %p54
      %s57 = sadd.s32 %s56, 1
      %p60 = scmp.eq.s32.totalorder %s22, 1
      %p61 = scmp.ne.s32.totalorder %s56, %s58
      %p62 = scmp.eq.s32.totalorder %s22, 0
      %p63 = por %p61, %p62
      %p64 = scmp.ne.s32.totalorder %s56, %s58
      %p65 = scmp.eq.s32.totalorder %s27, 1
      %p66 = por %p64, %p65
      %p67 = scmp.ne.s32.totalorder %s58, %s59
      %p68 = scmp.eq.s32.totalorder %s27, 0
      %p69 = por %p67, %p68
      %p70 = scmp.ne.s32.totalorder %s58, %s59
      %p71 = scmp.eq.s32.totalorder %s28, 1
      %p72 = por %p70, %p71
      %p74 = scmp.ne.s32.totalorder %s59, %s73
      %p75 = scmp.eq.s32.totalorder %s28, 0
      %p76 = por %p74, %p75
      %s78 = sadd.s32 %s77, 1
      %p81 = scmp.eq.s32.totalorder %s22, 1
      %p82 = scmp.ne.s32.totalorder %s77, %s79
      %p83 = scmp.eq.s32.totalorder %s22, 0
      %p84 = por %p82, %p83
      %p85 = scmp.ne.s32.totalorder %s77, %s79
      %p86 = scmp.eq.s32.totalorder %s27, 1
      %p87 = por %p85, %p86
      %p88 = scmp.ne.s32.totalorder %s79, %s80
      %p89 = scmp.eq.s32.totalorder %s27, 0
      %p90 = por %p88, %p89
      %p91 = scmp.ne.s32.totalorder %s79, %s80
      %p92 = scmp.eq.s32.totalorder %s28, 1
      %p93 = por %p91, %p92
      %p95 = scmp.ne.s32.totalorder %s80, %s94
      %p96 = scmp.eq.s32.totalorder %s28, 0
      %p97 = por %p95, %p96
      %s99 = sadd.s32 %s98, 1
      %p102 = scmp.eq.s32.totalorder %s22, 1
      %p103 = scmp.ne.s32.totalorder %s98, %s100
      %p104 = scmp.eq.s32.totalorder %s22, 0
      %p105 = por %p103, %p104
      %p106 = scmp.ne.s32.totalorder %s98, %s100
      %p107 = scmp.eq.s32.totalorder %s27, 1
      %p108 = por %p106, %p107
      %p109 = scmp.ne.s32.totalorder %s100, %s101
      %p110 = scmp.eq.s32.totalorder %s27, 0
      %p111 = por %p109, %p110
      %p112 = scmp.ne.s32.totalorder %s100, %s101
      %p113 = scmp.eq.s32.totalorder %s28, 1
      %p114 = por %p112, %p113
      %p116 = scmp.ne.s32.totalorder %s101, %s115
      %p117 = scmp.eq.s32.totalorder %s28, 0
      %p118 = por %p116, %p117
      %s120 = sadd.s32 %s119, 1
      %p123 = scmp.eq.s32.totalorder %s22, 1
      %p124 = scmp.ne.s32.totalorder %s119, %s121
      %p125 = scmp.eq.s32.totalorder %s22, 0
      %p126 = por %p124, %p125
      %p127 = scmp.ne.s32.totalorder %s119, %s121
      %p128 = scmp.eq.s32.totalorder %s27, 1
      %p129 = por %p127, %p128
      %p130 = scmp.ne.s32.totalorder %s121, %s122
      %p131 = scmp.eq.s32.totalorder %s27, 0
      %p132 = por %p130, %p131
      %p133 = scmp.ne.s32.totalorder %s121, %s122
      %p134 = scmp.eq.s32.totalorder %s28, 1
      %p135 = por %p133, %p134
      %p137 = scmp.ne.s32.totalorder %s122, %s136
      %p138 = scmp.eq.s32.totalorder %s28, 0
      %p139 = por %p137, %p138
      %s141 = sadd.s32 %s140, 1
      %p144 = scmp.eq.s32.totalorder %s22, 1
      %p145 = scmp.ne.s32.totalorder %s140, %s142
      %p146 = scmp.eq.s32.totalorder %s22, 0
      %p147 = por %p145, %p146
      %p148 = scmp.ne.s32.totalorder %s140, %s142
      %p149 = scmp.eq.s32.totalorder %s27, 1
      %p150 = por %p148, %p149
      %p151 = scmp.ne.s32.totalorder %s142, %s143
      %p152 = scmp.eq.s32.totalorder %s27, 0
      %p153 = por %p151, %p152
      %p154 = scmp.ne.s32.totalorder %s142, %s143
      %p155 = scmp.eq.s32.totalorder %s28, 1
      %p156 = por %p154, %p155
      %p158 = scmp.ne.s32.totalorder %s143, %s157
      %p159 = scmp.eq.s32.totalorder %s28, 0
      %p160 = por %p158, %p159
      %s162 = sadd.s32 %s161, 1
      %p165 = scmp.eq.s32.totalorder %s22, 1
      %p166 = scmp.ne.s32.totalorder %s161, %s163
      %p167 = scmp.eq.s32.totalorder %s22, 0
      %p168 = por %p166, %p167
      %p169 = scmp.ne.s32.totalorder %s161, %s163
      %p170 = scmp.eq.s32.totalorder %s27, 1
      %p171 = por %p169, %p170
      %p172 = scmp.ne.s32.totalorder %s163, %s164
      %p173 = scmp.eq.s32.totalorder %s27, 0
      %p174 = por %p172, %p173
      %p175 = scmp.ne.s32.totalorder %s163, %s164
      %p176 = scmp.eq.s32.totalorder %s28, 1
      %p177 = por %p175, %p176
      %p179 = scmp.ne.s32.totalorder %s164, %s178
      %p180 = scmp.eq.s32.totalorder %s28, 0
      %p181 = por %p179, %p180
      %s183 = sadd.s32 %s182, 1
      %p186 = scmp.eq.s32.totalorder %s22, 1
      %p187 = scmp.ne.s32.totalorder %s182, %s184
      %p188 = scmp.eq.s32.totalorder %s22, 0
      %p189 = por %p187, %p188
      %p190 = scmp.ne.s32.totalorder %s182, %s184
      %p191 = scmp.eq.s32.totalorder %s27, 1
      %p192 = por %p190, %p191
      %p193 = scmp.ne.s32.totalorder %s184, %s185
      %p194 = scmp.eq.s32.totalorder %s27, 0
      %p195 = por %p193, %p194
      %p196 = scmp.ne.s32.totalorder %s184, %s185
      %p197 = scmp.eq.s32.totalorder %s28, 1
      %p198 = por %p196, %p197
      %p200 = scmp.ne.s32.totalorder %s185, %s199
      %p201 = scmp.eq.s32.totalorder %s28, 0
      %p202 = por %p200, %p201
      %s204 = sadd.s32 %s203, 1
      %p207 = scmp.eq.s32.totalorder %s22, 1
      %p208 = scmp.ne.s32.totalorder %s203, %s205
      %p209 = scmp.eq.s32.totalorder %s22, 0
      %p210 = por %p208, %p209
      %p211 = scmp.ne.s32.totalorder %s203, %s205
      %p212 = scmp.eq.s32.totalorder %s27, 1
      %p213 = por %p211, %p212
      %p214 = scmp.ne.s32.totalorder %s205, %s206
      %p215 = scmp.eq.s32.totalorder %s27, 0
      %p216 = por %p214, %p215
      %p217 = scmp.ne.s32.totalorder %s205, %s206
      %p218 = scmp.eq.s32.totalorder %s28, 1
      %p219 = por %p217, %p218
      %p221 = scmp.ne.s32.totalorder %s206, %s220
      %p222 = scmp.eq.s32.totalorder %s28, 0
      %p223 = por %p221, %p222
      %s225 = sadd.s32 %s224, 1
      %p228 = scmp.eq.s32.totalorder %s22, 1
      %p229 = scmp.ne.s32.totalorder %s224, %s226
      %p230 = scmp.eq.s32.totalorder %s22, 0
      %p231 = por %p229, %p230
      %p232 = scmp.ne.s32.totalorder %s224, %s226
      %p233 = scmp.eq.s32.totalorder %s27, 1
      %p234 = por %p232, %p233
      %p235 = scmp.ne.s32.totalorder %s226, %s227
      %p236 = scmp.eq.s32.totalorder %s27, 0
      %p237 = por %p235, %p236
      %p238 = scmp.ne.s32.totalorder %s226, %s227
      %p239 = scmp.eq.s32.totalorder %s28, 1
      %p240 = por %p238, %p239
      %p242 = scmp.ne.s32.totalorder %s227, %s241
      %p243 = scmp.eq.s32.totalorder %s28, 0
      %p244 = por %p242, %p243
      %s246 = sadd.s32 %s245, 1
      %p249 = scmp.eq.s32.totalorder %s22, 1
      %p250 = scmp.ne.s32.totalorder %s245, %s247
      %p251 = scmp.eq.s32.totalorder %s22, 0
      %p252 = por %p250, %p251
      %p253 = scmp.ne.s32.totalorder %s245, %s247
      %p254 = scmp.eq.s32.totalorder %s27, 1
      %p255 = por %p253, %p254
      %p256 = scmp.ne.s32.totalorder %s247, %s248
      %p257 = scmp.eq.s32.totalorder %s27, 0
      %p258 = por %p256, %p257
      %p259 = scmp.ne.s32.totalorder %s247, %s248
      %p260 = scmp.eq.s32.totalorder %s28, 1
      %p261 = por %p259, %p260
      %p263 = scmp.ne.s32.totalorder %s248, %s262
      %p264 = scmp.eq.s32.totalorder %s28, 0
      %p265 = por %p263, %p264
      %s266 = ssub.s32 %s22, %s29
      %p267 = scmp.eq.s32.totalorder %s266, 0
      %s269 = sadd.s32 %s268, 1
      %s270 = scalar_select %p267, %s268, %s269
      %p273 = pneg %p267
      %p274 = scmp.eq.s32.totalorder %s22, 1
      %p275 = por %p273, %p274
      %p276 = scmp.ne.s32.totalorder %s268, %s271
      %p277 = scmp.eq.s32.totalorder %s22, 0
      %p278 = por %p276, %p277
      %p279 = scmp.ne.s32.totalorder %s268, %s271
      %p280 = scmp.eq.s32.totalorder %s27, 1
      %p281 = por %p279, %p280
      %p282 = scmp.ne.s32.totalorder %s271, %s272
      %p283 = scmp.eq.s32.totalorder %s27, 0
      %p284 = por %p282, %p283
      %p285 = scmp.ne.s32.totalorder %s271, %s272
      %p286 = scmp.eq.s32.totalorder %s28, 1
      %p287 = por %p285, %p286
      %p289 = scmp.ne.s32.totalorder %s272, %s288
      %p290 = scmp.eq.s32.totalorder %s28, 0
      %p291 = por %p289, %p290
      %p292 = scmp.le.s32.totalorder 1, %s22
      %p293 = scmp.lt.s32.totalorder %s22, 3
      %p294 = pnand %p292, %p293
      %p295 = pneg %p294
      // Predicated region
      $region9: #{tpu_custom_call.1} parent=5 // pred_check
        _
      $region10: #{tpu_custom_call.1} parent=5 // pred_check_branch
        %297 = sbr.rel (%p294) target = $region12
      $region11: #{tpu_custom_call.1} parent=5 // pred_region
        %s298 = ssub.s32 %s22, 1
        // Predicated region
        $region13: #{tpu_custom_call.1} parent=11 // pred_check
          %p299 = pneg %p69
        $region14: #{tpu_custom_call.1} parent=11 // pred_check_branch
          %301 = sbr.rel (%p299) target = $region16
        $region15: #{tpu_custom_call.1} parent=11 // pred_region
          _
        $region16: #{tpu_custom_call.1} parent=11 // pred_fallthru
          _
        // Predicated region
        $region17: #{tpu_custom_call.1} parent=11 // pred_check
          %p302 = pneg %p90
        $region18: #{tpu_custom_call.1} parent=11 // pred_check_branch
          %304 = sbr.rel (%p302) target = $region20
        $region19: #{tpu_custom_call.1} parent=11 // pred_region
          %s306 = ssub.s32 64, 64
          %307 = vsyncadd [#allocation4], %s306
          %s309 = sshll.u32 [#allocation3], 4
          %s310 = int_to_ptr.vmem [resolvable:$true] %s309
          %312 = dma.hbm_to_vmem [thread:$0]  %s2, 64, %s310, [#allocation4]
        $region20: #{tpu_custom_call.1} parent=11 // pred_fallthru
          _
        // Predicated region
        $region21: #{tpu_custom_call.1} parent=11 // pred_check
          %p313 = pneg %p111
        $region22: #{tpu_custom_call.1} parent=11 // pred_check_branch
          %315 = sbr.rel (%p313) target = $region24
        $region23: #{tpu_custom_call.1} parent=11 // pred_region
          _
        $region24: #{tpu_custom_call.1} parent=11 // pred_fallthru
          _
        // Predicated region
        $region25: #{tpu_custom_call.1} parent=11 // pred_check
          %p316 = pneg %p132
        $region26: #{tpu_custom_call.1} parent=11 // pred_check_branch
          %318 = sbr.rel (%p316) target = $region28
        $region27: #{tpu_custom_call.1} parent=11 // pred_region
          %s320 = ssub.s32 3072, 3072
          %321 = vsyncadd [#allocation7], %s320
          %s322 = sshll.u32 [#allocation6], 4
          %s323 = int_to_ptr.vmem [resolvable:$true] %s322
          %328 = dma.hbm_to_vmem [thread:$0]  %s4, 3072, %s323, [#allocation7], 64, 64, 4
        $region28: #{tpu_custom_call.1} parent=11 // pred_fallthru
          _
        // Predicated region
        $region29: #{tpu_custom_call.1} parent=11 // pred_check
          %p329 = pneg %p153
        $region30: #{tpu_custom_call.1} parent=11 // pred_check_branch
          %331 = sbr.rel (%p329) target = $region32
        $region31: #{tpu_custom_call.1} parent=11 // pred_region
          %s333 = ssub.s32 48, 48
          %334 = vsyncadd [#allocation7], %s333
          %s335 = sshll.u32 [#allocation8], 4
          %s336 = int_to_ptr.vmem [resolvable:$true] %s335
          %341 = dma.hbm_to_vmem [thread:$0]  %s5, 48, %s336, [#allocation7], 16, 16, 1
        $region32: #{tpu_custom_call.1} parent=11 // pred_fallthru
          _
        // Predicated region
        $region33: #{tpu_custom_call.1} parent=11 // pred_check
          %p342 = pneg %p174
        $region34: #{tpu_custom_call.1} parent=11 // pred_check_branch
          %344 = sbr.rel (%p342) target = $region36
        $region35: #{tpu_custom_call.1} parent=11 // pred_region
          _
        $region36: #{tpu_custom_call.1} parent=11 // pred_fallthru
          _
        // Predicated region
        $region37: #{tpu_custom_call.1} parent=11 // pred_check
          %p345 = pneg %p195
        $region38: #{tpu_custom_call.1} parent=11 // pred_check_branch
          %347 = sbr.rel (%p345) target = $region40
        $region39: #{tpu_custom_call.1} parent=11 // pred_region
          _
        $region40: #{tpu_custom_call.1} parent=11 // pred_fallthru
          _
        // Predicated region
        $region41: #{tpu_custom_call.1} parent=11 // pred_check
          %p348 = pneg %p216
        $region42: #{tpu_custom_call.1} parent=11 // pred_check_branch
          %350 = sbr.rel (%p348) target = $region44
        $region43: #{tpu_custom_call.1} parent=11 // pred_region
          _
        $region44: #{tpu_custom_call.1} parent=11 // pred_fallthru
          _
        // Predicated region
        $region45: #{tpu_custom_call.1} parent=11 // pred_check
          %p351 = pneg %p237
        $region46: #{tpu_custom_call.1} parent=11 // pred_check_branch
          %353 = sbr.rel (%p351) target = $region48
        $region47: #{tpu_custom_call.1} parent=11 // pred_region
          _
        $region48: #{tpu_custom_call.1} parent=11 // pred_fallthru
          _
        // Predicated region
        $region49: #{tpu_custom_call.1} parent=11 // pred_check
          %p354 = pneg %p258
        $region50: #{tpu_custom_call.1} parent=11 // pred_check_branch
          %356 = sbr.rel (%p354) target = $region52
        $region51: #{tpu_custom_call.1} parent=11 // pred_region
          _
        $region52: #{tpu_custom_call.1} parent=11 // pred_fallthru
          _
      $region12: #{tpu_custom_call.1} parent=5 // pred_fallthru
        _
      %p357 = scmp.lt.s32.totalorder %s22, 2
      // Predicated region
      $region53: #{tpu_custom_call.1} parent=5 // pred_check
        %p358 = pneg %p357
      $region54: #{tpu_custom_call.1} parent=5 // pred_check_branch
        %360 = sbr.rel (%p358) target = $region56
      $region55: #{tpu_custom_call.1} parent=5 // pred_region
        // Predicated region
        $region57: #{tpu_custom_call.1} parent=55 // pred_check
          %p361 = pneg %p42
        $region58: #{tpu_custom_call.1} parent=55 // pred_check_branch
          %363 = sbr.rel (%p361) target = $region60
        $region59: #{tpu_custom_call.1} parent=55 // pred_region
          %s364 = smul.u32 32, %s22
          %p365 = scmp.lt.s32.totalorder %s364, 63
          %s366 = scalar_select %p365, %s364, 63
          %s367 = smul.addr %s366, 4
          %s368 = scalar_lea.vmem %s0, %s367
          %s369 = smul.u32 32, %s22
        $region60: #{tpu_custom_call.1} parent=55 // pred_fallthru
          _
      $region56: #{tpu_custom_call.1} parent=5 // pred_fallthru
        _
      %p370 = scmp.le.s32.totalorder 1, %s22
      %p371 = scmp.lt.s32.totalorder %s22, 3
      %p372 = pnand %p370, %p371
      %p373 = pneg %p372
      // Predicated region
      $region61: #{tpu_custom_call.1} parent=5 // pred_check
        _
      $region62: #{tpu_custom_call.1} parent=5 // pred_check_branch
        %375 = sbr.rel (%p372) target = $region64
      $region63: #{tpu_custom_call.1} parent=5 // pred_region
        %s376 = ssub.s32 %s22, 1
        // Predicated region
        $region65: #{tpu_custom_call.1} parent=63 // pred_check
          %p377 = pneg %p90
        $region66: #{tpu_custom_call.1} parent=63 // pred_check_branch
          %379 = sbr.rel (%p377) target = $region68
        $region67: #{tpu_custom_call.1} parent=63 // pred_region
          %380 = dma.done [#allocation4], 64
        $region68: #{tpu_custom_call.1} parent=63 // pred_fallthru
          _
        // Predicated region
        $region69: #{tpu_custom_call.1} parent=63 // pred_check
          %p381 = pneg %p132
        $region70: #{tpu_custom_call.1} parent=63 // pred_check_branch
          %383 = sbr.rel (%p381) target = $region72
        $region71: #{tpu_custom_call.1} parent=63 // pred_region
          %384 = dma.done [#allocation7], 3072
        $region72: #{tpu_custom_call.1} parent=63 // pred_fallthru
          _
        // Predicated region
        $region73: #{tpu_custom_call.1} parent=63 // pred_check
          %p385 = pneg %p153
        $region74: #{tpu_custom_call.1} parent=63 // pred_check_branch
          %387 = sbr.rel (%p385) target = $region76
        $region75: #{tpu_custom_call.1} parent=63 // pred_region
          %388 = dma.done [#allocation7], 48
        $region76: #{tpu_custom_call.1} parent=63 // pred_fallthru
          _
        %s389 = smul.u32 32, %s27
        %p390 = scmp.lt.s32.totalorder %s389, 63
        %s391 = scalar_select %p390, %s389, 63
        %s392 = smul.addr %s391, 4
        %s393 = scalar_lea.vmem %s0, %s392
        %p394 = pneg %p48
        %p395 = pneg %p45
        %p396 = pneg %p69
        %p397 = pneg %p66
        %p398 = pneg %p90
        %p399 = pneg %p87
        %p400 = pneg %p111
        %p401 = pneg %p108
        %p402 = pneg %p132
        %p403 = pneg %p129
        %p404 = pneg %p153
        %p405 = pneg %p150
        %p406 = pneg %p174
        %p407 = pneg %p171
        %p408 = pneg %p195
        %p409 = pneg %p192
        %p410 = pneg %p216
        %p411 = pneg %p213
        %p412 = pneg %p237
        %p413 = pneg %p234
        %p414 = pneg %p258
        %p415 = pneg %p255
        %p416 = pneg %p284
        %p417 = pneg %p281
        %s418 = sand.u32 %s271, 1
        %s419 = scalar_lea.sflag [#allocation5], %s418
        %s420 = sand.u32 %s271, 1
        %s421 = smul.addr %s420, 256
        %s422 = scalar_lea.vmem [#allocation9], %s421
        %s423 = smul.u32 32, %s27
        %p424 = scmp.lt.s32.totalorder %s423, 63
        %s425 = scalar_select %p424, %s423, 63
        %s426 = smul.addr %s425, 4
        %s427 = scalar_lea.vmem %s0, %s426
        %s428 = smul.u32 32, %s27
        %s429 = smul.u32 32, %s27
        %v431 = vld [vmem:[%s427] sm:$0xf]
        %v432 = vld [vmem:[%s427 + $0x4] sm:$0xf]
        %v433 = vld [vmem:[%s427 + $0x8] sm:$0xf]
        %v434 = vld [vmem:[%s427 + $0xc] sm:$0xf]
        %v435 = vld [vmem:[%s427 + $0x10] sm:$0xf]
        %v436 = vld [vmem:[%s427 + $0x14] sm:$0xf]
        %v437 = vld [vmem:[%s427 + $0x18] sm:$0xf]
        %v438 = vld [vmem:[%s427 + $0x1c] sm:$0xf]
        %v439 = vld [vmem:[%s427 + $0x20] sm:$0xf]
        %v440 = vld [vmem:[%s427 + $0x24] sm:$0xf]
        %v441 = vld [vmem:[%s427 + $0x28] sm:$0xf]
        %v442 = vld [vmem:[%s427 + $0x2c] sm:$0xf]
        %v443 = vld [vmem:[%s427 + $0x30] sm:$0xf]
        %v444 = vld [vmem:[%s427 + $0x34] sm:$0xf]
        %v445 = vld [vmem:[%s427 + $0x38] sm:$0xf]
        %v446 = vld [vmem:[%s427 + $0x3c] sm:$0xf]
        %v447 = vld [vmem:[%s427 + $0x40] sm:$0xf]
        %v448 = vld [vmem:[%s427 + $0x44] sm:$0xf]
        %v449 = vld [vmem:[%s427 + $0x48] sm:$0xf]
        %v450 = vld [vmem:[%s427 + $0x4c] sm:$0xf]
        %v451 = vld [vmem:[%s427 + $0x50] sm:$0xf]
        %v452 = vld [vmem:[%s427 + $0x54] sm:$0xf]
        %v453 = vld [vmem:[%s427 + $0x58] sm:$0xf]
        %v454 = vld [vmem:[%s427 + $0x5c] sm:$0xf]
        %v455 = vld [vmem:[%s427 + $0x60] sm:$0xf]
        %v456 = vld [vmem:[%s427 + $0x64] sm:$0xf]
        %v457 = vld [vmem:[%s427 + $0x68] sm:$0xf]
        %v458 = vld [vmem:[%s427 + $0x6c] sm:$0xf]
        %v459 = vld [vmem:[%s427 + $0x70] sm:$0xf]
        %v460 = vld [vmem:[%s427 + $0x74] sm:$0xf]
        %v461 = vld [vmem:[%s427 + $0x78] sm:$0xf]
        %v462 = vld [vmem:[%s427 + $0x7c] sm:$0xf]
        %v463 = vld [vmem:[%s1] sm:$0xff]
        %v464 = vld [vmem:[%s1 + $0x8] sm:$0xff]
        %v465 = vld [vmem:[%s1 + $0x10] sm:$0xff]
        %v466 = vld [vmem:[%s1 + $0x18] sm:$0xff]
        %v467 = vld [vmem:[%s1 + $0x20] sm:$0xff]
        %v468 = vld [vmem:[%s1 + $0x28] sm:$0xff]
        %v469 = vld [vmem:[%s1 + $0x30] sm:$0xff]
        %v470 = vld [vmem:[%s1 + $0x38] sm:$0xff]
        %v471 = vld [vmem:[#allocation3] sm:$0xf]
        %v473 = vlaneseq
        %v474 = vshrl.u32 %v473, 7
        %v475 = vsub.s32 0, %v474
        %v476 = vrot.slane %v471, %v475
        %v477 = vlaneseq
        %v478 = vshrl.u32 %v477, 7
        %v479 = vsub.s32 1, %v478
        %v480 = vrot.slane %v471, %v479
        %v481 = vlaneseq
        %v482 = vshrl.u32 %v481, 7
        %v483 = vsub.s32 2, %v482
        %v484 = vrot.slane %v471, %v483
        %v485 = vlaneseq
        %v486 = vshrl.u32 %v485, 7
        %v487 = vsub.s32 3, %v486
        %v488 = vrot.slane %v471, %v487
        %v525 = vunpack.c.l.b16 %v431
        %v526 = vunpack.c.l.b16 %v432
        %v527 = vunpack.c.l.b16 %v433
        %v528 = vunpack.c.l.b16 %v434
        %v529 = vunpack.c.l.b16 %v435
        %v530 = vunpack.c.l.b16 %v436
        %v531 = vunpack.c.l.b16 %v437
        %v532 = vunpack.c.l.b16 %v438
        %v533 = vunpack.c.l.b16 %v439
        %v534 = vunpack.c.l.b16 %v440
        %v535 = vunpack.c.l.b16 %v441
        %v536 = vunpack.c.l.b16 %v442
        %v537 = vunpack.c.l.b16 %v443
        %v538 = vunpack.c.l.b16 %v444
        %v539 = vunpack.c.l.b16 %v445
        %v540 = vunpack.c.l.b16 %v446
        %v541 = vunpack.c.l.b16 %v447
        %v542 = vunpack.c.l.b16 %v448
        %v543 = vunpack.c.l.b16 %v449
        %v544 = vunpack.c.l.b16 %v450
        %v545 = vunpack.c.l.b16 %v451
        %v546 = vunpack.c.l.b16 %v452
        %v547 = vunpack.c.l.b16 %v453
        %v548 = vunpack.c.l.b16 %v454
        %v549 = vunpack.c.l.b16 %v455
        %v550 = vunpack.c.l.b16 %v456
        %v551 = vunpack.c.l.b16 %v457
        %v552 = vunpack.c.l.b16 %v458
        %v553 = vunpack.c.l.b16 %v459
        %v554 = vunpack.c.l.b16 %v460
        %v555 = vunpack.c.l.b16 %v461
        %v556 = vunpack.c.l.b16 %v462
        %v557 = vpack.c.b16 %v526, %v525
        %v558 = vpack.c.b16 %v528, %v527
        %v559 = vpack.c.b16 %v530, %v529
        %v560 = vpack.c.b16 %v532, %v531
        %v561 = vpack.c.b16 %v534, %v533
        %v562 = vpack.c.b16 %v536, %v535
        %v563 = vpack.c.b16 %v538, %v537
        %v564 = vpack.c.b16 %v540, %v539
        %v565 = vpack.c.b16 %v542, %v541
        %v566 = vpack.c.b16 %v544, %v543
        %v567 = vpack.c.b16 %v546, %v545
        %v568 = vpack.c.b16 %v548, %v547
        %v569 = vpack.c.b16 %v550, %v549
        %v570 = vpack.c.b16 %v552, %v551
        %v571 = vpack.c.b16 %v554, %v553
        %v572 = vpack.c.b16 %v556, %v555
        %v581 = vunpack.c.l.b16 %v463
        %v582 = vunpack.c.h.b16 %v463
        %v583 = vunpack.c.l.b16 %v464
        %v584 = vunpack.c.h.b16 %v464
        %v585 = vunpack.c.l.b16 %v465
        %v586 = vunpack.c.h.b16 %v465
        %v587 = vunpack.c.l.b16 %v466
        %v588 = vunpack.c.h.b16 %v466
        %v589 = vunpack.c.l.b16 %v467
        %v590 = vunpack.c.h.b16 %v467
        %v591 = vunpack.c.l.b16 %v468
        %v592 = vunpack.c.h.b16 %v468
        %v593 = vunpack.c.l.b16 %v469
        %v594 = vunpack.c.h.b16 %v469
        %v595 = vunpack.c.l.b16 %v470
        %v596 = vunpack.c.h.b16 %v470
        %v597 = vpack.c.b16 %v585, %v581
        %v598 = vpack.c.b16 %v586, %v582
        %v599 = vpack.c.b16 %v587, %v583
        %v600 = vpack.c.b16 %v588, %v584
        %v601 = vpack.c.b16 %v593, %v589
        %v602 = vpack.c.b16 %v594, %v590
        %v603 = vpack.c.b16 %v595, %v591
        %v604 = vpack.c.b16 %v596, %v592
        %vm613 = vcmask 261120
        %v615 = vsel %vm613, %v557, 0
        %v618 = vsel %vm613, %v558, 0
        %v621 = vsel %vm613, %v559, 0
        %v624 = vsel %vm613, %v560, 0
        %v627 = vsel %vm613, %v561, 0
        %v630 = vsel %vm613, %v562, 0
        %v633 = vsel %vm613, %v563, 0
        %v636 = vsel %vm613, %v564, 0
        %v639 = vsel %vm613, %v565, 0
        %v642 = vsel %vm613, %v566, 0
        %v645 = vsel %vm613, %v567, 0
        %v648 = vsel %vm613, %v568, 0
        %v651 = vsel %vm613, %v569, 0
        %v654 = vsel %vm613, %v570, 0
        %v657 = vsel %vm613, %v571, 0
        %v660 = vsel %vm613, %v572, 0
        %662 = vmatprep.subr.bf16.mxu0 %v598
        %663 = vmatpush1.bf16.msra.mxu0 %v597
        %664 = vmatprep.subr.bf16.mxu0 %v602
        %665 = vmatpush1.bf16.msra.mxu0 %v601
        %666 = vmatprep.subr.bf16.mxu0 0
        %667 = vmatpush1.bf16.msra.mxu0 0
        %668 = vmatprep.subr.bf16.mxu0 0
        %669 = vmatpush1.bf16.msra.mxu0 0
        %670 = vmatprep.subr.bf16.mxu0 0
        %671 = vmatpush1.bf16.msra.mxu0 0
        %672 = vmatprep.subr.bf16.mxu0 0
        %673 = vmatpush1.bf16.msra.mxu0 0
        %674 = vmatprep.subr.bf16.mxu0 0
        %675 = vmatpush1.bf16.msra.mxu0 0
        %676 = vmatprep.subr.bf16.mxu0 0
        %677 = vmatpush1.bf16.msra.mxu0 0
        %678 = vmatprep.subr.bf16.mxu0 0
        %679 = vmatpush1.bf16.msra.mxu0 0
        %680 = vmatprep.subr.bf16.mxu0 0
        %681 = vmatpush1.bf16.msra.mxu0 0
        %682 = vmatprep.subr.bf16.mxu0 0
        %683 = vmatpush1.bf16.msra.mxu0 0
        %684 = vmatprep.subr.bf16.mxu0 0
        %685 = vmatpush1.bf16.msra.mxu0 0
        %686 = vmatprep.subr.bf16.mxu0 0
        %687 = vmatpush1.bf16.msra.mxu0 0
        %688 = vmatprep.subr.bf16.mxu0 0
        %689 = vmatpush1.bf16.msra.mxu0 0
        %690 = vmatprep.subr.bf16.mxu0 0
        %691 = vmatpush1.bf16.msra.mxu0 0
        %692 = vmatprep.subr.bf16.mxu0 0
        %693 = vmatpush1.bf16.msra.mxu0 0
        %694 = vmatprep.mubr.bf16.mxu0 0
        %695 = vmatmul.mubr.bf16.gmra.mrb[0].mxu0 %v615
        %v696 = vpop.f32.mrb[0].mxu0
        %v697 = vadd.f32 %v476, %v696
        %v698 = vpop.f32.mrb[0].mxu0
        %v699 = vadd.f32 %v480, %v698
        %v700 = vpop.f32.mrb[0].mxu0
        %v701 = vadd.f32 %v476, %v700
        %v702 = vpop.f32.mrb[0].mxu0
        %v703 = vadd.f32 %v480, %v702
        %704 = vmatprep.mubr.bf16.mxu0 0
        %705 = vmatmul.mubr.bf16.gmra.mrb[0].mxu0 %v618
        %v706 = vpop.f32.mrb[0].mxu0
        %v707 = vadd.f32 %v476, %v706
        %v708 = vpop.f32.mrb[0].mxu0
        %v709 = vadd.f32 %v480, %v708
        %v710 = vpop.f32.mrb[0].mxu0
        %v711 = vadd.f32 %v476, %v710
        %v712 = vpop.f32.mrb[0].mxu0
        %v713 = vadd.f32 %v480, %v712
        %714 = vmatprep.mubr.bf16.mxu0 0
        %715 = vmatmul.mubr.bf16.gmra.mrb[0].mxu0 %v621
        %v716 = vpop.f32.mrb[0].mxu0
        %v717 = vadd.f32 %v476, %v716
        %v718 = vpop.f32.mrb[0].mxu0
        %v719 = vadd.f32 %v480, %v718
        %v720 = vpop.f32.mrb[0].mxu0
        %v721 = vadd.f32 %v476, %v720
        %v722 = vpop.f32.mrb[0].mxu0
        %v723 = vadd.f32 %v480, %v722
        %724 = vmatprep.mubr.bf16.mxu0 0
        %725 = vmatmul.mubr.bf16.gmra.mrb[0].mxu0 %v624
        %v726 = vpop.f32.mrb[0].mxu0
        %v727 = vadd.f32 %v476, %v726
        %v728 = vpop.f32.mrb[0].mxu0
        %v729 = vadd.f32 %v480, %v728
        %v730 = vpop.f32.mrb[0].mxu0
        %v731 = vadd.f32 %v476, %v730
        %v732 = vpop.f32.mrb[0].mxu0
        %v733 = vadd.f32 %v480, %v732
        %734 = vmatprep.mubr.bf16.mxu0 0
        %735 = vmatmul.mubr.bf16.gmra.mrb[0].mxu0 %v627
        %v736 = vpop.f32.mrb[0].mxu0
        %v737 = vadd.f32 %v476, %v736
        %v738 = vpop.f32.mrb[0].mxu0
        %v739 = vadd.f32 %v480, %v738
        %v740 = vpop.f32.mrb[0].mxu0
        %v741 = vadd.f32 %v476, %v740
        %v742 = vpop.f32.mrb[0].mxu0
        %v743 = vadd.f32 %v480, %v742
        %744 = vmatprep.mubr.bf16.mxu0 0
        %745 = vmatmul.mubr.bf16.gmra.mrb[0].mxu0 %v630
        %v746 = vpop.f32.mrb[0].mxu0
        %v747 = vadd.f32 %v476, %v746
        %v748 = vpop.f32.mrb[0].mxu0
        %v749 = vadd.f32 %v480, %v748
        %v750 = vpop.f32.mrb[0].mxu0
        %v751 = vadd.f32 %v476, %v750
        %v752 = vpop.f32.mrb[0].mxu0
        %v753 = vadd.f32 %v480, %v752
        %754 = vmatprep.mubr.bf16.mxu0 0
        %755 = vmatmul.mubr.bf16.gmra.mrb[0].mxu0 %v633
        %v756 = vpop.f32.mrb[0].mxu0
        %v757 = vadd.f32 %v476, %v756
        %v758 = vpop.f32.mrb[0].mxu0
        %v759 = vadd.f32 %v480, %v758
        %v760 = vpop.f32.mrb[0].mxu0
        %v761 = vadd.f32 %v476, %v760
        %v762 = vpop.f32.mrb[0].mxu0
        %v763 = vadd.f32 %v480, %v762
        %764 = vmatprep.mubr.bf16.mxu0 0
        %765 = vmatmul.mubr.bf16.gmra.mrb[0].mxu0 %v636
        %v766 = vpop.f32.mrb[0].mxu0
        %v767 = vadd.f32 %v476, %v766
        %v768 = vpop.f32.mrb[0].mxu0
        %v769 = vadd.f32 %v480, %v768
        %v770 = vpop.f32.mrb[0].mxu0
        %v771 = vadd.f32 %v476, %v770
        %v772 = vpop.f32.mrb[0].mxu0
        %v773 = vadd.f32 %v480, %v772
        %774 = vmatprep.mubr.bf16.mxu0 0
        %775 = vmatmul.mubr.bf16.gmra.mrb[0].mxu0 %v639
        %v776 = vpop.f32.mrb[0].mxu0
        %v777 = vadd.f32 %v476, %v776
        %v778 = vpop.f32.mrb[0].mxu0
        %v779 = vadd.f32 %v480, %v778
        %v780 = vpop.f32.mrb[0].mxu0
        %v781 = vadd.f32 %v476, %v780
        %v782 = vpop.f32.mrb[0].mxu0
        %v783 = vadd.f32 %v480, %v782
        %784 = vmatprep.mubr.bf16.mxu0 0
        %785 = vmatmul.mubr.bf16.gmra.mrb[0].mxu0 %v642
        %v786 = vpop.f32.mrb[0].mxu0
        %v787 = vadd.f32 %v476, %v786
        %v788 = vpop.f32.mrb[0].mxu0
        %v789 = vadd.f32 %v480, %v788
        %v790 = vpop.f32.mrb[0].mxu0
        %v791 = vadd.f32 %v476, %v790
        %v792 = vpop.f32.mrb[0].mxu0
        %v793 = vadd.f32 %v480, %v792
        %794 = vmatprep.mubr.bf16.mxu0 0
        %795 = vmatmul.mubr.bf16.gmra.mrb[0].mxu0 %v645
        %v796 = vpop.f32.mrb[0].mxu0
        %v797 = vadd.f32 %v476, %v796
        %v798 = vpop.f32.mrb[0].mxu0
        %v799 = vadd.f32 %v480, %v798
        %v800 = vpop.f32.mrb[0].mxu0
        %v801 = vadd.f32 %v476, %v800
        %v802 = vpop.f32.mrb[0].mxu0
        %v803 = vadd.f32 %v480, %v802
        %804 = vmatprep.mubr.bf16.mxu0 0
        %805 = vmatmul.mubr.bf16.gmra.mrb[0].mxu0 %v648
        %v806 = vpop.f32.mrb[0].mxu0
        %v807 = vadd.f32 %v476, %v806
        %v808 = vpop.f32.mrb[0].mxu0
        %v809 = vadd.f32 %v480, %v808
        %v810 = vpop.f32.mrb[0].mxu0
        %v811 = vadd.f32 %v476, %v810
        %v812 = vpop.f32.mrb[0].mxu0
        %v813 = vadd.f32 %v480, %v812
        %814 = vmatprep.mubr.bf16.mxu0 0
        %815 = vmatmul.mubr.bf16.gmra.mrb[0].mxu0 %v651
        %v816 = vpop.f32.mrb[0].mxu0
        %v817 = vadd.f32 %v476, %v816
        %v818 = vpop.f32.mrb[0].mxu0
        %v819 = vadd.f32 %v480, %v818
        %v820 = vpop.f32.mrb[0].mxu0
        %v821 = vadd.f32 %v476, %v820
        %v822 = vpop.f32.mrb[0].mxu0
        %v823 = vadd.f32 %v480, %v822
        %824 = vmatprep.mubr.bf16.mxu0 0
        %825 = vmatmul.mubr.bf16.gmra.mrb[0].mxu0 %v654
        %v826 = vpop.f32.mrb[0].mxu0
        %v827 = vadd.f32 %v476, %v826
        %v828 = vpop.f32.mrb[0].mxu0
        %v829 = vadd.f32 %v480, %v828
        %v830 = vpop.f32.mrb[0].mxu0
        %v831 = vadd.f32 %v476, %v830
        %v832 = vpop.f32.mrb[0].mxu0
        %v833 = vadd.f32 %v480, %v832
        %834 = vmatprep.mubr.bf16.mxu0 0
        %835 = vmatmul.mubr.bf16.gmra.mrb[0].mxu0 %v657
        %v836 = vpop.f32.mrb[0].mxu0
        %v837 = vadd.f32 %v476, %v836
        %v838 = vpop.f32.mrb[0].mxu0
        %v839 = vadd.f32 %v480, %v838
        %v840 = vpop.f32.mrb[0].mxu0
        %v841 = vadd.f32 %v476, %v840
        %v842 = vpop.f32.mrb[0].mxu0
        %v843 = vadd.f32 %v480, %v842
        %844 = vmatprep.mubr.bf16.mxu0 0
        %845 = vmatmul.mubr.bf16.gmra.mrb[0].mxu0 %v660
        %v846 = vpop.f32.mrb[0].mxu0
        %v847 = vadd.f32 %v476, %v846
        %v848 = vpop.f32.mrb[0].mxu0
        %v849 = vadd.f32 %v480, %v848
        %v850 = vpop.f32.mrb[0].mxu0
        %v851 = vadd.f32 %v476, %v850
        %v852 = vpop.f32.mrb[0].mxu0
        %v853 = vadd.f32 %v480, %v852
        %854 = vdwg.mxu0
        %855 = vmatprep.subr.bf16.mxu0 %v600
        %856 = vmatpush1.bf16.msra.mxu0 %v599
        %857 = vmatprep.subr.bf16.mxu0 %v604
        %858 = vmatpush1.bf16.msra.mxu0 %v603
        %859 = vmatprep.subr.bf16.mxu0 0
        %860 = vmatpush1.bf16.msra.mxu0 0
        %861 = vmatprep.subr.bf16.mxu0 0
        %862 = vmatpush1.bf16.msra.mxu0 0
        %863 = vmatprep.subr.bf16.mxu0 0
        %864 = vmatpush1.bf16.msra.mxu0 0
        %865 = vmatprep.subr.bf16.mxu0 0
        %866 = vmatpush1.bf16.msra.mxu0 0
        %867 = vmatprep.subr.bf16.mxu0 0
        %868 = vmatpush1.bf16.msra.mxu0 0
        %869 = vmatprep.subr.bf16.mxu0 0
        %870 = vmatpush1.bf16.msra.mxu0 0
        %871 = vmatprep.subr.bf16.mxu0 0
        %872 = vmatpush1.bf16.msra.mxu0 0
        %873 = vmatprep.subr.bf16.mxu0 0
        %874 = vmatpush1.bf16.msra.mxu0 0
        %875 = vmatprep.subr.bf16.mxu0 0
        %876 = vmatpush1.bf16.msra.mxu0 0
        %877 = vmatprep.subr.bf16.mxu0 0
        %878 = vmatpush1.bf16.msra.mxu0 0
        %879 = vmatprep.subr.bf16.mxu0 0
        %880 = vmatpush1.bf16.msra.mxu0 0
        %881 = vmatprep.subr.bf16.mxu0 0
        %882 = vmatpush1.bf16.msra.mxu0 0
        %883 = vmatprep.subr.bf16.mxu0 0
        %884 = vmatpush1.bf16.msra.mxu0 0
        %885 = vmatprep.subr.bf16.mxu0 0
        %886 = vmatpush1.bf16.msra.mxu0 0
        %887 = vmatprep.mubr.bf16.mxu0 0
        %888 = vmatmul.mubr.bf16.gmra.mrb[0].mxu0 %v615
        %v889 = vpop.f32.mrb[0].mxu0
        %v890 = vadd.f32 %v484, %v889
        %v891 = vpop.f32.mrb[0].mxu0
        %v892 = vadd.f32 %v488, %v891
        %v893 = vpop.f32.mrb[0].mxu0
        %v894 = vadd.f32 %v484, %v893
        %v895 = vpop.f32.mrb[0].mxu0
        %v896 = vadd.f32 %v488, %v895
        %897 = vmatprep.mubr.bf16.mxu0 0
        %898 = vmatmul.mubr.bf16.gmra.mrb[0].mxu0 %v618
        %v899 = vpop.f32.mrb[0].mxu0
        %v900 = vadd.f32 %v484, %v899
        %v901 = vpop.f32.mrb[0].mxu0
        %v902 = vadd.f32 %v488, %v901
        %v903 = vpop.f32.mrb[0].mxu0
        %v904 = vadd.f32 %v484, %v903
        %v905 = vpop.f32.mrb[0].mxu0
        %v906 = vadd.f32 %v488, %v905
        %907 = vmatprep.mubr.bf16.mxu0 0
        %908 = vmatmul.mubr.bf16.gmra.mrb[0].mxu0 %v621
        %v909 = vpop.f32.mrb[0].mxu0
        %v910 = vadd.f32 %v484, %v909
        %v911 = vpop.f32.mrb[0].mxu0
        %v912 = vadd.f32 %v488, %v911
        %v913 = vpop.f32.mrb[0].mxu0
        %v914 = vadd.f32 %v484, %v913
        %v915 = vpop.f32.mrb[0].mxu0
        %v916 = vadd.f32 %v488, %v915
        %917 = vmatprep.mubr.bf16.mxu0 0
        %918 = vmatmul.mubr.bf16.gmra.mrb[0].mxu0 %v624
        %v919 = vpop.f32.mrb[0].mxu0
        %v920 = vadd.f32 %v484, %v919
        %v921 = vpop.f32.mrb[0].mxu0
        %v922 = vadd.f32 %v488, %v921
        %v923 = vpop.f32.mrb[0].mxu0
        %v924 = vadd.f32 %v484, %v923
        %v925 = vpop.f32.mrb[0].mxu0
        %v926 = vadd.f32 %v488, %v925
        %927 = vmatprep.mubr.bf16.mxu0 0
        %928 = vmatmul.mubr.bf16.gmra.mrb[0].mxu0 %v627
        %v929 = vpop.f32.mrb[0].mxu0
        %v930 = vadd.f32 %v484, %v929
        %v931 = vpop.f32.mrb[0].mxu0
        %v932 = vadd.f32 %v488, %v931
        %v933 = vpop.f32.mrb[0].mxu0
        %v934 = vadd.f32 %v484, %v933
        %v935 = vpop.f32.mrb[0].mxu0
        %v936 = vadd.f32 %v488, %v935
        %937 = vmatprep.mubr.bf16.mxu0 0
        %938 = vmatmul.mubr.bf16.gmra.mrb[0].mxu0 %v630
        %v939 = vpop.f32.mrb[0].mxu0
        %v940 = vadd.f32 %v484, %v939
        %v941 = vpop.f32.mrb[0].mxu0
        %v942 = vadd.f32 %v488, %v941
        %v943 = vpop.f32.mrb[0].mxu0
        %v944 = vadd.f32 %v484, %v943
        %v945 = vpop.f32.mrb[0].mxu0
        %v946 = vadd.f32 %v488, %v945
        %947 = vmatprep.mubr.bf16.mxu0 0
        %948 = vmatmul.mubr.bf16.gmra.mrb[0].mxu0 %v633
        %v949 = vpop.f32.mrb[0].mxu0
        %v950 = vadd.f32 %v484, %v949
        %v951 = vpop.f32.mrb[0].mxu0
        %v952 = vadd.f32 %v488, %v951
        %v953 = vpop.f32.mrb[0].mxu0
        %v954 = vadd.f32 %v484, %v953
        %v955 = vpop.f32.mrb[0].mxu0
        %v956 = vadd.f32 %v488, %v955
        %957 = vmatprep.mubr.bf16.mxu0 0
        %958 = vmatmul.mubr.bf16.gmra.mrb[0].mxu0 %v636
        %v959 = vpop.f32.mrb[0].mxu0
        %v960 = vadd.f32 %v484, %v959
        %v961 = vpop.f32.mrb[0].mxu0
        %v962 = vadd.f32 %v488, %v961
        %v963 = vpop.f32.mrb[0].mxu0
        %v964 = vadd.f32 %v484, %v963
        %v965 = vpop.f32.mrb[0].mxu0
        %v966 = vadd.f32 %v488, %v965
        %967 = vmatprep.mubr.bf16.mxu0 0
        %968 = vmatmul.mubr.bf16.gmra.mrb[0].mxu0 %v639
        %v969 = vpop.f32.mrb[0].mxu0
        %v970 = vadd.f32 %v484, %v969
        %v971 = vpop.f32.mrb[0].mxu0
        %v972 = vadd.f32 %v488, %v971
        %v973 = vpop.f32.mrb[0].mxu0
        %v974 = vadd.f32 %v484, %v973
        %v975 = vpop.f32.mrb[0].mxu0
        %v976 = vadd.f32 %v488, %v975
        %977 = vmatprep.mubr.bf16.mxu0 0
        %978 = vmatmul.mubr.bf16.gmra.mrb[0].mxu0 %v642
        %v979 = vpop.f32.mrb[0].mxu0
        %v980 = vadd.f32 %v484, %v979
        %v981 = vpop.f32.mrb[0].mxu0
        %v982 = vadd.f32 %v488, %v981
        %v983 = vpop.f32.mrb[0].mxu0
        %v984 = vadd.f32 %v484, %v983
        %v985 = vpop.f32.mrb[0].mxu0
        %v986 = vadd.f32 %v488, %v985
        %987 = vmatprep.mubr.bf16.mxu0 0
        %988 = vmatmul.mubr.bf16.gmra.mrb[0].mxu0 %v645
        %v989 = vpop.f32.mrb[0].mxu0
        %v990 = vadd.f32 %v484, %v989
        %v991 = vpop.f32.mrb[0].mxu0
        %v992 = vadd.f32 %v488, %v991
        %v993 = vpop.f32.mrb[0].mxu0
        %v994 = vadd.f32 %v484, %v993
        %v995 = vpop.f32.mrb[0].mxu0
        %v996 = vadd.f32 %v488, %v995
        %997 = vmatprep.mubr.bf16.mxu0 0
        %998 = vmatmul.mubr.bf16.gmra.mrb[0].mxu0 %v648
        %v999 = vpop.f32.mrb[0].mxu0
        %v1000 = vadd.f32 %v484, %v999
        %v1001 = vpop.f32.mrb[0].mxu0
        %v1002 = vadd.f32 %v488, %v1001
        %v1003 = vpop.f32.mrb[0].mxu0
        %v1004 = vadd.f32 %v484, %v1003
        %v1005 = vpop.f32.mrb[0].mxu0
        %v1006 = vadd.f32 %v488, %v1005
        %1007 = vmatprep.mubr.bf16.mxu0 0
        %1008 = vmatmul.mubr.bf16.gmra.mrb[0].mxu0 %v651
        %v1009 = vpop.f32.mrb[0].mxu0
        %v1010 = vadd.f32 %v484, %v1009
        %v1011 = vpop.f32.mrb[0].mxu0
        %v1012 = vadd.f32 %v488, %v1011
        %v1013 = vpop.f32.mrb[0].mxu0
        %v1014 = vadd.f32 %v484, %v1013
        %v1015 = vpop.f32.mrb[0].mxu0
        %v1016 = vadd.f32 %v488, %v1015
        %1017 = vmatprep.mubr.bf16.mxu0 0
        %1018 = vmatmul.mubr.bf16.gmra.mrb[0].mxu0 %v654
        %v1019 = vpop.f32.mrb[0].mxu0
        %v1020 = vadd.f32 %v484, %v1019
        %v1021 = vpop.f32.mrb[0].mxu0
        %v1022 = vadd.f32 %v488, %v1021
        %v1023 = vpop.f32.mrb[0].mxu0
        %v1024 = vadd.f32 %v484, %v1023
        %v1025 = vpop.f32.mrb[0].mxu0
        %v1026 = vadd.f32 %v488, %v1025
        %1027 = vmatprep.mubr.bf16.mxu0 0
        %1028 = vmatmul.mubr.bf16.gmra.mrb[0].mxu0 %v657
        %v1029 = vpop.f32.mrb[0].mxu0
        %v1030 = vadd.f32 %v484, %v1029
        %v1031 = vpop.f32.mrb[0].mxu0
        %v1032 = vadd.f32 %v488, %v1031
        %v1033 = vpop.f32.mrb[0].mxu0
        %v1034 = vadd.f32 %v484, %v1033
        %v1035 = vpop.f32.mrb[0].mxu0
        %v1036 = vadd.f32 %v488, %v1035
        %1037 = vmatprep.mubr.bf16.mxu0 0
        %1038 = vmatmul.mubr.bf16.gmra.mrb[0].mxu0 %v660
        %v1039 = vpop.f32.mrb[0].mxu0
        %v1040 = vadd.f32 %v484, %v1039
        %v1041 = vpop.f32.mrb[0].mxu0
        %v1042 = vadd.f32 %v488, %v1041
        %v1043 = vpop.f32.mrb[0].mxu0
        %v1044 = vadd.f32 %v484, %v1043
        %v1045 = vpop.f32.mrb[0].mxu0
        %v1046 = vadd.f32 %v488, %v1045
        %1047 = vdwg.mxu0
        %1048 = vst [vmem:[#allocation2] sm:$0xff] %v697
        %1049 = vst [vmem:[#allocation2 + $0x8] sm:$0xff] %v699
        %1050 = vst [vmem:[#allocation2 + $0x10] sm:$0xff] %v890
        %1051 = vst [vmem:[#allocation2 + $0x18] sm:$0xff] %v892
        %1052 = vst [vmem:[#allocation2 + $0x20] sm:$0xff] %v701
        %1053 = vst [vmem:[#allocation2 + $0x28] sm:$0xff] %v703
        %1054 = vst [vmem:[#allocation2 + $0x30] sm:$0xff] %v894
        %1055 = vst [vmem:[#allocation2 + $0x38] sm:$0xff] %v896
        %1056 = vst [vmem:[#allocation2 + $0x40] sm:$0xff] %v707
        %1057 = vst [vmem:[#allocation2 + $0x48] sm:$0xff] %v709
        %1058 = vst [vmem:[#allocation2 + $0x50] sm:$0xff] %v900
        %1059 = vst [vmem:[#allocation2 + $0x58] sm:$0xff] %v902
        %1060 = vst [vmem:[#allocation2 + $0x60] sm:$0xff] %v711
        %1061 = vst [vmem:[#allocation2 + $0x68] sm:$0xff] %v713
        %1062 = vst [vmem:[#allocation2 + $0x70] sm:$0xff] %v904
        %1063 = vst [vmem:[#allocation2 + $0x78] sm:$0xff] %v906
        %1064 = vst [vmem:[#allocation2 + $0x80] sm:$0xff] %v717
        %1065 = vst [vmem:[#allocation2 + $0x88] sm:$0xff] %v719
        %1066 = vst [vmem:[#allocation2 + $0x90] sm:$0xff] %v910
        %1067 = vst [vmem:[#allocation2 + $0x98] sm:$0xff] %v912
        %1068 = vst [vmem:[#allocation2 + $0xa0] sm:$0xff] %v721
        %1069 = vst [vmem:[#allocation2 + $0xa8] sm:$0xff] %v723
        %1070 = vst [vmem:[#allocation2 + $0xb0] sm:$0xff] %v914
        %1071 = vst [vmem:[#allocation2 + $0xb8] sm:$0xff] %v916
        %1072 = vst [vmem:[#allocation2 + $0xc0] sm:$0xff] %v727
        %1073 = vst [vmem:[#allocation2 + $0xc8] sm:$0xff] %v729
        %1074 = vst [vmem:[#allocation2 + $0xd0] sm:$0xff] %v920
        %1075 = vst [vmem:[#allocation2 + $0xd8] sm:$0xff] %v922
        %1076 = vst [vmem:[#allocation2 + $0xe0] sm:$0xff] %v731
        %1077 = vst [vmem:[#allocation2 + $0xe8] sm:$0xff] %v733
        %1078 = vst [vmem:[#allocation2 + $0xf0] sm:$0xff] %v924
        %1079 = vst [vmem:[#allocation2 + $0xf8] sm:$0xff] %v926
        %1080 = vst [vmem:[#allocation2 + $0x100] sm:$0xff] %v737
        %1081 = vst [vmem:[#allocation2 + $0x108] sm:$0xff] %v739
        %1082 = vst [vmem:[#allocation2 + $0x110] sm:$0xff] %v930
        %1083 = vst [vmem:[#allocation2 + $0x118] sm:$0xff] %v932
        %1084 = vst [vmem:[#allocation2 + $0x120] sm:$0xff] %v741
        %1085 = vst [vmem:[#allocation2 + $0x128] sm:$0xff] %v743
        %1086 = vst [vmem:[#allocation2 + $0x130] sm:$0xff] %v934
        %1087 = vst [vmem:[#allocation2 + $0x138] sm:$0xff] %v936
        %1088 = vst [vmem:[#allocation2 + $0x140] sm:$0xff] %v747
        %1089 = vst [vmem:[#allocation2 + $0x148] sm:$0xff] %v749
        %1090 = vst [vmem:[#allocation2 + $0x150] sm:$0xff] %v940
        %1091 = vst [vmem:[#allocation2 + $0x158] sm:$0xff] %v942
        %1092 = vst [vmem:[#allocation2 + $0x160] sm:$0xff] %v751
        %1093 = vst [vmem:[#allocation2 + $0x168] sm:$0xff] %v753
        %1094 = vst [vmem:[#allocation2 + $0x170] sm:$0xff] %v944
        %1095 = vst [vmem:[#allocation2 + $0x178] sm:$0xff] %v946
        %1096 = vst [vmem:[#allocation2 + $0x180] sm:$0xff] %v757
        %1097 = vst [vmem:[#allocation2 + $0x188] sm:$0xff] %v759
        %1098 = vst [vmem:[#allocation2 + $0x190] sm:$0xff] %v950
        %1099 = vst [vmem:[#allocation2 + $0x198] sm:$0xff] %v952
        %1100 = vst [vmem:[#allocation2 + $0x1a0] sm:$0xff] %v761
        %1101 = vst [vmem:[#allocation2 + $0x1a8] sm:$0xff] %v763
        %1102 = vst [vmem:[#allocation2 + $0x1b0] sm:$0xff] %v954
        %1103 = vst [vmem:[#allocation2 + $0x1b8] sm:$0xff] %v956
        %1104 = vst [vmem:[#allocation2 + $0x1c0] sm:$0xff] %v767
        %1105 = vst [vmem:[#allocation2 + $0x1c8] sm:$0xff] %v769
        %1106 = vst [vmem:[#allocation2 + $0x1d0] sm:$0xff] %v960
        %1107 = vst [vmem:[#allocation2 + $0x1d8] sm:$0xff] %v962
        %1108 = vst [vmem:[#allocation2 + $0x1e0] sm:$0xff] %v771
        %1109 = vst [vmem:[#allocation2 + $0x1e8] sm:$0xff] %v773
        %1110 = vst [vmem:[#allocation2 + $0x1f0] sm:$0xff] %v964
        %1111 = vst [vmem:[#allocation2 + $0x1f8] sm:$0xff] %v966
        %1112 = vst [vmem:[#allocation2 + $0x200] sm:$0xff] %v777
        %1113 = vst [vmem:[#allocation2 + $0x208] sm:$0xff] %v779
        %1114 = vst [vmem:[#allocation2 + $0x210] sm:$0xff] %v970
        %1115 = vst [vmem:[#allocation2 + $0x218] sm:$0xff] %v972
        %1116 = vst [vmem:[#allocation2 + $0x220] sm:$0xff] %v781
        %1117 = vst [vmem:[#allocation2 + $0x228] sm:$0xff] %v783
        %1118 = vst [vmem:[#allocation2 + $0x230] sm:$0xff] %v974
        %1119 = vst [vmem:[#allocation2 + $0x238] sm:$0xff] %v976
        %1120 = vst [vmem:[#allocation2 + $0x240] sm:$0xff] %v787
        %1121 = vst [vmem:[#allocation2 + $0x248] sm:$0xff] %v789
        %1122 = vst [vmem:[#allocation2 + $0x250] sm:$0xff] %v980
        %1123 = vst [vmem:[#allocation2 + $0x258] sm:$0xff] %v982
        %1124 = vst [vmem:[#allocation2 + $0x260] sm:$0xff] %v791
        %1125 = vst [vmem:[#allocation2 + $0x268] sm:$0xff] %v793
        %1126 = vst [vmem:[#allocation2 + $0x270] sm:$0xff] %v984
        %1127 = vst [vmem:[#allocation2 + $0x278] sm:$0xff] %v986
        %1128 = vst [vmem:[#allocation2 + $0x280] sm:$0xff] %v797
        %1129 = vst [vmem:[#allocation2 + $0x288] sm:$0xff] %v799
        %1130 = vst [vmem:[#allocation2 + $0x290] sm:$0xff] %v990
        %1131 = vst [vmem:[#allocation2 + $0x298] sm:$0xff] %v992
        %1132 = vst [vmem:[#allocation2 + $0x2a0] sm:$0xff] %v801
        %1133 = vst [vmem:[#allocation2 + $0x2a8] sm:$0xff] %v803
        %1134 = vst [vmem:[#allocation2 + $0x2b0] sm:$0xff] %v994
        %1135 = vst [vmem:[#allocation2 + $0x2b8] sm:$0xff] %v996
        %1136 = vst [vmem:[#allocation2 + $0x2c0] sm:$0xff] %v807
        %1137 = vst [vmem:[#allocation2 + $0x2c8] sm:$0xff] %v809
        %1138 = vst [vmem:[#allocation2 + $0x2d0] sm:$0xff] %v1000
        %1139 = vst [vmem:[#allocation2 + $0x2d8] sm:$0xff] %v1002
        %1140 = vst [vmem:[#allocation2 + $0x2e0] sm:$0xff] %v811
        %1141 = vst [vmem:[#allocation2 + $0x2e8] sm:$0xff] %v813
        %1142 = vst [vmem:[#allocation2 + $0x2f0] sm:$0xff] %v1004
        %1143 = vst [vmem:[#allocation2 + $0x2f8] sm:$0xff] %v1006
        %1144 = vst [vmem:[#allocation2 + $0x300] sm:$0xff] %v817
        %1145 = vst [vmem:[#allocation2 + $0x308] sm:$0xff] %v819
        %1146 = vst [vmem:[#allocation2 + $0x310] sm:$0xff] %v1010
        %1147 = vst [vmem:[#allocation2 + $0x318] sm:$0xff] %v1012
        %1148 = vst [vmem:[#allocation2 + $0x320] sm:$0xff] %v821
        %1149 = vst [vmem:[#allocation2 + $0x328] sm:$0xff] %v823
        %1150 = vst [vmem:[#allocation2 + $0x330] sm:$0xff] %v1014
        %1151 = vst [vmem:[#allocation2 + $0x338] sm:$0xff] %v1016
        %1152 = vst [vmem:[#allocation2 + $0x340] sm:$0xff] %v827
        %1153 = vst [vmem:[#allocation2 + $0x348] sm:$0xff] %v829
        %1154 = vst [vmem:[#allocation2 + $0x350] sm:$0xff] %v1020
        %1155 = vst [vmem:[#allocation2 + $0x358] sm:$0xff] %v1022
        %1156 = vst [vmem:[#allocation2 + $0x360] sm:$0xff] %v831
        %1157 = vst [vmem:[#allocation2 + $0x368] sm:$0xff] %v833
        %1158 = vst [vmem:[#allocation2 + $0x370] sm:$0xff] %v1024
        %1159 = vst [vmem:[#allocation2 + $0x378] sm:$0xff] %v1026
        %1160 = vst [vmem:[#allocation2 + $0x380] sm:$0xff] %v837
        %1161 = vst [vmem:[#allocation2 + $0x388] sm:$0xff] %v839
        %1162 = vst [vmem:[#allocation2 + $0x390] sm:$0xff] %v1030
        %1163 = vst [vmem:[#allocation2 + $0x398] sm:$0xff] %v1032
        %1164 = vst [vmem:[#allocation2 + $0x3a0] sm:$0xff] %v841
        %1165 = vst [vmem:[#allocation2 + $0x3a8] sm:$0xff] %v843
        %1166 = vst [vmem:[#allocation2 + $0x3b0] sm:$0xff] %v1034
        %1167 = vst [vmem:[#allocation2 + $0x3b8] sm:$0xff] %v1036
        %1168 = vst [vmem:[#allocation2 + $0x3c0] sm:$0xff] %v847
        %1169 = vst [vmem:[#allocation2 + $0x3c8] sm:$0xff] %v849
        %1170 = vst [vmem:[#allocation2 + $0x3d0] sm:$0xff] %v1040
        %1171 = vst [vmem:[#allocation2 + $0x3d8] sm:$0xff] %v1042
        %1172 = vst [vmem:[#allocation2 + $0x3e0] sm:$0xff] %v851
        %1173 = vst [vmem:[#allocation2 + $0x3e8] sm:$0xff] %v853
        %1174 = vst [vmem:[#allocation2 + $0x3f0] sm:$0xff] %v1044
        %1175 = vst [vmem:[#allocation2 + $0x3f8] sm:$0xff] %v1046
        %v1176 = vld [vmem:[#allocation2] sm:$0xff]
        %v1177 = vld [vmem:[#allocation2 + $0x20] sm:$0xff]
        %v1178 = vld [vmem:[#allocation2 + $0x40] sm:$0xff]
        %v1179 = vld [vmem:[#allocation2 + $0x60] sm:$0xff]
        %v1180 = vld [vmem:[#allocation2 + $0x80] sm:$0xff]
        %v1181 = vld [vmem:[#allocation2 + $0xa0] sm:$0xff]
        %v1182 = vld [vmem:[#allocation2 + $0xc0] sm:$0xff]
        %v1183 = vld [vmem:[#allocation2 + $0xe0] sm:$0xff]
        %v1184 = vld [vmem:[#allocation2 + $0x100] sm:$0xff]
        %v1185 = vld [vmem:[#allocation2 + $0x120] sm:$0xff]
        %v1186 = vld [vmem:[#allocation2 + $0x140] sm:$0xff]
        %v1187 = vld [vmem:[#allocation2 + $0x160] sm:$0xff]
        %v1188 = vld [vmem:[#allocation2 + $0x180] sm:$0xff]
        %v1189 = vld [vmem:[#allocation2 + $0x1a0] sm:$0xff]
        %v1190 = vld [vmem:[#allocation2 + $0x1c0] sm:$0xff]
        %v1191 = vld [vmem:[#allocation2 + $0x1e0] sm:$0xff]
        %v1192 = vld [vmem:[#allocation2 + $0x200] sm:$0xff]
        %v1193 = vld [vmem:[#allocation2 + $0x220] sm:$0xff]
        %v1194 = vld [vmem:[#allocation2 + $0x240] sm:$0xff]
        %v1195 = vld [vmem:[#allocation2 + $0x260] sm:$0xff]
        %v1196 = vld [vmem:[#allocation2 + $0x280] sm:$0xff]
        %v1197 = vld [vmem:[#allocation2 + $0x2a0] sm:$0xff]
        %v1198 = vld [vmem:[#allocation2 + $0x2c0] sm:$0xff]
        %v1199 = vld [vmem:[#allocation2 + $0x2e0] sm:$0xff]
        %v1200 = vld [vmem:[#allocation2 + $0x300] sm:$0xff]
        %v1201 = vld [vmem:[#allocation2 + $0x320] sm:$0xff]
        %v1202 = vld [vmem:[#allocation2 + $0x340] sm:$0xff]
        %v1203 = vld [vmem:[#allocation2 + $0x360] sm:$0xff]
        %v1204 = vld [vmem:[#allocation2 + $0x380] sm:$0xff]
        %v1205 = vld [vmem:[#allocation2 + $0x3a0] sm:$0xff]
        %v1206 = vld [vmem:[#allocation2 + $0x3c0] sm:$0xff]
        %v1207 = vld [vmem:[#allocation2 + $0x3e0] sm:$0xff]
        %v1208 = vld [vmem:[#allocation2 + $0x8] sm:$0xff]
        %v1209 = vld [vmem:[#allocation2 + $0x28] sm:$0xff]
        %v1210 = vld [vmem:[#allocation2 + $0x48] sm:$0xff]
        %v1211 = vld [vmem:[#allocation2 + $0x68] sm:$0xff]
        %v1212 = vld [vmem:[#allocation2 + $0x88] sm:$0xff]
        %v1213 = vld [vmem:[#allocation2 + $0xa8] sm:$0xff]
        %v1214 = vld [vmem:[#allocation2 + $0xc8] sm:$0xff]
        %v1215 = vld [vmem:[#allocation2 + $0xe8] sm:$0xff]
        %v1216 = vld [vmem:[#allocation2 + $0x108] sm:$0xff]
        %v1217 = vld [vmem:[#allocation2 + $0x128] sm:$0xff]
        %v1218 = vld [vmem:[#allocation2 + $0x148] sm:$0xff]
        %v1219 = vld [vmem:[#allocation2 + $0x168] sm:$0xff]
        %v1220 = vld [vmem:[#allocation2 + $0x188] sm:$0xff]
        %v1221 = vld [vmem:[#allocation2 + $0x1a8] sm:$0xff]
        %v1222 = vld [vmem:[#allocation2 + $0x1c8] sm:$0xff]
        %v1223 = vld [vmem:[#allocation2 + $0x1e8] sm:$0xff]
        %v1224 = vld [vmem:[#allocation2 + $0x208] sm:$0xff]
        %v1225 = vld [vmem:[#allocation2 + $0x228] sm:$0xff]
        %v1226 = vld [vmem:[#allocation2 + $0x248] sm:$0xff]
        %v1227 = vld [vmem:[#allocation2 + $0x268] sm:$0xff]
        %v1228 = vld [vmem:[#allocation2 + $0x288] sm:$0xff]
        %v1229 = vld [vmem:[#allocation2 + $0x2a8] sm:$0xff]
        %v1230 = vld [vmem:[#allocation2 + $0x2c8] sm:$0xff]
        %v1231 = vld [vmem:[#allocation2 + $0x2e8] sm:$0xff]
        %v1232 = vld [vmem:[#allocation2 + $0x308] sm:$0xff]
        %v1233 = vld [vmem:[#allocation2 + $0x328] sm:$0xff]
        %v1234 = vld [vmem:[#allocation2 + $0x348] sm:$0xff]
        %v1235 = vld [vmem:[#allocation2 + $0x368] sm:$0xff]
        %v1236 = vld [vmem:[#allocation2 + $0x388] sm:$0xff]
        %v1237 = vld [vmem:[#allocation2 + $0x3a8] sm:$0xff]
        %v1238 = vld [vmem:[#allocation2 + $0x3c8] sm:$0xff]
        %v1239 = vld [vmem:[#allocation2 + $0x3e8] sm:$0xff]
        %v1240 = vpack.c.bf16 %v1177, %v1176
        %v1241 = vpack.c.bf16 %v1179, %v1178
        %v1242 = vpack.c.bf16 %v1181, %v1180
        %v1243 = vpack.c.bf16 %v1183, %v1182
        %v1244 = vpack.c.bf16 %v1185, %v1184
        %v1245 = vpack.c.bf16 %v1187, %v1186
        %v1246 = vpack.c.bf16 %v1189, %v1188
        %v1247 = vpack.c.bf16 %v1191, %v1190
        %v1248 = vpack.c.bf16 %v1193, %v1192
        %v1249 = vpack.c.bf16 %v1195, %v1194
        %v1250 = vpack.c.bf16 %v1197, %v1196
        %v1251 = vpack.c.bf16 %v1199, %v1198
        %v1252 = vpack.c.bf16 %v1201, %v1200
        %v1253 = vpack.c.bf16 %v1203, %v1202
        %v1254 = vpack.c.bf16 %v1205, %v1204
        %v1255 = vpack.c.bf16 %v1207, %v1206
        %v1256 = vld [vmem:[%s3] sm:$0xf]
        %v1257 = vld [vmem:[%s3 + $0x4] sm:$0xf]
        %v1258 = vld [vmem:[%s3 + $0x8] sm:$0xf]
        %v1259 = vld [vmem:[%s3 + $0xc] sm:$0xf]
        %v1260 = vld [vmem:[%s3 + $0x10] sm:$0xf]
        %v1261 = vld [vmem:[%s3 + $0x14] sm:$0xf]
        %v1262 = vld [vmem:[%s3 + $0x18] sm:$0xf]
        %v1263 = vld [vmem:[%s3 + $0x1c] sm:$0xf]
        %v1264 = vld [vmem:[%s3 + $0x20] sm:$0xf]
        %v1265 = vld [vmem:[%s3 + $0x24] sm:$0xf]
        %v1266 = vld [vmem:[%s3 + $0x28] sm:$0xf]
        %v1267 = vld [vmem:[%s3 + $0x2c] sm:$0xf]
        %v1268 = vld [vmem:[%s3 + $0x30] sm:$0xf]
        %v1269 = vld [vmem:[%s3 + $0x34] sm:$0xf]
        %v1270 = vld [vmem:[%s3 + $0x38] sm:$0xf]
        %v1271 = vld [vmem:[%s3 + $0x3c] sm:$0xf]
        %v1288 = vunpack.c.l.b16 %v1256
        %v1289 = vunpack.c.l.b16 %v1257
        %v1290 = vunpack.c.l.b16 %v1258
        %v1291 = vunpack.c.l.b16 %v1259
        %v1292 = vunpack.c.l.b16 %v1260
        %v1293 = vunpack.c.l.b16 %v1261
        %v1294 = vunpack.c.l.b16 %v1262
        %v1295 = vunpack.c.l.b16 %v1263
        %v1296 = vunpack.c.l.b16 %v1264
        %v1297 = vunpack.c.l.b16 %v1265
        %v1298 = vunpack.c.l.b16 %v1266
        %v1299 = vunpack.c.l.b16 %v1267
        %v1300 = vunpack.c.l.b16 %v1268
        %v1301 = vunpack.c.l.b16 %v1269
        %v1302 = vunpack.c.l.b16 %v1270
        %v1303 = vunpack.c.l.b16 %v1271
        %v1304 = vpack.c.b16 %v1289, %v1288
        %v1305 = vpack.c.b16 %v1291, %v1290
        %v1306 = vpack.c.b16 %v1293, %v1292
        %v1307 = vpack.c.b16 %v1295, %v1294
        %v1308 = vpack.c.b16 %v1297, %v1296
        %v1309 = vpack.c.b16 %v1299, %v1298
        %v1310 = vpack.c.b16 %v1301, %v1300
        %v1311 = vpack.c.b16 %v1303, %v1302
        %1320 = vmatprep.subr.bf16.mxu0 0
        %1321 = vmatpush1.bf16.msra.mxu0 %v1304
        %1322 = vmatprep.subr.bf16.mxu0 0
        %1323 = vmatpush1.bf16.msra.mxu0 %v1305
        %1324 = vmatprep.subr.bf16.mxu0 0
        %1325 = vmatpush1.bf16.msra.mxu0 %v1306
        %1326 = vmatprep.subr.bf16.mxu0 0
        %1327 = vmatpush1.bf16.msra.mxu0 %v1307
        %1328 = vmatprep.subr.bf16.mxu0 0
        %1329 = vmatpush1.bf16.msra.mxu0 %v1308
        %1330 = vmatprep.subr.bf16.mxu0 0
        %1331 = vmatpush1.bf16.msra.mxu0 %v1309
        %1332 = vmatprep.subr.bf16.mxu0 0
        %1333 = vmatpush1.bf16.msra.mxu0 %v1310
        %1334 = vmatprep.subr.bf16.mxu0 0
        %1335 = vmatpush1.bf16.msra.mxu0 %v1311
        %1336 = vmatprep.subr.bf16.mxu0 0
        %1337 = vmatpush1.bf16.msra.mxu0 0
        %1338 = vmatprep.subr.bf16.mxu0 0
        %1339 = vmatpush1.bf16.msra.mxu0 0
        %1340 = vmatprep.subr.bf16.mxu0 0
        %1341 = vmatpush1.bf16.msra.mxu0 0
        %1342 = vmatprep.subr.bf16.mxu0 0
        %1343 = vmatpush1.bf16.msra.mxu0 0
        %1344 = vmatprep.subr.bf16.mxu0 0
        %1345 = vmatpush1.bf16.msra.mxu0 0
        %1346 = vmatprep.subr.bf16.mxu0 0
        %1347 = vmatpush1.bf16.msra.mxu0 0
        %1348 = vmatprep.subr.bf16.mxu0 0
        %1349 = vmatpush1.bf16.msra.mxu0 0
        %1350 = vmatprep.subr.bf16.mxu0 0
        %1351 = vmatpush1.bf16.msra.mxu0 0
        %1352 = vmatprep.mubr.bf16.mxu0 0
        %1353 = vmatmul.mubr.bf16.gmra.mrb[0].mxu0 %v1240
        %v1354 = vpop.f32.mrb[0].mxu0
        %v1355 = vadd.f32 0.0, %v1354
        %v1356 = vpop.f32.mrb[0].mxu0
        %v1357 = vpop.f32.mrb[0].mxu0
        %v1358 = vadd.f32 0.0, %v1357
        %v1359 = vpop.f32.mrb[0].mxu0
        %1360 = vmatprep.mubr.bf16.mxu0 0
        %1361 = vmatmul.mubr.bf16.gmra.mrb[0].mxu0 %v1241
        %v1362 = vpop.f32.mrb[0].mxu0
        %v1363 = vadd.f32 0.0, %v1362
        %v1364 = vpop.f32.mrb[0].mxu0
        %v1365 = vpop.f32.mrb[0].mxu0
        %v1366 = vadd.f32 0.0, %v1365
        %v1367 = vpop.f32.mrb[0].mxu0
        %1368 = vmatprep.mubr.bf16.mxu0 0
        %1369 = vmatmul.mubr.bf16.gmra.mrb[0].mxu0 %v1242
        %v1370 = vpop.f32.mrb[0].mxu0
        %v1371 = vadd.f32 0.0, %v1370
        %v1372 = vpop.f32.mrb[0].mxu0
        %v1373 = vpop.f32.mrb[0].mxu0
        %v1374 = vadd.f32 0.0, %v1373
        %v1375 = vpop.f32.mrb[0].mxu0
        %1376 = vmatprep.mubr.bf16.mxu0 0
        %1377 = vmatmul.mubr.bf16.gmra.mrb[0].mxu0 %v1243
        %v1378 = vpop.f32.mrb[0].mxu0
        %v1379 = vadd.f32 0.0, %v1378
        %v1380 = vpop.f32.mrb[0].mxu0
        %v1381 = vpop.f32.mrb[0].mxu0
        %v1382 = vadd.f32 0.0, %v1381
        %v1383 = vpop.f32.mrb[0].mxu0
        %1384 = vmatprep.mubr.bf16.mxu0 0
        %1385 = vmatmul.mubr.bf16.gmra.mrb[0].mxu0 %v1244
        %v1386 = vpop.f32.mrb[0].mxu0
        %v1387 = vadd.f32 0.0, %v1386
        %v1388 = vpop.f32.mrb[0].mxu0
        %v1389 = vpop.f32.mrb[0].mxu0
        %v1390 = vadd.f32 0.0, %v1389
        %v1391 = vpop.f32.mrb[0].mxu0
        %1392 = vmatprep.mubr.bf16.mxu0 0
        %1393 = vmatmul.mubr.bf16.gmra.mrb[0].mxu0 %v1245
        %v1394 = vpop.f32.mrb[0].mxu0
        %v1395 = vadd.f32 0.0, %v1394
        %v1396 = vpop.f32.mrb[0].mxu0
        %v1397 = vpop.f32.mrb[0].mxu0
        %v1398 = vadd.f32 0.0, %v1397
        %v1399 = vpop.f32.mrb[0].mxu0
        %1400 = vmatprep.mubr.bf16.mxu0 0
        %1401 = vmatmul.mubr.bf16.gmra.mrb[0].mxu0 %v1246
        %v1402 = vpop.f32.mrb[0].mxu0
        %v1403 = vadd.f32 0.0, %v1402
        %v1404 = vpop.f32.mrb[0].mxu0
        %v1405 = vpop.f32.mrb[0].mxu0
        %v1406 = vadd.f32 0.0, %v1405
        %v1407 = vpop.f32.mrb[0].mxu0
        %1408 = vmatprep.mubr.bf16.mxu0 0
        %1409 = vmatmul.mubr.bf16.gmra.mrb[0].mxu0 %v1247
        %v1410 = vpop.f32.mrb[0].mxu0
        %v1411 = vadd.f32 0.0, %v1410
        %v1412 = vpop.f32.mrb[0].mxu0
        %v1413 = vpop.f32.mrb[0].mxu0
        %v1414 = vadd.f32 0.0, %v1413
        %v1415 = vpop.f32.mrb[0].mxu0
        %1416 = vmatprep.mubr.bf16.mxu0 0
        %1417 = vmatmul.mubr.bf16.gmra.mrb[0].mxu0 %v1248
        %v1418 = vpop.f32.mrb[0].mxu0
        %v1419 = vadd.f32 0.0, %v1418
        %v1420 = vpop.f32.mrb[0].mxu0
        %v1421 = vpop.f32.mrb[0].mxu0
        %v1422 = vadd.f32 0.0, %v1421
        %v1423 = vpop.f32.mrb[0].mxu0
        %1424 = vmatprep.mubr.bf16.mxu0 0
        %1425 = vmatmul.mubr.bf16.gmra.mrb[0].mxu0 %v1249
        %v1426 = vpop.f32.mrb[0].mxu0
        %v1427 = vadd.f32 0.0, %v1426
        %v1428 = vpop.f32.mrb[0].mxu0
        %v1429 = vpop.f32.mrb[0].mxu0
        %v1430 = vadd.f32 0.0, %v1429
        %v1431 = vpop.f32.mrb[0].mxu0
        %1432 = vmatprep.mubr.bf16.mxu0 0
        %1433 = vmatmul.mubr.bf16.gmra.mrb[0].mxu0 %v1250
        %v1434 = vpop.f32.mrb[0].mxu0
        %v1435 = vadd.f32 0.0, %v1434
        %v1436 = vpop.f32.mrb[0].mxu0
        %v1437 = vpop.f32.mrb[0].mxu0
        %v1438 = vadd.f32 0.0, %v1437
        %v1439 = vpop.f32.mrb[0].mxu0
        %1440 = vmatprep.mubr.bf16.mxu0 0
        %1441 = vmatmul.mubr.bf16.gmra.mrb[0].mxu0 %v1251
        %v1442 = vpop.f32.mrb[0].mxu0
        %v1443 = vadd.f32 0.0, %v1442
        %v1444 = vpop.f32.mrb[0].mxu0
        %v1445 = vpop.f32.mrb[0].mxu0
        %v1446 = vadd.f32 0.0, %v1445
        %v1447 = vpop.f32.mrb[0].mxu0
        %1448 = vmatprep.mubr.bf16.mxu0 0
        %1449 = vmatmul.mubr.bf16.gmra.mrb[0].mxu0 %v1252
        %v1450 = vpop.f32.mrb[0].mxu0
        %v1451 = vadd.f32 0.0, %v1450
        %v1452 = vpop.f32.mrb[0].mxu0
        %v1453 = vpop.f32.mrb[0].mxu0
        %v1454 = vadd.f32 0.0, %v1453
        %v1455 = vpop.f32.mrb[0].mxu0
        %1456 = vmatprep.mubr.bf16.mxu0 0
        %1457 = vmatmul.mubr.bf16.gmra.mrb[0].mxu0 %v1253
        %v1458 = vpop.f32.mrb[0].mxu0
        %v1459 = vadd.f32 0.0, %v1458
        %v1460 = vpop.f32.mrb[0].mxu0
        %v1461 = vpop.f32.mrb[0].mxu0
        %v1462 = vadd.f32 0.0, %v1461
        %v1463 = vpop.f32.mrb[0].mxu0
        %1464 = vmatprep.mubr.bf16.mxu0 0
        %1465 = vmatmul.mubr.bf16.gmra.mrb[0].mxu0 %v1254
        %v1466 = vpop.f32.mrb[0].mxu0
        %v1467 = vadd.f32 0.0, %v1466
        %v1468 = vpop.f32.mrb[0].mxu0
        %v1469 = vpop.f32.mrb[0].mxu0
        %v1470 = vadd.f32 0.0, %v1469
        %v1471 = vpop.f32.mrb[0].mxu0
        %1472 = vmatprep.mubr.bf16.mxu0 0
        %1473 = vmatmul.mubr.bf16.gmra.mrb[0].mxu0 %v1255
        %v1474 = vpop.f32.mrb[0].mxu0
        %v1475 = vadd.f32 0.0, %v1474
        %v1476 = vpop.f32.mrb[0].mxu0
        %v1477 = vpop.f32.mrb[0].mxu0
        %v1478 = vadd.f32 0.0, %v1477
        %v1479 = vpop.f32.mrb[0].mxu0
        %1480 = vdwg.mxu0
        %v1481 = vadd.f32 %v1208, %v1355
        %v1482 = vadd.f32 %v1209, %v1358
        %v1483 = vadd.f32 %v1210, %v1363
        %v1484 = vadd.f32 %v1211, %v1366
        %v1485 = vadd.f32 %v1212, %v1371
        %v1486 = vadd.f32 %v1213, %v1374
        %v1487 = vadd.f32 %v1214, %v1379
        %v1488 = vadd.f32 %v1215, %v1382
        %v1489 = vadd.f32 %v1216, %v1387
        %v1490 = vadd.f32 %v1217, %v1390
        %v1491 = vadd.f32 %v1218, %v1395
        %v1492 = vadd.f32 %v1219, %v1398
        %v1493 = vadd.f32 %v1220, %v1403
        %v1494 = vadd.f32 %v1221, %v1406
        %v1495 = vadd.f32 %v1222, %v1411
        %v1496 = vadd.f32 %v1223, %v1414
        %v1497 = vadd.f32 %v1224, %v1419
        %v1498 = vadd.f32 %v1225, %v1422
        %v1499 = vadd.f32 %v1226, %v1427
        %v1500 = vadd.f32 %v1227, %v1430
        %v1501 = vadd.f32 %v1228, %v1435
        %v1502 = vadd.f32 %v1229, %v1438
        %v1503 = vadd.f32 %v1230, %v1443
        %v1504 = vadd.f32 %v1231, %v1446
        %v1505 = vadd.f32 %v1232, %v1451
        %v1506 = vadd.f32 %v1233, %v1454
        %v1507 = vadd.f32 %v1234, %v1459
        %v1508 = vadd.f32 %v1235, %v1462
        %v1509 = vadd.f32 %v1236, %v1467
        %v1510 = vadd.f32 %v1237, %v1470
        %v1511 = vadd.f32 %v1238, %v1475
        %v1512 = vadd.f32 %v1239, %v1478
        %v1513 = vmul.f32 %v1481, 0.01
        %v1514 = vmul.f32 %v1482, 0.01
        %v1515 = vmul.f32 %v1483, 0.01
        %v1516 = vmul.f32 %v1484, 0.01
        %v1517 = vmul.f32 %v1485, 0.01
        %v1518 = vmul.f32 %v1486, 0.01
        %v1519 = vmul.f32 %v1487, 0.01
        %v1520 = vmul.f32 %v1488, 0.01
        %v1521 = vmul.f32 %v1489, 0.01
        %v1522 = vmul.f32 %v1490, 0.01
        %v1523 = vmul.f32 %v1491, 0.01
        %v1524 = vmul.f32 %v1492, 0.01
        %v1525 = vmul.f32 %v1493, 0.01
        %v1526 = vmul.f32 %v1494, 0.01
        %v1527 = vmul.f32 %v1495, 0.01
        %v1528 = vmul.f32 %v1496, 0.01
        %v1529 = vmul.f32 %v1497, 0.01
        %v1530 = vmul.f32 %v1498, 0.01
        %v1531 = vmul.f32 %v1499, 0.01
        %v1532 = vmul.f32 %v1500, 0.01
        %v1533 = vmul.f32 %v1501, 0.01
        %v1534 = vmul.f32 %v1502, 0.01
        %v1535 = vmul.f32 %v1503, 0.01
        %v1536 = vmul.f32 %v1504, 0.01
        %v1537 = vmul.f32 %v1505, 0.01
        %v1538 = vmul.f32 %v1506, 0.01
        %v1539 = vmul.f32 %v1507, 0.01
        %v1540 = vmul.f32 %v1508, 0.01
        %v1541 = vmul.f32 %v1509, 0.01
        %v1542 = vmul.f32 %v1510, 0.01
        %v1543 = vmul.f32 %v1511, 0.01
        %v1544 = vmul.f32 %v1512, 0.01
        %v1545 = vmax.f32 %v1481, %v1513
        %v1546 = vmax.f32 %v1482, %v1514
        %v1547 = vmax.f32 %v1483, %v1515
        %v1548 = vmax.f32 %v1484, %v1516
        %v1549 = vmax.f32 %v1485, %v1517
        %v1550 = vmax.f32 %v1486, %v1518
        %v1551 = vmax.f32 %v1487, %v1519
        %v1552 = vmax.f32 %v1488, %v1520
        %v1553 = vmax.f32 %v1489, %v1521
        %v1554 = vmax.f32 %v1490, %v1522
        %v1555 = vmax.f32 %v1491, %v1523
        %v1556 = vmax.f32 %v1492, %v1524
        %v1557 = vmax.f32 %v1493, %v1525
        %v1558 = vmax.f32 %v1494, %v1526
        %v1559 = vmax.f32 %v1495, %v1527
        %v1560 = vmax.f32 %v1496, %v1528
        %v1561 = vmax.f32 %v1497, %v1529
        %v1562 = vmax.f32 %v1498, %v1530
        %v1563 = vmax.f32 %v1499, %v1531
        %v1564 = vmax.f32 %v1500, %v1532
        %v1565 = vmax.f32 %v1501, %v1533
        %v1566 = vmax.f32 %v1502, %v1534
        %v1567 = vmax.f32 %v1503, %v1535
        %v1568 = vmax.f32 %v1504, %v1536
        %v1569 = vmax.f32 %v1505, %v1537
        %v1570 = vmax.f32 %v1506, %v1538
        %v1571 = vmax.f32 %v1507, %v1539
        %v1572 = vmax.f32 %v1508, %v1540
        %v1573 = vmax.f32 %v1509, %v1541
        %v1574 = vmax.f32 %v1510, %v1542
        %v1575 = vmax.f32 %v1511, %v1543
        %v1576 = vmax.f32 %v1512, %v1544
        %v1577 = vpack.c.bf16 %v1546, %v1545
        %v1578 = vpack.c.bf16 %v1548, %v1547
        %v1579 = vpack.c.bf16 %v1550, %v1549
        %v1580 = vpack.c.bf16 %v1552, %v1551
        %v1581 = vpack.c.bf16 %v1554, %v1553
        %v1582 = vpack.c.bf16 %v1556, %v1555
        %v1583 = vpack.c.bf16 %v1558, %v1557
        %v1584 = vpack.c.bf16 %v1560, %v1559
        %v1585 = vpack.c.bf16 %v1562, %v1561
        %v1586 = vpack.c.bf16 %v1564, %v1563
        %v1587 = vpack.c.bf16 %v1566, %v1565
        %v1588 = vpack.c.bf16 %v1568, %v1567
        %v1589 = vpack.c.bf16 %v1570, %v1569
        %v1590 = vpack.c.bf16 %v1572, %v1571
        %v1591 = vpack.c.bf16 %v1574, %v1573
        %v1592 = vpack.c.bf16 %v1576, %v1575
        %v1593 = vld [vmem:[#allocation6] sm:$0xf]
        %v1594 = vld [vmem:[#allocation6 + $0x4] sm:$0xf]
        %v1595 = vld [vmem:[#allocation6 + $0x8] sm:$0xf]
        %v1596 = vld [vmem:[#allocation6 + $0xc] sm:$0xf]
        %v1597 = vld [vmem:[#allocation6 + $0x10] sm:$0xf]
        %v1598 = vld [vmem:[#allocation6 + $0x14] sm:$0xf]
        %v1599 = vld [vmem:[#allocation6 + $0x18] sm:$0xf]
        %v1600 = vld [vmem:[#allocation6 + $0x1c] sm:$0xf]
        %v1601 = vld [vmem:[#allocation6 + $0x20] sm:$0xf]
        %v1602 = vld [vmem:[#allocation6 + $0x24] sm:$0xf]
        %v1603 = vld [vmem:[#allocation6 + $0x28] sm:$0xf]
        %v1604 = vld [vmem:[#allocation6 + $0x2c] sm:$0xf]
        %v1605 = vld [vmem:[#allocation6 + $0x30] sm:$0xf]
        %v1606 = vld [vmem:[#allocation6 + $0x34] sm:$0xf]
        %v1607 = vld [vmem:[#allocation6 + $0x38] sm:$0xf]
        %v1608 = vld [vmem:[#allocation6 + $0x3c] sm:$0xf]
        %v1609 = vld [vmem:[#allocation8] sm:$0x1]
        %v1611 = vlaneseq
        %v1612 = vshrl.u32 %v1611, 7
        %v1613 = vsub.s32 0, %v1612
        %v1614 = vrot.slane %v1609, %v1613
        %v1632 = vunpack.c.l.b16 %v1593
        %v1633 = vunpack.c.l.b16 %v1594
        %v1634 = vunpack.c.l.b16 %v1595
        %v1635 = vunpack.c.l.b16 %v1596
        %v1636 = vunpack.c.l.b16 %v1597
        %v1637 = vunpack.c.l.b16 %v1598
        %v1638 = vunpack.c.l.b16 %v1599
        %v1639 = vunpack.c.l.b16 %v1600
        %v1640 = vunpack.c.l.b16 %v1601
        %v1641 = vunpack.c.l.b16 %v1602
        %v1642 = vunpack.c.l.b16 %v1603
        %v1643 = vunpack.c.l.b16 %v1604
        %v1644 = vunpack.c.l.b16 %v1605
        %v1645 = vunpack.c.l.b16 %v1606
        %v1646 = vunpack.c.l.b16 %v1607
        %v1647 = vunpack.c.l.b16 %v1608
        %v1648 = vpack.c.b16 %v1633, %v1632
        %v1649 = vpack.c.b16 %v1635, %v1634
        %v1650 = vpack.c.b16 %v1637, %v1636
        %v1651 = vpack.c.b16 %v1639, %v1638
        %v1652 = vpack.c.b16 %v1641, %v1640
        %v1653 = vpack.c.b16 %v1643, %v1642
        %v1654 = vpack.c.b16 %v1645, %v1644
        %v1655 = vpack.c.b16 %v1647, %v1646
        %1664 = vmatprep.subr.bf16.mxu0 0
        %1665 = vmatpush1.bf16.msra.mxu0 %v1648
        %1666 = vmatprep.subr.bf16.mxu0 0
        %1667 = vmatpush1.bf16.msra.mxu0 %v1649
        %1668 = vmatprep.subr.bf16.mxu0 0
        %1669 = vmatpush1.bf16.msra.mxu0 %v1650
        %1670 = vmatprep.subr.bf16.mxu0 0
        %1671 = vmatpush1.bf16.msra.mxu0 %v1651
        %1672 = vmatprep.subr.bf16.mxu0 0
        %1673 = vmatpush1.bf16.msra.mxu0 %v1652
        %1674 = vmatprep.subr.bf16.mxu0 0
        %1675 = vmatpush1.bf16.msra.mxu0 %v1653
        %1676 = vmatprep.subr.bf16.mxu0 0
        %1677 = vmatpush1.bf16.msra.mxu0 %v1654
        %1678 = vmatprep.subr.bf16.mxu0 0
        %1679 = vmatpush1.bf16.msra.mxu0 %v1655
        %1680 = vmatprep.subr.bf16.mxu0 0
        %1681 = vmatpush1.bf16.msra.mxu0 0
        %1682 = vmatprep.subr.bf16.mxu0 0
        %1683 = vmatpush1.bf16.msra.mxu0 0
        %1684 = vmatprep.subr.bf16.mxu0 0
        %1685 = vmatpush1.bf16.msra.mxu0 0
        %1686 = vmatprep.subr.bf16.mxu0 0
        %1687 = vmatpush1.bf16.msra.mxu0 0
        %1688 = vmatprep.subr.bf16.mxu0 0
        %1689 = vmatpush1.bf16.msra.mxu0 0
        %1690 = vmatprep.subr.bf16.mxu0 0
        %1691 = vmatpush1.bf16.msra.mxu0 0
        %1692 = vmatprep.subr.bf16.mxu0 0
        %1693 = vmatpush1.bf16.msra.mxu0 0
        %1694 = vmatprep.subr.bf16.mxu0 0
        %1695 = vmatpush1.bf16.msra.mxu0 0
        %1696 = vmatprep.mubr.bf16.mxu0 0
        %1697 = vmatmul.mubr.bf16.gmra.mrb[0].mxu0 %v1577
        %v1698 = vpop.f32.mrb[0].mxu0
        %v1699 = vadd.f32 %v1614, %v1698
        %v1700 = vpop.f32.mrb[0].mxu0
        %v1701 = vpop.f32.mrb[0].mxu0
        %v1702 = vadd.f32 %v1614, %v1701
        %v1703 = vpop.f32.mrb[0].mxu0
        %1704 = vmatprep.mubr.bf16.mxu0 0
        %1705 = vmatmul.mubr.bf16.gmra.mrb[0].mxu0 %v1578
        %v1706 = vpop.f32.mrb[0].mxu0
        %v1707 = vadd.f32 %v1614, %v1706
        %v1708 = vpop.f32.mrb[0].mxu0
        %v1709 = vpop.f32.mrb[0].mxu0
        %v1710 = vadd.f32 %v1614, %v1709
        %v1711 = vpop.f32.mrb[0].mxu0
        %1712 = vmatprep.mubr.bf16.mxu0 0
        %1713 = vmatmul.mubr.bf16.gmra.mrb[0].mxu0 %v1579
        %v1714 = vpop.f32.mrb[0].mxu0
        %v1715 = vadd.f32 %v1614, %v1714
        %v1716 = vpop.f32.mrb[0].mxu0
        %v1717 = vpop.f32.mrb[0].mxu0
        %v1718 = vadd.f32 %v1614, %v1717
        %v1719 = vpop.f32.mrb[0].mxu0
        %1720 = vmatprep.mubr.bf16.mxu0 0
        %1721 = vmatmul.mubr.bf16.gmra.mrb[0].mxu0 %v1580
        %v1722 = vpop.f32.mrb[0].mxu0
        %v1723 = vadd.f32 %v1614, %v1722
        %v1724 = vpop.f32.mrb[0].mxu0
        %v1725 = vpop.f32.mrb[0].mxu0
        %v1726 = vadd.f32 %v1614, %v1725
        %v1727 = vpop.f32.mrb[0].mxu0
        %1728 = vmatprep.mubr.bf16.mxu0 0
        %1729 = vmatmul.mubr.bf16.gmra.mrb[0].mxu0 %v1581
        %v1730 = vpop.f32.mrb[0].mxu0
        %v1731 = vadd.f32 %v1614, %v1730
        %v1732 = vpop.f32.mrb[0].mxu0
        %v1733 = vpop.f32.mrb[0].mxu0
        %v1734 = vadd.f32 %v1614, %v1733
        %v1735 = vpop.f32.mrb[0].mxu0
        %1736 = vmatprep.mubr.bf16.mxu0 0
        %1737 = vmatmul.mubr.bf16.gmra.mrb[0].mxu0 %v1582
        %v1738 = vpop.f32.mrb[0].mxu0
        %v1739 = vadd.f32 %v1614, %v1738
        %v1740 = vpop.f32.mrb[0].mxu0
        %v1741 = vpop.f32.mrb[0].mxu0
        %v1742 = vadd.f32 %v1614, %v1741
        %v1743 = vpop.f32.mrb[0].mxu0
        %1744 = vmatprep.mubr.bf16.mxu0 0
        %1745 = vmatmul.mubr.bf16.gmra.mrb[0].mxu0 %v1583
        %v1746 = vpop.f32.mrb[0].mxu0
        %v1747 = vadd.f32 %v1614, %v1746
        %v1748 = vpop.f32.mrb[0].mxu0
        %v1749 = vpop.f32.mrb[0].mxu0
        %v1750 = vadd.f32 %v1614, %v1749
        %v1751 = vpop.f32.mrb[0].mxu0
        %1752 = vmatprep.mubr.bf16.mxu0 0
        %1753 = vmatmul.mubr.bf16.gmra.mrb[0].mxu0 %v1584
        %v1754 = vpop.f32.mrb[0].mxu0
        %v1755 = vadd.f32 %v1614, %v1754
        %v1756 = vpop.f32.mrb[0].mxu0
        %v1757 = vpop.f32.mrb[0].mxu0
        %v1758 = vadd.f32 %v1614, %v1757
        %v1759 = vpop.f32.mrb[0].mxu0
        %1760 = vmatprep.mubr.bf16.mxu0 0
        %1761 = vmatmul.mubr.bf16.gmra.mrb[0].mxu0 %v1585
        %v1762 = vpop.f32.mrb[0].mxu0
        %v1763 = vadd.f32 %v1614, %v1762
        %v1764 = vpop.f32.mrb[0].mxu0
        %v1765 = vpop.f32.mrb[0].mxu0
        %v1766 = vadd.f32 %v1614, %v1765
        %v1767 = vpop.f32.mrb[0].mxu0
        %1768 = vmatprep.mubr.bf16.mxu0 0
        %1769 = vmatmul.mubr.bf16.gmra.mrb[0].mxu0 %v1586
        %v1770 = vpop.f32.mrb[0].mxu0
        %v1771 = vadd.f32 %v1614, %v1770
        %v1772 = vpop.f32.mrb[0].mxu0
        %v1773 = vpop.f32.mrb[0].mxu0
        %v1774 = vadd.f32 %v1614, %v1773
        %v1775 = vpop.f32.mrb[0].mxu0
        %1776 = vmatprep.mubr.bf16.mxu0 0
        %1777 = vmatmul.mubr.bf16.gmra.mrb[0].mxu0 %v1587
        %v1778 = vpop.f32.mrb[0].mxu0
        %v1779 = vadd.f32 %v1614, %v1778
        %v1780 = vpop.f32.mrb[0].mxu0
        %v1781 = vpop.f32.mrb[0].mxu0
        %v1782 = vadd.f32 %v1614, %v1781
        %v1783 = vpop.f32.mrb[0].mxu0
        %1784 = vmatprep.mubr.bf16.mxu0 0
        %1785 = vmatmul.mubr.bf16.gmra.mrb[0].mxu0 %v1588
        %v1786 = vpop.f32.mrb[0].mxu0
        %v1787 = vadd.f32 %v1614, %v1786
        %v1788 = vpop.f32.mrb[0].mxu0
        %v1789 = vpop.f32.mrb[0].mxu0
        %v1790 = vadd.f32 %v1614, %v1789
        %v1791 = vpop.f32.mrb[0].mxu0
        %1792 = vmatprep.mubr.bf16.mxu0 0
        %1793 = vmatmul.mubr.bf16.gmra.mrb[0].mxu0 %v1589
        %v1794 = vpop.f32.mrb[0].mxu0
        %v1795 = vadd.f32 %v1614, %v1794
        %v1796 = vpop.f32.mrb[0].mxu0
        %v1797 = vpop.f32.mrb[0].mxu0
        %v1798 = vadd.f32 %v1614, %v1797
        %v1799 = vpop.f32.mrb[0].mxu0
        %1800 = vmatprep.mubr.bf16.mxu0 0
        %1801 = vmatmul.mubr.bf16.gmra.mrb[0].mxu0 %v1590
        %v1802 = vpop.f32.mrb[0].mxu0
        %v1803 = vadd.f32 %v1614, %v1802
        %v1804 = vpop.f32.mrb[0].mxu0
        %v1805 = vpop.f32.mrb[0].mxu0
        %v1806 = vadd.f32 %v1614, %v1805
        %v1807 = vpop.f32.mrb[0].mxu0
        %1808 = vmatprep.mubr.bf16.mxu0 0
        %1809 = vmatmul.mubr.bf16.gmra.mrb[0].mxu0 %v1591
        %v1810 = vpop.f32.mrb[0].mxu0
        %v1811 = vadd.f32 %v1614, %v1810
        %v1812 = vpop.f32.mrb[0].mxu0
        %v1813 = vpop.f32.mrb[0].mxu0
        %v1814 = vadd.f32 %v1614, %v1813
        %v1815 = vpop.f32.mrb[0].mxu0
        %1816 = vmatprep.mubr.bf16.mxu0 0
        %1817 = vmatmul.mubr.bf16.gmra.mrb[0].mxu0 %v1592
        %v1818 = vpop.f32.mrb[0].mxu0
        %v1819 = vadd.f32 %v1614, %v1818
        %v1820 = vpop.f32.mrb[0].mxu0
        %v1821 = vpop.f32.mrb[0].mxu0
        %v1822 = vadd.f32 %v1614, %v1821
        %v1823 = vpop.f32.mrb[0].mxu0
        %1824 = vdwg.mxu0
        %1825 = vadd.xlane.f32.xlu0 %v1699
        %v1826 = vpop.xlane.xlu0 %1825
        %1827 = vadd.xlane.f32.xlu0 %v1702
        %v1828 = vpop.xlane.xlu0 %1827
        %1829 = vadd.xlane.f32.xlu0 %v1707
        %v1830 = vpop.xlane.xlu0 %1829
        %1831 = vadd.xlane.f32.xlu0 %v1710
        %v1832 = vpop.xlane.xlu0 %1831
        %1833 = vadd.xlane.f32.xlu0 %v1715
        %v1834 = vpop.xlane.xlu0 %1833
        %1835 = vadd.xlane.f32.xlu0 %v1718
        %v1836 = vpop.xlane.xlu0 %1835
        %1837 = vadd.xlane.f32.xlu0 %v1723
        %v1838 = vpop.xlane.xlu0 %1837
        %1839 = vadd.xlane.f32.xlu0 %v1726
        %v1840 = vpop.xlane.xlu0 %1839
        %1841 = vadd.xlane.f32.xlu0 %v1731
        %v1842 = vpop.xlane.xlu0 %1841
        %1843 = vadd.xlane.f32.xlu0 %v1734
        %v1844 = vpop.xlane.xlu0 %1843
        %1845 = vadd.xlane.f32.xlu0 %v1739
        %v1846 = vpop.xlane.xlu0 %1845
        %1847 = vadd.xlane.f32.xlu0 %v1742
        %v1848 = vpop.xlane.xlu0 %1847
        %1849 = vadd.xlane.f32.xlu0 %v1747
        %v1850 = vpop.xlane.xlu0 %1849
        %1851 = vadd.xlane.f32.xlu0 %v1750
        %v1852 = vpop.xlane.xlu0 %1851
        %1853 = vadd.xlane.f32.xlu0 %v1755
        %v1854 = vpop.xlane.xlu0 %1853
        %1855 = vadd.xlane.f32.xlu0 %v1758
        %v1856 = vpop.xlane.xlu0 %1855
        %1857 = vadd.xlane.f32.xlu0 %v1763
        %v1858 = vpop.xlane.xlu0 %1857
        %1859 = vadd.xlane.f32.xlu0 %v1766
        %v1860 = vpop.xlane.xlu0 %1859
        %1861 = vadd.xlane.f32.xlu0 %v1771
        %v1862 = vpop.xlane.xlu0 %1861
        %1863 = vadd.xlane.f32.xlu0 %v1774
        %v1864 = vpop.xlane.xlu0 %1863
        %1865 = vadd.xlane.f32.xlu0 %v1779
        %v1866 = vpop.xlane.xlu0 %1865
        %1867 = vadd.xlane.f32.xlu0 %v1782
        %v1868 = vpop.xlane.xlu0 %1867
        %1869 = vadd.xlane.f32.xlu0 %v1787
        %v1870 = vpop.xlane.xlu0 %1869
        %1871 = vadd.xlane.f32.xlu0 %v1790
        %v1872 = vpop.xlane.xlu0 %1871
        %1873 = vadd.xlane.f32.xlu0 %v1795
        %v1874 = vpop.xlane.xlu0 %1873
        %1875 = vadd.xlane.f32.xlu0 %v1798
        %v1876 = vpop.xlane.xlu0 %1875
        %1877 = vadd.xlane.f32.xlu0 %v1803
        %v1878 = vpop.xlane.xlu0 %1877
        %1879 = vadd.xlane.f32.xlu0 %v1806
        %v1880 = vpop.xlane.xlu0 %1879
        %1881 = vadd.xlane.f32.xlu0 %v1811
        %v1882 = vpop.xlane.xlu0 %1881
        %1883 = vadd.xlane.f32.xlu0 %v1814
        %v1884 = vpop.xlane.xlu0 %1883
        %1885 = vadd.xlane.f32.xlu0 %v1819
        %v1886 = vpop.xlane.xlu0 %1885
        %1887 = vadd.xlane.f32.xlu0 %v1822
        %v1888 = vpop.xlane.xlu0 %1887
        %v1889 = vrcp.pop 128.0
        %v1890 = vmul.f32 %v1826, %v1889
        %v1891 = vmul.f32 %v1828, %v1889
        %v1892 = vmul.f32 %v1830, %v1889
        %v1893 = vmul.f32 %v1832, %v1889
        %v1894 = vmul.f32 %v1834, %v1889
        %v1895 = vmul.f32 %v1836, %v1889
        %v1896 = vmul.f32 %v1838, %v1889
        %v1897 = vmul.f32 %v1840, %v1889
        %v1898 = vmul.f32 %v1842, %v1889
        %v1899 = vmul.f32 %v1844, %v1889
        %v1900 = vmul.f32 %v1846, %v1889
        %v1901 = vmul.f32 %v1848, %v1889
        %v1902 = vmul.f32 %v1850, %v1889
        %v1903 = vmul.f32 %v1852, %v1889
        %v1904 = vmul.f32 %v1854, %v1889
        %v1905 = vmul.f32 %v1856, %v1889
        %v1906 = vmul.f32 %v1858, %v1889
        %v1907 = vmul.f32 %v1860, %v1889
        %v1908 = vmul.f32 %v1862, %v1889
        %v1909 = vmul.f32 %v1864, %v1889
        %v1910 = vmul.f32 %v1866, %v1889
        %v1911 = vmul.f32 %v1868, %v1889
        %v1912 = vmul.f32 %v1870, %v1889
        %v1913 = vmul.f32 %v1872, %v1889
        %v1914 = vmul.f32 %v1874, %v1889
        %v1915 = vmul.f32 %v1876, %v1889
        %v1916 = vmul.f32 %v1878, %v1889
        %v1917 = vmul.f32 %v1880, %v1889
        %v1918 = vmul.f32 %v1882, %v1889
        %v1919 = vmul.f32 %v1884, %v1889
        %v1920 = vmul.f32 %v1886, %v1889
        %v1921 = vmul.f32 %v1888, %v1889
        %v1922 = vsub.f32 %v1699, %v1890
        %v1923 = vsub.f32 %v1702, %v1891
        %v1924 = vsub.f32 %v1707, %v1892
        %v1925 = vsub.f32 %v1710, %v1893
        %v1926 = vsub.f32 %v1715, %v1894
        %v1927 = vsub.f32 %v1718, %v1895
        %v1928 = vsub.f32 %v1723, %v1896
        %v1929 = vsub.f32 %v1726, %v1897
        %v1930 = vsub.f32 %v1731, %v1898
        %v1931 = vsub.f32 %v1734, %v1899
        %v1932 = vsub.f32 %v1739, %v1900
        %v1933 = vsub.f32 %v1742, %v1901
        %v1934 = vsub.f32 %v1747, %v1902
        %v1935 = vsub.f32 %v1750, %v1903
        %v1936 = vsub.f32 %v1755, %v1904
        %v1937 = vsub.f32 %v1758, %v1905
        %v1938 = vsub.f32 %v1763, %v1906
        %v1939 = vsub.f32 %v1766, %v1907
        %v1940 = vsub.f32 %v1771, %v1908
        %v1941 = vsub.f32 %v1774, %v1909
        %v1942 = vsub.f32 %v1779, %v1910
        %v1943 = vsub.f32 %v1782, %v1911
        %v1944 = vsub.f32 %v1787, %v1912
        %v1945 = vsub.f32 %v1790, %v1913
        %v1946 = vsub.f32 %v1795, %v1914
        %v1947 = vsub.f32 %v1798, %v1915
        %v1948 = vsub.f32 %v1803, %v1916
        %v1949 = vsub.f32 %v1806, %v1917
        %v1950 = vsub.f32 %v1811, %v1918
        %v1951 = vsub.f32 %v1814, %v1919
        %v1952 = vsub.f32 %v1819, %v1920
        %v1953 = vsub.f32 %v1822, %v1921
        %v1954 = vmul.f32 %v1922, %v1922
        %v1955 = vmul.f32 %v1923, %v1923
        %v1956 = vmul.f32 %v1924, %v1924
        %v1957 = vmul.f32 %v1925, %v1925
        %v1958 = vmul.f32 %v1926, %v1926
        %v1959 = vmul.f32 %v1927, %v1927
        %v1960 = vmul.f32 %v1928, %v1928
        %v1961 = vmul.f32 %v1929, %v1929
        %v1962 = vmul.f32 %v1930, %v1930
        %v1963 = vmul.f32 %v1931, %v1931
        %v1964 = vmul.f32 %v1932, %v1932
        %v1965 = vmul.f32 %v1933, %v1933
        %v1966 = vmul.f32 %v1934, %v1934
        %v1967 = vmul.f32 %v1935, %v1935
        %v1968 = vmul.f32 %v1936, %v1936
        %v1969 = vmul.f32 %v1937, %v1937
        %v1970 = vmul.f32 %v1938, %v1938
        %v1971 = vmul.f32 %v1939, %v1939
        %v1972 = vmul.f32 %v1940, %v1940
        %v1973 = vmul.f32 %v1941, %v1941
        %v1974 = vmul.f32 %v1942, %v1942
        %v1975 = vmul.f32 %v1943, %v1943
        %v1976 = vmul.f32 %v1944, %v1944
        %v1977 = vmul.f32 %v1945, %v1945
        %v1978 = vmul.f32 %v1946, %v1946
        %v1979 = vmul.f32 %v1947, %v1947
        %v1980 = vmul.f32 %v1948, %v1948
        %v1981 = vmul.f32 %v1949, %v1949
        %v1982 = vmul.f32 %v1950, %v1950
        %v1983 = vmul.f32 %v1951, %v1951
        %v1984 = vmul.f32 %v1952, %v1952
        %v1985 = vmul.f32 %v1953, %v1953
        %1986 = vadd.xlane.f32.xlu0 %v1954
        %v1987 = vpop.xlane.xlu0 %1986
        %1988 = vadd.xlane.f32.xlu0 %v1955
        %v1989 = vpop.xlane.xlu0 %1988
        %1990 = vadd.xlane.f32.xlu0 %v1956
        %v1991 = vpop.xlane.xlu0 %1990
        %1992 = vadd.xlane.f32.xlu0 %v1957
        %v1993 = vpop.xlane.xlu0 %1992
        %1994 = vadd.xlane.f32.xlu0 %v1958
        %v1995 = vpop.xlane.xlu0 %1994
        %1996 = vadd.xlane.f32.xlu0 %v1959
        %v1997 = vpop.xlane.xlu0 %1996
        %1998 = vadd.xlane.f32.xlu0 %v1960
        %v1999 = vpop.xlane.xlu0 %1998
        %2000 = vadd.xlane.f32.xlu0 %v1961
        %v2001 = vpop.xlane.xlu0 %2000
        %2002 = vadd.xlane.f32.xlu0 %v1962
        %v2003 = vpop.xlane.xlu0 %2002
        %2004 = vadd.xlane.f32.xlu0 %v1963
        %v2005 = vpop.xlane.xlu0 %2004
        %2006 = vadd.xlane.f32.xlu0 %v1964
        %v2007 = vpop.xlane.xlu0 %2006
        %2008 = vadd.xlane.f32.xlu0 %v1965
        %v2009 = vpop.xlane.xlu0 %2008
        %2010 = vadd.xlane.f32.xlu0 %v1966
        %v2011 = vpop.xlane.xlu0 %2010
        %2012 = vadd.xlane.f32.xlu0 %v1967
        %v2013 = vpop.xlane.xlu0 %2012
        %2014 = vadd.xlane.f32.xlu0 %v1968
        %v2015 = vpop.xlane.xlu0 %2014
        %2016 = vadd.xlane.f32.xlu0 %v1969
        %v2017 = vpop.xlane.xlu0 %2016
        %2018 = vadd.xlane.f32.xlu0 %v1970
        %v2019 = vpop.xlane.xlu0 %2018
        %2020 = vadd.xlane.f32.xlu0 %v1971
        %v2021 = vpop.xlane.xlu0 %2020
        %2022 = vadd.xlane.f32.xlu0 %v1972
        %v2023 = vpop.xlane.xlu0 %2022
        %2024 = vadd.xlane.f32.xlu0 %v1973
        %v2025 = vpop.xlane.xlu0 %2024
        %2026 = vadd.xlane.f32.xlu0 %v1974
        %v2027 = vpop.xlane.xlu0 %2026
        %2028 = vadd.xlane.f32.xlu0 %v1975
        %v2029 = vpop.xlane.xlu0 %2028
        %2030 = vadd.xlane.f32.xlu0 %v1976
        %v2031 = vpop.xlane.xlu0 %2030
        %2032 = vadd.xlane.f32.xlu0 %v1977
        %v2033 = vpop.xlane.xlu0 %2032
        %2034 = vadd.xlane.f32.xlu0 %v1978
        %v2035 = vpop.xlane.xlu0 %2034
        %2036 = vadd.xlane.f32.xlu0 %v1979
        %v2037 = vpop.xlane.xlu0 %2036
        %2038 = vadd.xlane.f32.xlu0 %v1980
        %v2039 = vpop.xlane.xlu0 %2038
        %2040 = vadd.xlane.f32.xlu0 %v1981
        %v2041 = vpop.xlane.xlu0 %2040
        %2042 = vadd.xlane.f32.xlu0 %v1982
        %v2043 = vpop.xlane.xlu0 %2042
        %2044 = vadd.xlane.f32.xlu0 %v1983
        %v2045 = vpop.xlane.xlu0 %2044
        %2046 = vadd.xlane.f32.xlu0 %v1984
        %v2047 = vpop.xlane.xlu0 %2046
        %2048 = vadd.xlane.f32.xlu0 %v1985
        %v2049 = vpop.xlane.xlu0 %2048
        %v2050 = vmul.f32 %v1987, %v1889
        %v2051 = vmul.f32 %v1989, %v1889
        %v2052 = vmul.f32 %v1991, %v1889
        %v2053 = vmul.f32 %v1993, %v1889
        %v2054 = vmul.f32 %v1995, %v1889
        %v2055 = vmul.f32 %v1997, %v1889
        %v2056 = vmul.f32 %v1999, %v1889
        %v2057 = vmul.f32 %v2001, %v1889
        %v2058 = vmul.f32 %v2003, %v1889
        %v2059 = vmul.f32 %v2005, %v1889
        %v2060 = vmul.f32 %v2007, %v1889
        %v2061 = vmul.f32 %v2009, %v1889
        %v2062 = vmul.f32 %v2011, %v1889
        %v2063 = vmul.f32 %v2013, %v1889
        %v2064 = vmul.f32 %v2015, %v1889
        %v2065 = vmul.f32 %v2017, %v1889
        %v2066 = vmul.f32 %v2019, %v1889
        %v2067 = vmul.f32 %v2021, %v1889
        %v2068 = vmul.f32 %v2023, %v1889
        %v2069 = vmul.f32 %v2025, %v1889
        %v2070 = vmul.f32 %v2027, %v1889
        %v2071 = vmul.f32 %v2029, %v1889
        %v2072 = vmul.f32 %v2031, %v1889
        %v2073 = vmul.f32 %v2033, %v1889
        %v2074 = vmul.f32 %v2035, %v1889
        %v2075 = vmul.f32 %v2037, %v1889
        %v2076 = vmul.f32 %v2039, %v1889
        %v2077 = vmul.f32 %v2041, %v1889
        %v2078 = vmul.f32 %v2043, %v1889
        %v2079 = vmul.f32 %v2045, %v1889
        %v2080 = vmul.f32 %v2047, %v1889
        %v2081 = vmul.f32 %v2049, %v1889
        %v2082 = vadd.f32 %v2050, 1e-05
        %v2083 = vadd.f32 %v2051, 1e-05
        %v2084 = vadd.f32 %v2052, 1e-05
        %v2085 = vadd.f32 %v2053, 1e-05
        %v2086 = vadd.f32 %v2054, 1e-05
        %v2087 = vadd.f32 %v2055, 1e-05
        %v2088 = vadd.f32 %v2056, 1e-05
        %v2089 = vadd.f32 %v2057, 1e-05
        %v2090 = vadd.f32 %v2058, 1e-05
        %v2091 = vadd.f32 %v2059, 1e-05
        %v2092 = vadd.f32 %v2060, 1e-05
        %v2093 = vadd.f32 %v2061, 1e-05
        %v2094 = vadd.f32 %v2062, 1e-05
        %v2095 = vadd.f32 %v2063, 1e-05
        %v2096 = vadd.f32 %v2064, 1e-05
        %v2097 = vadd.f32 %v2065, 1e-05
        %v2098 = vadd.f32 %v2066, 1e-05
        %v2099 = vadd.f32 %v2067, 1e-05
        %v2100 = vadd.f32 %v2068, 1e-05
        %v2101 = vadd.f32 %v2069, 1e-05
        %v2102 = vadd.f32 %v2070, 1e-05
        %v2103 = vadd.f32 %v2071, 1e-05
        %v2104 = vadd.f32 %v2072, 1e-05
        %v2105 = vadd.f32 %v2073, 1e-05
        %v2106 = vadd.f32 %v2074, 1e-05
        %v2107 = vadd.f32 %v2075, 1e-05
        %v2108 = vadd.f32 %v2076, 1e-05
        %v2109 = vadd.f32 %v2077, 1e-05
        %v2110 = vadd.f32 %v2078, 1e-05
        %v2111 = vadd.f32 %v2079, 1e-05
        %v2112 = vadd.f32 %v2080, 1e-05
        %v2113 = vadd.f32 %v2081, 1e-05
        %v2114 = vrsqrt.pop %v2082
        %v2115 = vrsqrt.pop %v2083
        %v2116 = vrsqrt.pop %v2084
        %v2117 = vrsqrt.pop %v2085
        %v2118 = vrsqrt.pop %v2086
        %v2119 = vrsqrt.pop %v2087
        %v2120 = vrsqrt.pop %v2088
        %v2121 = vrsqrt.pop %v2089
        %v2122 = vrsqrt.pop %v2090
        %v2123 = vrsqrt.pop %v2091
        %v2124 = vrsqrt.pop %v2092
        %v2125 = vrsqrt.pop %v2093
        %v2126 = vrsqrt.pop %v2094
        %v2127 = vrsqrt.pop %v2095
        %v2128 = vrsqrt.pop %v2096
        %v2129 = vrsqrt.pop %v2097
        %v2130 = vrsqrt.pop %v2098
        %v2131 = vrsqrt.pop %v2099
        %v2132 = vrsqrt.pop %v2100
        %v2133 = vrsqrt.pop %v2101
        %v2134 = vrsqrt.pop %v2102
        %v2135 = vrsqrt.pop %v2103
        %v2136 = vrsqrt.pop %v2104
        %v2137 = vrsqrt.pop %v2105
        %v2138 = vrsqrt.pop %v2106
        %v2139 = vrsqrt.pop %v2107
        %v2140 = vrsqrt.pop %v2108
        %v2141 = vrsqrt.pop %v2109
        %v2142 = vrsqrt.pop %v2110
        %v2143 = vrsqrt.pop %v2111
        %v2144 = vrsqrt.pop %v2112
        %v2145 = vrsqrt.pop %v2113
        %v2146 = vmul.f32 %v1922, %v2114
        %v2147 = vmul.f32 %v1923, %v2115
        %v2148 = vmul.f32 %v1924, %v2116
        %v2149 = vmul.f32 %v1925, %v2117
        %v2150 = vmul.f32 %v1926, %v2118
        %v2151 = vmul.f32 %v1927, %v2119
        %v2152 = vmul.f32 %v1928, %v2120
        %v2153 = vmul.f32 %v1929, %v2121
        %v2154 = vmul.f32 %v1930, %v2122
        %v2155 = vmul.f32 %v1931, %v2123
        %v2156 = vmul.f32 %v1932, %v2124
        %v2157 = vmul.f32 %v1933, %v2125
        %v2158 = vmul.f32 %v1934, %v2126
        %v2159 = vmul.f32 %v1935, %v2127
        %v2160 = vmul.f32 %v1936, %v2128
        %v2161 = vmul.f32 %v1937, %v2129
        %v2162 = vmul.f32 %v1938, %v2130
        %v2163 = vmul.f32 %v1939, %v2131
        %v2164 = vmul.f32 %v1940, %v2132
        %v2165 = vmul.f32 %v1941, %v2133
        %v2166 = vmul.f32 %v1942, %v2134
        %v2167 = vmul.f32 %v1943, %v2135
        %v2168 = vmul.f32 %v1944, %v2136
        %v2169 = vmul.f32 %v1945, %v2137
        %v2170 = vmul.f32 %v1946, %v2138
        %v2171 = vmul.f32 %v1947, %v2139
        %v2172 = vmul.f32 %v1948, %v2140
        %v2173 = vmul.f32 %v1949, %v2141
        %v2174 = vmul.f32 %v1950, %v2142
        %v2175 = vmul.f32 %v1951, %v2143
        %v2176 = vmul.f32 %v1952, %v2144
        %v2177 = vmul.f32 %v1953, %v2145
        %v2178 = vld [vmem:[%s6] sm:$0x1]
        %v2180 = vlaneseq
        %v2181 = vshrl.u32 %v2180, 7
        %v2182 = vsub.s32 0, %v2181
        %v2183 = vrot.slane %v2178, %v2182
        %v2185 = vmul.f32 %v2146, %v2183
        %v2186 = vmul.f32 %v2147, %v2183
        %v2187 = vmul.f32 %v2148, %v2183
        %v2188 = vmul.f32 %v2149, %v2183
        %v2189 = vmul.f32 %v2150, %v2183
        %v2190 = vmul.f32 %v2151, %v2183
        %v2191 = vmul.f32 %v2152, %v2183
        %v2192 = vmul.f32 %v2153, %v2183
        %v2193 = vmul.f32 %v2154, %v2183
        %v2194 = vmul.f32 %v2155, %v2183
        %v2195 = vmul.f32 %v2156, %v2183
        %v2196 = vmul.f32 %v2157, %v2183
        %v2197 = vmul.f32 %v2158, %v2183
        %v2198 = vmul.f32 %v2159, %v2183
        %v2199 = vmul.f32 %v2160, %v2183
        %v2200 = vmul.f32 %v2161, %v2183
        %v2201 = vmul.f32 %v2162, %v2183
        %v2202 = vmul.f32 %v2163, %v2183
        %v2203 = vmul.f32 %v2164, %v2183
        %v2204 = vmul.f32 %v2165, %v2183
        %v2205 = vmul.f32 %v2166, %v2183
        %v2206 = vmul.f32 %v2167, %v2183
        %v2207 = vmul.f32 %v2168, %v2183
        %v2208 = vmul.f32 %v2169, %v2183
        %v2209 = vmul.f32 %v2170, %v2183
        %v2210 = vmul.f32 %v2171, %v2183
        %v2211 = vmul.f32 %v2172, %v2183
        %v2212 = vmul.f32 %v2173, %v2183
        %v2213 = vmul.f32 %v2174, %v2183
        %v2214 = vmul.f32 %v2175, %v2183
        %v2215 = vmul.f32 %v2176, %v2183
        %v2216 = vmul.f32 %v2177, %v2183
        %v2217 = vld [vmem:[%s7] sm:$0x1]
        %v2219 = vlaneseq
        %v2220 = vshrl.u32 %v2219, 7
        %v2221 = vsub.s32 0, %v2220
        %v2222 = vrot.slane %v2217, %v2221
        %v2224 = vadd.f32 %v2185, %v2222
        %v2225 = vadd.f32 %v2186, %v2222
        %v2226 = vadd.f32 %v2187, %v2222
        %v2227 = vadd.f32 %v2188, %v2222
        %v2228 = vadd.f32 %v2189, %v2222
        %v2229 = vadd.f32 %v2190, %v2222
        %v2230 = vadd.f32 %v2191, %v2222
        %v2231 = vadd.f32 %v2192, %v2222
        %v2232 = vadd.f32 %v2193, %v2222
        %v2233 = vadd.f32 %v2194, %v2222
        %v2234 = vadd.f32 %v2195, %v2222
        %v2235 = vadd.f32 %v2196, %v2222
        %v2236 = vadd.f32 %v2197, %v2222
        %v2237 = vadd.f32 %v2198, %v2222
        %v2238 = vadd.f32 %v2199, %v2222
        %v2239 = vadd.f32 %v2200, %v2222
        %v2240 = vadd.f32 %v2201, %v2222
        %v2241 = vadd.f32 %v2202, %v2222
        %v2242 = vadd.f32 %v2203, %v2222
        %v2243 = vadd.f32 %v2204, %v2222
        %v2244 = vadd.f32 %v2205, %v2222
        %v2245 = vadd.f32 %v2206, %v2222
        %v2246 = vadd.f32 %v2207, %v2222
        %v2247 = vadd.f32 %v2208, %v2222
        %v2248 = vadd.f32 %v2209, %v2222
        %v2249 = vadd.f32 %v2210, %v2222
        %v2250 = vadd.f32 %v2211, %v2222
        %v2251 = vadd.f32 %v2212, %v2222
        %v2252 = vadd.f32 %v2213, %v2222
        %v2253 = vadd.f32 %v2214, %v2222
        %v2254 = vadd.f32 %v2215, %v2222
        %v2255 = vadd.f32 %v2216, %v2222
        %v2256 = vld [vmem:[#allocation2 + $0x10] sm:$0xff]
        %v2257 = vld [vmem:[#allocation2 + $0x30] sm:$0xff]
        %v2258 = vld [vmem:[#allocation2 + $0x50] sm:$0xff]
        %v2259 = vld [vmem:[#allocation2 + $0x70] sm:$0xff]
        %v2260 = vld [vmem:[#allocation2 + $0x90] sm:$0xff]
        %v2261 = vld [vmem:[#allocation2 + $0xb0] sm:$0xff]
        %v2262 = vld [vmem:[#allocation2 + $0xd0] sm:$0xff]
        %v2263 = vld [vmem:[#allocation2 + $0xf0] sm:$0xff]
        %v2264 = vld [vmem:[#allocation2 + $0x110] sm:$0xff]
        %v2265 = vld [vmem:[#allocation2 + $0x130] sm:$0xff]
        %v2266 = vld [vmem:[#allocation2 + $0x150] sm:$0xff]
        %v2267 = vld [vmem:[#allocation2 + $0x170] sm:$0xff]
        %v2268 = vld [vmem:[#allocation2 + $0x190] sm:$0xff]
        %v2269 = vld [vmem:[#allocation2 + $0x1b0] sm:$0xff]
        %v2270 = vld [vmem:[#allocation2 + $0x1d0] sm:$0xff]
        %v2271 = vld [vmem:[#allocation2 + $0x1f0] sm:$0xff]
        %v2272 = vld [vmem:[#allocation2 + $0x210] sm:$0xff]
        %v2273 = vld [vmem:[#allocation2 + $0x230] sm:$0xff]
        %v2274 = vld [vmem:[#allocation2 + $0x250] sm:$0xff]
        %v2275 = vld [vmem:[#allocation2 + $0x270] sm:$0xff]
        %v2276 = vld [vmem:[#allocation2 + $0x290] sm:$0xff]
        %v2277 = vld [vmem:[#allocation2 + $0x2b0] sm:$0xff]
        %v2278 = vld [vmem:[#allocation2 + $0x2d0] sm:$0xff]
        %v2279 = vld [vmem:[#allocation2 + $0x2f0] sm:$0xff]
        %v2280 = vld [vmem:[#allocation2 + $0x310] sm:$0xff]
        %v2281 = vld [vmem:[#allocation2 + $0x330] sm:$0xff]
        %v2282 = vld [vmem:[#allocation2 + $0x350] sm:$0xff]
        %v2283 = vld [vmem:[#allocation2 + $0x370] sm:$0xff]
        %v2284 = vld [vmem:[#allocation2 + $0x390] sm:$0xff]
        %v2285 = vld [vmem:[#allocation2 + $0x3b0] sm:$0xff]
        %v2286 = vld [vmem:[#allocation2 + $0x3d0] sm:$0xff]
        %v2287 = vld [vmem:[#allocation2 + $0x3f0] sm:$0xff]
        %v2288 = vpack.c.bf16 %v2225, %v2224
        %v2289 = vpack.c.bf16 %v2227, %v2226
        %v2290 = vpack.c.bf16 %v2229, %v2228
        %v2291 = vpack.c.bf16 %v2231, %v2230
        %v2292 = vpack.c.bf16 %v2233, %v2232
        %v2293 = vpack.c.bf16 %v2235, %v2234
        %v2294 = vpack.c.bf16 %v2237, %v2236
        %v2295 = vpack.c.bf16 %v2239, %v2238
        %v2296 = vpack.c.bf16 %v2241, %v2240
        %v2297 = vpack.c.bf16 %v2243, %v2242
        %v2298 = vpack.c.bf16 %v2245, %v2244
        %v2299 = vpack.c.bf16 %v2247, %v2246
        %v2300 = vpack.c.bf16 %v2249, %v2248
        %v2301 = vpack.c.bf16 %v2251, %v2250
        %v2302 = vpack.c.bf16 %v2253, %v2252
        %v2303 = vpack.c.bf16 %v2255, %v2254
        %s2304 = scalar_lea.vmem %s3, 64
        %v2305 = vld [vmem:[%s2304] sm:$0xf]
        %v2306 = vld [vmem:[%s2304 + $0x4] sm:$0xf]
        %v2307 = vld [vmem:[%s2304 + $0x8] sm:$0xf]
        %v2308 = vld [vmem:[%s2304 + $0xc] sm:$0xf]
        %v2309 = vld [vmem:[%s2304 + $0x10] sm:$0xf]
        %v2310 = vld [vmem:[%s2304 + $0x14] sm:$0xf]
        %v2311 = vld [vmem:[%s2304 + $0x18] sm:$0xf]
        %v2312 = vld [vmem:[%s2304 + $0x1c] sm:$0xf]
        %v2313 = vld [vmem:[%s2304 + $0x20] sm:$0xf]
        %v2314 = vld [vmem:[%s2304 + $0x24] sm:$0xf]
        %v2315 = vld [vmem:[%s2304 + $0x28] sm:$0xf]
        %v2316 = vld [vmem:[%s2304 + $0x2c] sm:$0xf]
        %v2317 = vld [vmem:[%s2304 + $0x30] sm:$0xf]
        %v2318 = vld [vmem:[%s2304 + $0x34] sm:$0xf]
        %v2319 = vld [vmem:[%s2304 + $0x38] sm:$0xf]
        %v2320 = vld [vmem:[%s2304 + $0x3c] sm:$0xf]
        %v2337 = vunpack.c.l.b16 %v2305
        %v2338 = vunpack.c.l.b16 %v2306
        %v2339 = vunpack.c.l.b16 %v2307
        %v2340 = vunpack.c.l.b16 %v2308
        %v2341 = vunpack.c.l.b16 %v2309
        %v2342 = vunpack.c.l.b16 %v2310
        %v2343 = vunpack.c.l.b16 %v2311
        %v2344 = vunpack.c.l.b16 %v2312
        %v2345 = vunpack.c.l.b16 %v2313
        %v2346 = vunpack.c.l.b16 %v2314
        %v2347 = vunpack.c.l.b16 %v2315
        %v2348 = vunpack.c.l.b16 %v2316
        %v2349 = vunpack.c.l.b16 %v2317
        %v2350 = vunpack.c.l.b16 %v2318
        %v2351 = vunpack.c.l.b16 %v2319
        %v2352 = vunpack.c.l.b16 %v2320
        %v2353 = vpack.c.b16 %v2338, %v2337
        %v2354 = vpack.c.b16 %v2340, %v2339
        %v2355 = vpack.c.b16 %v2342, %v2341
        %v2356 = vpack.c.b16 %v2344, %v2343
        %v2357 = vpack.c.b16 %v2346, %v2345
        %v2358 = vpack.c.b16 %v2348, %v2347
        %v2359 = vpack.c.b16 %v2350, %v2349
        %v2360 = vpack.c.b16 %v2352, %v2351
        %2369 = vmatprep.subr.bf16.mxu0 0
        %2370 = vmatpush1.bf16.msra.mxu0 %v2353
        %2371 = vmatprep.subr.bf16.mxu0 0
        %2372 = vmatpush1.bf16.msra.mxu0 %v2354
        %2373 = vmatprep.subr.bf16.mxu0 0
        %2374 = vmatpush1.bf16.msra.mxu0 %v2355
        %2375 = vmatprep.subr.bf16.mxu0 0
        %2376 = vmatpush1.bf16.msra.mxu0 %v2356
        %2377 = vmatprep.subr.bf16.mxu0 0
        %2378 = vmatpush1.bf16.msra.mxu0 %v2357
        %2379 = vmatprep.subr.bf16.mxu0 0
        %2380 = vmatpush1.bf16.msra.mxu0 %v2358
        %2381 = vmatprep.subr.bf16.mxu0 0
        %2382 = vmatpush1.bf16.msra.mxu0 %v2359
        %2383 = vmatprep.subr.bf16.mxu0 0
        %2384 = vmatpush1.bf16.msra.mxu0 %v2360
        %2385 = vmatprep.subr.bf16.mxu0 0
        %2386 = vmatpush1.bf16.msra.mxu0 0
        %2387 = vmatprep.subr.bf16.mxu0 0
        %2388 = vmatpush1.bf16.msra.mxu0 0
        %2389 = vmatprep.subr.bf16.mxu0 0
        %2390 = vmatpush1.bf16.msra.mxu0 0
        %2391 = vmatprep.subr.bf16.mxu0 0
        %2392 = vmatpush1.bf16.msra.mxu0 0
        %2393 = vmatprep.subr.bf16.mxu0 0
        %2394 = vmatpush1.bf16.msra.mxu0 0
        %2395 = vmatprep.subr.bf16.mxu0 0
        %2396 = vmatpush1.bf16.msra.mxu0 0
        %2397 = vmatprep.subr.bf16.mxu0 0
        %2398 = vmatpush1.bf16.msra.mxu0 0
        %2399 = vmatprep.subr.bf16.mxu0 0
        %2400 = vmatpush1.bf16.msra.mxu0 0
        %2401 = vmatprep.mubr.bf16.mxu0 0
        %2402 = vmatmul.mubr.bf16.gmra.mrb[0].mxu0 %v2288
        %v2403 = vpop.f32.mrb[0].mxu0
        %v2404 = vadd.f32 0.0, %v2403
        %v2405 = vpop.f32.mrb[0].mxu0
        %v2406 = vpop.f32.mrb[0].mxu0
        %v2407 = vadd.f32 0.0, %v2406
        %v2408 = vpop.f32.mrb[0].mxu0
        %2409 = vmatprep.mubr.bf16.mxu0 0
        %2410 = vmatmul.mubr.bf16.gmra.mrb[0].mxu0 %v2289
        %v2411 = vpop.f32.mrb[0].mxu0
        %v2412 = vadd.f32 0.0, %v2411
        %v2413 = vpop.f32.mrb[0].mxu0
        %v2414 = vpop.f32.mrb[0].mxu0
        %v2415 = vadd.f32 0.0, %v2414
        %v2416 = vpop.f32.mrb[0].mxu0
        %2417 = vmatprep.mubr.bf16.mxu0 0
        %2418 = vmatmul.mubr.bf16.gmra.mrb[0].mxu0 %v2290
        %v2419 = vpop.f32.mrb[0].mxu0
        %v2420 = vadd.f32 0.0, %v2419
        %v2421 = vpop.f32.mrb[0].mxu0
        %v2422 = vpop.f32.mrb[0].mxu0
        %v2423 = vadd.f32 0.0, %v2422
        %v2424 = vpop.f32.mrb[0].mxu0
        %2425 = vmatprep.mubr.bf16.mxu0 0
        %2426 = vmatmul.mubr.bf16.gmra.mrb[0].mxu0 %v2291
        %v2427 = vpop.f32.mrb[0].mxu0
        %v2428 = vadd.f32 0.0, %v2427
        %v2429 = vpop.f32.mrb[0].mxu0
        %v2430 = vpop.f32.mrb[0].mxu0
        %v2431 = vadd.f32 0.0, %v2430
        %v2432 = vpop.f32.mrb[0].mxu0
        %2433 = vmatprep.mubr.bf16.mxu0 0
        %2434 = vmatmul.mubr.bf16.gmra.mrb[0].mxu0 %v2292
        %v2435 = vpop.f32.mrb[0].mxu0
        %v2436 = vadd.f32 0.0, %v2435
        %v2437 = vpop.f32.mrb[0].mxu0
        %v2438 = vpop.f32.mrb[0].mxu0
        %v2439 = vadd.f32 0.0, %v2438
        %v2440 = vpop.f32.mrb[0].mxu0
        %2441 = vmatprep.mubr.bf16.mxu0 0
        %2442 = vmatmul.mubr.bf16.gmra.mrb[0].mxu0 %v2293
        %v2443 = vpop.f32.mrb[0].mxu0
        %v2444 = vadd.f32 0.0, %v2443
        %v2445 = vpop.f32.mrb[0].mxu0
        %v2446 = vpop.f32.mrb[0].mxu0
        %v2447 = vadd.f32 0.0, %v2446
        %v2448 = vpop.f32.mrb[0].mxu0
        %2449 = vmatprep.mubr.bf16.mxu0 0
        %2450 = vmatmul.mubr.bf16.gmra.mrb[0].mxu0 %v2294
        %v2451 = vpop.f32.mrb[0].mxu0
        %v2452 = vadd.f32 0.0, %v2451
        %v2453 = vpop.f32.mrb[0].mxu0
        %v2454 = vpop.f32.mrb[0].mxu0
        %v2455 = vadd.f32 0.0, %v2454
        %v2456 = vpop.f32.mrb[0].mxu0
        %2457 = vmatprep.mubr.bf16.mxu0 0
        %2458 = vmatmul.mubr.bf16.gmra.mrb[0].mxu0 %v2295
        %v2459 = vpop.f32.mrb[0].mxu0
        %v2460 = vadd.f32 0.0, %v2459
        %v2461 = vpop.f32.mrb[0].mxu0
        %v2462 = vpop.f32.mrb[0].mxu0
        %v2463 = vadd.f32 0.0, %v2462
        %v2464 = vpop.f32.mrb[0].mxu0
        %2465 = vmatprep.mubr.bf16.mxu0 0
        %2466 = vmatmul.mubr.bf16.gmra.mrb[0].mxu0 %v2296
        %v2467 = vpop.f32.mrb[0].mxu0
        %v2468 = vadd.f32 0.0, %v2467
        %v2469 = vpop.f32.mrb[0].mxu0
        %v2470 = vpop.f32.mrb[0].mxu0
        %v2471 = vadd.f32 0.0, %v2470
        %v2472 = vpop.f32.mrb[0].mxu0
        %2473 = vmatprep.mubr.bf16.mxu0 0
        %2474 = vmatmul.mubr.bf16.gmra.mrb[0].mxu0 %v2297
        %v2475 = vpop.f32.mrb[0].mxu0
        %v2476 = vadd.f32 0.0, %v2475
        %v2477 = vpop.f32.mrb[0].mxu0
        %v2478 = vpop.f32.mrb[0].mxu0
        %v2479 = vadd.f32 0.0, %v2478
        %v2480 = vpop.f32.mrb[0].mxu0
        %2481 = vmatprep.mubr.bf16.mxu0 0
        %2482 = vmatmul.mubr.bf16.gmra.mrb[0].mxu0 %v2298
        %v2483 = vpop.f32.mrb[0].mxu0
        %v2484 = vadd.f32 0.0, %v2483
        %v2485 = vpop.f32.mrb[0].mxu0
        %v2486 = vpop.f32.mrb[0].mxu0
        %v2487 = vadd.f32 0.0, %v2486
        %v2488 = vpop.f32.mrb[0].mxu0
        %2489 = vmatprep.mubr.bf16.mxu0 0
        %2490 = vmatmul.mubr.bf16.gmra.mrb[0].mxu0 %v2299
        %v2491 = vpop.f32.mrb[0].mxu0
        %v2492 = vadd.f32 0.0, %v2491
        %v2493 = vpop.f32.mrb[0].mxu0
        %v2494 = vpop.f32.mrb[0].mxu0
        %v2495 = vadd.f32 0.0, %v2494
        %v2496 = vpop.f32.mrb[0].mxu0
        %2497 = vmatprep.mubr.bf16.mxu0 0
        %2498 = vmatmul.mubr.bf16.gmra.mrb[0].mxu0 %v2300
        %v2499 = vpop.f32.mrb[0].mxu0
        %v2500 = vadd.f32 0.0, %v2499
        %v2501 = vpop.f32.mrb[0].mxu0
        %v2502 = vpop.f32.mrb[0].mxu0
        %v2503 = vadd.f32 0.0, %v2502
        %v2504 = vpop.f32.mrb[0].mxu0
        %2505 = vmatprep.mubr.bf16.mxu0 0
        %2506 = vmatmul.mubr.bf16.gmra.mrb[0].mxu0 %v2301
        %v2507 = vpop.f32.mrb[0].mxu0
        %v2508 = vadd.f32 0.0, %v2507
        %v2509 = vpop.f32.mrb[0].mxu0
        %v2510 = vpop.f32.mrb[0].mxu0
        %v2511 = vadd.f32 0.0, %v2510
        %v2512 = vpop.f32.mrb[0].mxu0
        %2513 = vmatprep.mubr.bf16.mxu0 0
        %2514 = vmatmul.mubr.bf16.gmra.mrb[0].mxu0 %v2302
        %v2515 = vpop.f32.mrb[0].mxu0
        %v2516 = vadd.f32 0.0, %v2515
        %v2517 = vpop.f32.mrb[0].mxu0
        %v2518 = vpop.f32.mrb[0].mxu0
        %v2519 = vadd.f32 0.0, %v2518
        %v2520 = vpop.f32.mrb[0].mxu0
        %2521 = vmatprep.mubr.bf16.mxu0 0
        %2522 = vmatmul.mubr.bf16.gmra.mrb[0].mxu0 %v2303
        %v2523 = vpop.f32.mrb[0].mxu0
        %v2524 = vadd.f32 0.0, %v2523
        %v2525 = vpop.f32.mrb[0].mxu0
        %v2526 = vpop.f32.mrb[0].mxu0
        %v2527 = vadd.f32 0.0, %v2526
        %v2528 = vpop.f32.mrb[0].mxu0
        %2529 = vdwg.mxu0
        %v2530 = vadd.f32 %v2256, %v2404
        %v2531 = vadd.f32 %v2257, %v2407
        %v2532 = vadd.f32 %v2258, %v2412
        %v2533 = vadd.f32 %v2259, %v2415
        %v2534 = vadd.f32 %v2260, %v2420
        %v2535 = vadd.f32 %v2261, %v2423
        %v2536 = vadd.f32 %v2262, %v2428
        %v2537 = vadd.f32 %v2263, %v2431
        %v2538 = vadd.f32 %v2264, %v2436
        %v2539 = vadd.f32 %v2265, %v2439
        %v2540 = vadd.f32 %v2266, %v2444
        %v2541 = vadd.f32 %v2267, %v2447
        %v2542 = vadd.f32 %v2268, %v2452
        %v2543 = vadd.f32 %v2269, %v2455
        %v2544 = vadd.f32 %v2270, %v2460
        %v2545 = vadd.f32 %v2271, %v2463
        %v2546 = vadd.f32 %v2272, %v2468
        %v2547 = vadd.f32 %v2273, %v2471
        %v2548 = vadd.f32 %v2274, %v2476
        %v2549 = vadd.f32 %v2275, %v2479
        %v2550 = vadd.f32 %v2276, %v2484
        %v2551 = vadd.f32 %v2277, %v2487
        %v2552 = vadd.f32 %v2278, %v2492
        %v2553 = vadd.f32 %v2279, %v2495
        %v2554 = vadd.f32 %v2280, %v2500
        %v2555 = vadd.f32 %v2281, %v2503
        %v2556 = vadd.f32 %v2282, %v2508
        %v2557 = vadd.f32 %v2283, %v2511
        %v2558 = vadd.f32 %v2284, %v2516
        %v2559 = vadd.f32 %v2285, %v2519
        %v2560 = vadd.f32 %v2286, %v2524
        %v2561 = vadd.f32 %v2287, %v2527
        %v2562 = vmul.f32 %v2530, 0.01
        %v2563 = vmul.f32 %v2531, 0.01
        %v2564 = vmul.f32 %v2532, 0.01
        %v2565 = vmul.f32 %v2533, 0.01
        %v2566 = vmul.f32 %v2534, 0.01
        %v2567 = vmul.f32 %v2535, 0.01
        %v2568 = vmul.f32 %v2536, 0.01
        %v2569 = vmul.f32 %v2537, 0.01
        %v2570 = vmul.f32 %v2538, 0.01
        %v2571 = vmul.f32 %v2539, 0.01
        %v2572 = vmul.f32 %v2540, 0.01
        %v2573 = vmul.f32 %v2541, 0.01
        %v2574 = vmul.f32 %v2542, 0.01
        %v2575 = vmul.f32 %v2543, 0.01
        %v2576 = vmul.f32 %v2544, 0.01
        %v2577 = vmul.f32 %v2545, 0.01
        %v2578 = vmul.f32 %v2546, 0.01
        %v2579 = vmul.f32 %v2547, 0.01
        %v2580 = vmul.f32 %v2548, 0.01
        %v2581 = vmul.f32 %v2549, 0.01
        %v2582 = vmul.f32 %v2550, 0.01
        %v2583 = vmul.f32 %v2551, 0.01
        %v2584 = vmul.f32 %v2552, 0.01
        %v2585 = vmul.f32 %v2553, 0.01
        %v2586 = vmul.f32 %v2554, 0.01
        %v2587 = vmul.f32 %v2555, 0.01
        %v2588 = vmul.f32 %v2556, 0.01
        %v2589 = vmul.f32 %v2557, 0.01
        %v2590 = vmul.f32 %v2558, 0.01
        %v2591 = vmul.f32 %v2559, 0.01
        %v2592 = vmul.f32 %v2560, 0.01
        %v2593 = vmul.f32 %v2561, 0.01
        %v2594 = vmax.f32 %v2530, %v2562
        %v2595 = vmax.f32 %v2531, %v2563
        %v2596 = vmax.f32 %v2532, %v2564
        %v2597 = vmax.f32 %v2533, %v2565
        %v2598 = vmax.f32 %v2534, %v2566
        %v2599 = vmax.f32 %v2535, %v2567
        %v2600 = vmax.f32 %v2536, %v2568
        %v2601 = vmax.f32 %v2537, %v2569
        %v2602 = vmax.f32 %v2538, %v2570
        %v2603 = vmax.f32 %v2539, %v2571
        %v2604 = vmax.f32 %v2540, %v2572
        %v2605 = vmax.f32 %v2541, %v2573
        %v2606 = vmax.f32 %v2542, %v2574
        %v2607 = vmax.f32 %v2543, %v2575
        %v2608 = vmax.f32 %v2544, %v2576
        %v2609 = vmax.f32 %v2545, %v2577
        %v2610 = vmax.f32 %v2546, %v2578
        %v2611 = vmax.f32 %v2547, %v2579
        %v2612 = vmax.f32 %v2548, %v2580
        %v2613 = vmax.f32 %v2549, %v2581
        %v2614 = vmax.f32 %v2550, %v2582
        %v2615 = vmax.f32 %v2551, %v2583
        %v2616 = vmax.f32 %v2552, %v2584
        %v2617 = vmax.f32 %v2553, %v2585
        %v2618 = vmax.f32 %v2554, %v2586
        %v2619 = vmax.f32 %v2555, %v2587
        %v2620 = vmax.f32 %v2556, %v2588
        %v2621 = vmax.f32 %v2557, %v2589
        %v2622 = vmax.f32 %v2558, %v2590
        %v2623 = vmax.f32 %v2559, %v2591
        %v2624 = vmax.f32 %v2560, %v2592
        %v2625 = vmax.f32 %v2561, %v2593
        %v2626 = vpack.c.bf16 %v2595, %v2594
        %v2627 = vpack.c.bf16 %v2597, %v2596
        %v2628 = vpack.c.bf16 %v2599, %v2598
        %v2629 = vpack.c.bf16 %v2601, %v2600
        %v2630 = vpack.c.bf16 %v2603, %v2602
        %v2631 = vpack.c.bf16 %v2605, %v2604
        %v2632 = vpack.c.bf16 %v2607, %v2606
        %v2633 = vpack.c.bf16 %v2609, %v2608
        %v2634 = vpack.c.bf16 %v2611, %v2610
        %v2635 = vpack.c.bf16 %v2613, %v2612
        %v2636 = vpack.c.bf16 %v2615, %v2614
        %v2637 = vpack.c.bf16 %v2617, %v2616
        %v2638 = vpack.c.bf16 %v2619, %v2618
        %v2639 = vpack.c.bf16 %v2621, %v2620
        %v2640 = vpack.c.bf16 %v2623, %v2622
        %v2641 = vpack.c.bf16 %v2625, %v2624
        %s2642 = scalar_lea.vmem [#allocation6], 64
        %v2643 = vld [vmem:[%s2642] sm:$0xf]
        %v2644 = vld [vmem:[%s2642 + $0x4] sm:$0xf]
        %v2645 = vld [vmem:[%s2642 + $0x8] sm:$0xf]
        %v2646 = vld [vmem:[%s2642 + $0xc] sm:$0xf]
        %v2647 = vld [vmem:[%s2642 + $0x10] sm:$0xf]
        %v2648 = vld [vmem:[%s2642 + $0x14] sm:$0xf]
        %v2649 = vld [vmem:[%s2642 + $0x18] sm:$0xf]
        %v2650 = vld [vmem:[%s2642 + $0x1c] sm:$0xf]
        %v2651 = vld [vmem:[%s2642 + $0x20] sm:$0xf]
        %v2652 = vld [vmem:[%s2642 + $0x24] sm:$0xf]
        %v2653 = vld [vmem:[%s2642 + $0x28] sm:$0xf]
        %v2654 = vld [vmem:[%s2642 + $0x2c] sm:$0xf]
        %v2655 = vld [vmem:[%s2642 + $0x30] sm:$0xf]
        %v2656 = vld [vmem:[%s2642 + $0x34] sm:$0xf]
        %v2657 = vld [vmem:[%s2642 + $0x38] sm:$0xf]
        %v2658 = vld [vmem:[%s2642 + $0x3c] sm:$0xf]
        %s2659 = scalar_lea.vmem [#allocation8], 1
        %v2660 = vld [vmem:[%s2659] sm:$0x1]
        %v2662 = vlaneseq
        %v2663 = vshrl.u32 %v2662, 7
        %v2664 = vsub.s32 0, %v2663
        %v2665 = vrot.slane %v2660, %v2664
        %v2683 = vunpack.c.l.b16 %v2643
        %v2684 = vunpack.c.l.b16 %v2644
        %v2685 = vunpack.c.l.b16 %v2645
        %v2686 = vunpack.c.l.b16 %v2646
        %v2687 = vunpack.c.l.b16 %v2647
        %v2688 = vunpack.c.l.b16 %v2648
        %v2689 = vunpack.c.l.b16 %v2649
        %v2690 = vunpack.c.l.b16 %v2650
        %v2691 = vunpack.c.l.b16 %v2651
        %v2692 = vunpack.c.l.b16 %v2652
        %v2693 = vunpack.c.l.b16 %v2653
        %v2694 = vunpack.c.l.b16 %v2654
        %v2695 = vunpack.c.l.b16 %v2655
        %v2696 = vunpack.c.l.b16 %v2656
        %v2697 = vunpack.c.l.b16 %v2657
        %v2698 = vunpack.c.l.b16 %v2658
        %v2699 = vpack.c.b16 %v2684, %v2683
        %v2700 = vpack.c.b16 %v2686, %v2685
        %v2701 = vpack.c.b16 %v2688, %v2687
        %v2702 = vpack.c.b16 %v2690, %v2689
        %v2703 = vpack.c.b16 %v2692, %v2691
        %v2704 = vpack.c.b16 %v2694, %v2693
        %v2705 = vpack.c.b16 %v2696, %v2695
        %v2706 = vpack.c.b16 %v2698, %v2697
        %2715 = vmatprep.subr.bf16.mxu0 0
        %2716 = vmatpush1.bf16.msra.mxu0 %v2699
        %2717 = vmatprep.subr.bf16.mxu0 0
        %2718 = vmatpush1.bf16.msra.mxu0 %v2700
        %2719 = vmatprep.subr.bf16.mxu0 0
        %2720 = vmatpush1.bf16.msra.mxu0 %v2701
        %2721 = vmatprep.subr.bf16.mxu0 0
        %2722 = vmatpush1.bf16.msra.mxu0 %v2702
        %2723 = vmatprep.subr.bf16.mxu0 0
        %2724 = vmatpush1.bf16.msra.mxu0 %v2703
        %2725 = vmatprep.subr.bf16.mxu0 0
        %2726 = vmatpush1.bf16.msra.mxu0 %v2704
        %2727 = vmatprep.subr.bf16.mxu0 0
        %2728 = vmatpush1.bf16.msra.mxu0 %v2705
        %2729 = vmatprep.subr.bf16.mxu0 0
        %2730 = vmatpush1.bf16.msra.mxu0 %v2706
        %2731 = vmatprep.subr.bf16.mxu0 0
        %2732 = vmatpush1.bf16.msra.mxu0 0
        %2733 = vmatprep.subr.bf16.mxu0 0
        %2734 = vmatpush1.bf16.msra.mxu0 0
        %2735 = vmatprep.subr.bf16.mxu0 0
        %2736 = vmatpush1.bf16.msra.mxu0 0
        %2737 = vmatprep.subr.bf16.mxu0 0
        %2738 = vmatpush1.bf16.msra.mxu0 0
        %2739 = vmatprep.subr.bf16.mxu0 0
        %2740 = vmatpush1.bf16.msra.mxu0 0
        %2741 = vmatprep.subr.bf16.mxu0 0
        %2742 = vmatpush1.bf16.msra.mxu0 0
        %2743 = vmatprep.subr.bf16.mxu0 0
        %2744 = vmatpush1.bf16.msra.mxu0 0
        %2745 = vmatprep.subr.bf16.mxu0 0
        %2746 = vmatpush1.bf16.msra.mxu0 0
        %2747 = vmatprep.mubr.bf16.mxu0 0
        %2748 = vmatmul.mubr.bf16.gmra.mrb[0].mxu0 %v2626
        %v2749 = vpop.f32.mrb[0].mxu0
        %v2750 = vadd.f32 %v2665, %v2749
        %v2751 = vpop.f32.mrb[0].mxu0
        %v2752 = vpop.f32.mrb[0].mxu0
        %v2753 = vadd.f32 %v2665, %v2752
        %v2754 = vpop.f32.mrb[0].mxu0
        %2755 = vmatprep.mubr.bf16.mxu0 0
        %2756 = vmatmul.mubr.bf16.gmra.mrb[0].mxu0 %v2627
        %v2757 = vpop.f32.mrb[0].mxu0
        %v2758 = vadd.f32 %v2665, %v2757
        %v2759 = vpop.f32.mrb[0].mxu0
        %v2760 = vpop.f32.mrb[0].mxu0
        %v2761 = vadd.f32 %v2665, %v2760
        %v2762 = vpop.f32.mrb[0].mxu0
        %2763 = vmatprep.mubr.bf16.mxu0 0
        %2764 = vmatmul.mubr.bf16.gmra.mrb[0].mxu0 %v2628
        %v2765 = vpop.f32.mrb[0].mxu0
        %v2766 = vadd.f32 %v2665, %v2765
        %v2767 = vpop.f32.mrb[0].mxu0
        %v2768 = vpop.f32.mrb[0].mxu0
        %v2769 = vadd.f32 %v2665, %v2768
        %v2770 = vpop.f32.mrb[0].mxu0
        %2771 = vmatprep.mubr.bf16.mxu0 0
        %2772 = vmatmul.mubr.bf16.gmra.mrb[0].mxu0 %v2629
        %v2773 = vpop.f32.mrb[0].mxu0
        %v2774 = vadd.f32 %v2665, %v2773
        %v2775 = vpop.f32.mrb[0].mxu0
        %v2776 = vpop.f32.mrb[0].mxu0
        %v2777 = vadd.f32 %v2665, %v2776
        %v2778 = vpop.f32.mrb[0].mxu0
        %2779 = vmatprep.mubr.bf16.mxu0 0
        %2780 = vmatmul.mubr.bf16.gmra.mrb[0].mxu0 %v2630
        %v2781 = vpop.f32.mrb[0].mxu0
        %v2782 = vadd.f32 %v2665, %v2781
        %v2783 = vpop.f32.mrb[0].mxu0
        %v2784 = vpop.f32.mrb[0].mxu0
        %v2785 = vadd.f32 %v2665, %v2784
        %v2786 = vpop.f32.mrb[0].mxu0
        %2787 = vmatprep.mubr.bf16.mxu0 0
        %2788 = vmatmul.mubr.bf16.gmra.mrb[0].mxu0 %v2631
        %v2789 = vpop.f32.mrb[0].mxu0
        %v2790 = vadd.f32 %v2665, %v2789
        %v2791 = vpop.f32.mrb[0].mxu0
        %v2792 = vpop.f32.mrb[0].mxu0
        %v2793 = vadd.f32 %v2665, %v2792
        %v2794 = vpop.f32.mrb[0].mxu0
        %2795 = vmatprep.mubr.bf16.mxu0 0
        %2796 = vmatmul.mubr.bf16.gmra.mrb[0].mxu0 %v2632
        %v2797 = vpop.f32.mrb[0].mxu0
        %v2798 = vadd.f32 %v2665, %v2797
        %v2799 = vpop.f32.mrb[0].mxu0
        %v2800 = vpop.f32.mrb[0].mxu0
        %v2801 = vadd.f32 %v2665, %v2800
        %v2802 = vpop.f32.mrb[0].mxu0
        %2803 = vmatprep.mubr.bf16.mxu0 0
        %2804 = vmatmul.mubr.bf16.gmra.mrb[0].mxu0 %v2633
        %v2805 = vpop.f32.mrb[0].mxu0
        %v2806 = vadd.f32 %v2665, %v2805
        %v2807 = vpop.f32.mrb[0].mxu0
        %v2808 = vpop.f32.mrb[0].mxu0
        %v2809 = vadd.f32 %v2665, %v2808
        %v2810 = vpop.f32.mrb[0].mxu0
        %2811 = vmatprep.mubr.bf16.mxu0 0
        %2812 = vmatmul.mubr.bf16.gmra.mrb[0].mxu0 %v2634
        %v2813 = vpop.f32.mrb[0].mxu0
        %v2814 = vadd.f32 %v2665, %v2813
        %v2815 = vpop.f32.mrb[0].mxu0
        %v2816 = vpop.f32.mrb[0].mxu0
        %v2817 = vadd.f32 %v2665, %v2816
        %v2818 = vpop.f32.mrb[0].mxu0
        %2819 = vmatprep.mubr.bf16.mxu0 0
        %2820 = vmatmul.mubr.bf16.gmra.mrb[0].mxu0 %v2635
        %v2821 = vpop.f32.mrb[0].mxu0
        %v2822 = vadd.f32 %v2665, %v2821
        %v2823 = vpop.f32.mrb[0].mxu0
        %v2824 = vpop.f32.mrb[0].mxu0
        %v2825 = vadd.f32 %v2665, %v2824
        %v2826 = vpop.f32.mrb[0].mxu0
        %2827 = vmatprep.mubr.bf16.mxu0 0
        %2828 = vmatmul.mubr.bf16.gmra.mrb[0].mxu0 %v2636
        %v2829 = vpop.f32.mrb[0].mxu0
        %v2830 = vadd.f32 %v2665, %v2829
        %v2831 = vpop.f32.mrb[0].mxu0
        %v2832 = vpop.f32.mrb[0].mxu0
        %v2833 = vadd.f32 %v2665, %v2832
        %v2834 = vpop.f32.mrb[0].mxu0
        %2835 = vmatprep.mubr.bf16.mxu0 0
        %2836 = vmatmul.mubr.bf16.gmra.mrb[0].mxu0 %v2637
        %v2837 = vpop.f32.mrb[0].mxu0
        %v2838 = vadd.f32 %v2665, %v2837
        %v2839 = vpop.f32.mrb[0].mxu0
        %v2840 = vpop.f32.mrb[0].mxu0
        %v2841 = vadd.f32 %v2665, %v2840
        %v2842 = vpop.f32.mrb[0].mxu0
        %2843 = vmatprep.mubr.bf16.mxu0 0
        %2844 = vmatmul.mubr.bf16.gmra.mrb[0].mxu0 %v2638
        %v2845 = vpop.f32.mrb[0].mxu0
        %v2846 = vadd.f32 %v2665, %v2845
        %v2847 = vpop.f32.mrb[0].mxu0
        %v2848 = vpop.f32.mrb[0].mxu0
        %v2849 = vadd.f32 %v2665, %v2848
        %v2850 = vpop.f32.mrb[0].mxu0
        %2851 = vmatprep.mubr.bf16.mxu0 0
        %2852 = vmatmul.mubr.bf16.gmra.mrb[0].mxu0 %v2639
        %v2853 = vpop.f32.mrb[0].mxu0
        %v2854 = vadd.f32 %v2665, %v2853
        %v2855 = vpop.f32.mrb[0].mxu0
        %v2856 = vpop.f32.mrb[0].mxu0
        %v2857 = vadd.f32 %v2665, %v2856
        %v2858 = vpop.f32.mrb[0].mxu0
        %2859 = vmatprep.mubr.bf16.mxu0 0
        %2860 = vmatmul.mubr.bf16.gmra.mrb[0].mxu0 %v2640
        %v2861 = vpop.f32.mrb[0].mxu0
        %v2862 = vadd.f32 %v2665, %v2861
        %v2863 = vpop.f32.mrb[0].mxu0
        %v2864 = vpop.f32.mrb[0].mxu0
        %v2865 = vadd.f32 %v2665, %v2864
        %v2866 = vpop.f32.mrb[0].mxu0
        %2867 = vmatprep.mubr.bf16.mxu0 0
        %2868 = vmatmul.mubr.bf16.gmra.mrb[0].mxu0 %v2641
        %v2869 = vpop.f32.mrb[0].mxu0
        %v2870 = vadd.f32 %v2665, %v2869
        %v2871 = vpop.f32.mrb[0].mxu0
        %v2872 = vpop.f32.mrb[0].mxu0
        %v2873 = vadd.f32 %v2665, %v2872
        %v2874 = vpop.f32.mrb[0].mxu0
        %2875 = vdwg.mxu0
        %2876 = vadd.xlane.f32.xlu0 %v2750
        %v2877 = vpop.xlane.xlu0 %2876
        %2878 = vadd.xlane.f32.xlu0 %v2753
        %v2879 = vpop.xlane.xlu0 %2878
        %2880 = vadd.xlane.f32.xlu0 %v2758
        %v2881 = vpop.xlane.xlu0 %2880
        %2882 = vadd.xlane.f32.xlu0 %v2761
        %v2883 = vpop.xlane.xlu0 %2882
        %2884 = vadd.xlane.f32.xlu0 %v2766
        %v2885 = vpop.xlane.xlu0 %2884
        %2886 = vadd.xlane.f32.xlu0 %v2769
        %v2887 = vpop.xlane.xlu0 %2886
        %2888 = vadd.xlane.f32.xlu0 %v2774
        %v2889 = vpop.xlane.xlu0 %2888
        %2890 = vadd.xlane.f32.xlu0 %v2777
        %v2891 = vpop.xlane.xlu0 %2890
        %2892 = vadd.xlane.f32.xlu0 %v2782
        %v2893 = vpop.xlane.xlu0 %2892
        %2894 = vadd.xlane.f32.xlu0 %v2785
        %v2895 = vpop.xlane.xlu0 %2894
        %2896 = vadd.xlane.f32.xlu0 %v2790
        %v2897 = vpop.xlane.xlu0 %2896
        %2898 = vadd.xlane.f32.xlu0 %v2793
        %v2899 = vpop.xlane.xlu0 %2898
        %2900 = vadd.xlane.f32.xlu0 %v2798
        %v2901 = vpop.xlane.xlu0 %2900
        %2902 = vadd.xlane.f32.xlu0 %v2801
        %v2903 = vpop.xlane.xlu0 %2902
        %2904 = vadd.xlane.f32.xlu0 %v2806
        %v2905 = vpop.xlane.xlu0 %2904
        %2906 = vadd.xlane.f32.xlu0 %v2809
        %v2907 = vpop.xlane.xlu0 %2906
        %2908 = vadd.xlane.f32.xlu0 %v2814
        %v2909 = vpop.xlane.xlu0 %2908
        %2910 = vadd.xlane.f32.xlu0 %v2817
        %v2911 = vpop.xlane.xlu0 %2910
        %2912 = vadd.xlane.f32.xlu0 %v2822
        %v2913 = vpop.xlane.xlu0 %2912
        %2914 = vadd.xlane.f32.xlu0 %v2825
        %v2915 = vpop.xlane.xlu0 %2914
        %2916 = vadd.xlane.f32.xlu0 %v2830
        %v2917 = vpop.xlane.xlu0 %2916
        %2918 = vadd.xlane.f32.xlu0 %v2833
        %v2919 = vpop.xlane.xlu0 %2918
        %2920 = vadd.xlane.f32.xlu0 %v2838
        %v2921 = vpop.xlane.xlu0 %2920
        %2922 = vadd.xlane.f32.xlu0 %v2841
        %v2923 = vpop.xlane.xlu0 %2922
        %2924 = vadd.xlane.f32.xlu0 %v2846
        %v2925 = vpop.xlane.xlu0 %2924
        %2926 = vadd.xlane.f32.xlu0 %v2849
        %v2927 = vpop.xlane.xlu0 %2926
        %2928 = vadd.xlane.f32.xlu0 %v2854
        %v2929 = vpop.xlane.xlu0 %2928
        %2930 = vadd.xlane.f32.xlu0 %v2857
        %v2931 = vpop.xlane.xlu0 %2930
        %2932 = vadd.xlane.f32.xlu0 %v2862
        %v2933 = vpop.xlane.xlu0 %2932
        %2934 = vadd.xlane.f32.xlu0 %v2865
        %v2935 = vpop.xlane.xlu0 %2934
        %2936 = vadd.xlane.f32.xlu0 %v2870
        %v2937 = vpop.xlane.xlu0 %2936
        %2938 = vadd.xlane.f32.xlu0 %v2873
        %v2939 = vpop.xlane.xlu0 %2938
        %v2940 = vmul.f32 %v2877, %v1889
        %v2941 = vmul.f32 %v2879, %v1889
        %v2942 = vmul.f32 %v2881, %v1889
        %v2943 = vmul.f32 %v2883, %v1889
        %v2944 = vmul.f32 %v2885, %v1889
        %v2945 = vmul.f32 %v2887, %v1889
        %v2946 = vmul.f32 %v2889, %v1889
        %v2947 = vmul.f32 %v2891, %v1889
        %v2948 = vmul.f32 %v2893, %v1889
        %v2949 = vmul.f32 %v2895, %v1889
        %v2950 = vmul.f32 %v2897, %v1889
        %v2951 = vmul.f32 %v2899, %v1889
        %v2952 = vmul.f32 %v2901, %v1889
        %v2953 = vmul.f32 %v2903, %v1889
        %v2954 = vmul.f32 %v2905, %v1889
        %v2955 = vmul.f32 %v2907, %v1889
        %v2956 = vmul.f32 %v2909, %v1889
        %v2957 = vmul.f32 %v2911, %v1889
        %v2958 = vmul.f32 %v2913, %v1889
        %v2959 = vmul.f32 %v2915, %v1889
        %v2960 = vmul.f32 %v2917, %v1889
        %v2961 = vmul.f32 %v2919, %v1889
        %v2962 = vmul.f32 %v2921, %v1889
        %v2963 = vmul.f32 %v2923, %v1889
        %v2964 = vmul.f32 %v2925, %v1889
        %v2965 = vmul.f32 %v2927, %v1889
        %v2966 = vmul.f32 %v2929, %v1889
        %v2967 = vmul.f32 %v2931, %v1889
        %v2968 = vmul.f32 %v2933, %v1889
        %v2969 = vmul.f32 %v2935, %v1889
        %v2970 = vmul.f32 %v2937, %v1889
        %v2971 = vmul.f32 %v2939, %v1889
        %v2972 = vsub.f32 %v2750, %v2940
        %v2973 = vsub.f32 %v2753, %v2941
        %v2974 = vsub.f32 %v2758, %v2942
        %v2975 = vsub.f32 %v2761, %v2943
        %v2976 = vsub.f32 %v2766, %v2944
        %v2977 = vsub.f32 %v2769, %v2945
        %v2978 = vsub.f32 %v2774, %v2946
        %v2979 = vsub.f32 %v2777, %v2947
        %v2980 = vsub.f32 %v2782, %v2948
        %v2981 = vsub.f32 %v2785, %v2949
        %v2982 = vsub.f32 %v2790, %v2950
        %v2983 = vsub.f32 %v2793, %v2951
        %v2984 = vsub.f32 %v2798, %v2952
        %v2985 = vsub.f32 %v2801, %v2953
        %v2986 = vsub.f32 %v2806, %v2954
        %v2987 = vsub.f32 %v2809, %v2955
        %v2988 = vsub.f32 %v2814, %v2956
        %v2989 = vsub.f32 %v2817, %v2957
        %v2990 = vsub.f32 %v2822, %v2958
        %v2991 = vsub.f32 %v2825, %v2959
        %v2992 = vsub.f32 %v2830, %v2960
        %v2993 = vsub.f32 %v2833, %v2961
        %v2994 = vsub.f32 %v2838, %v2962
        %v2995 = vsub.f32 %v2841, %v2963
        %v2996 = vsub.f32 %v2846, %v2964
        %v2997 = vsub.f32 %v2849, %v2965
        %v2998 = vsub.f32 %v2854, %v2966
        %v2999 = vsub.f32 %v2857, %v2967
        %v3000 = vsub.f32 %v2862, %v2968
        %v3001 = vsub.f32 %v2865, %v2969
        %v3002 = vsub.f32 %v2870, %v2970
        %v3003 = vsub.f32 %v2873, %v2971
        %v3004 = vmul.f32 %v2972, %v2972
        %v3005 = vmul.f32 %v2973, %v2973
        %v3006 = vmul.f32 %v2974, %v2974
        %v3007 = vmul.f32 %v2975, %v2975
        %v3008 = vmul.f32 %v2976, %v2976
        %v3009 = vmul.f32 %v2977, %v2977
        %v3010 = vmul.f32 %v2978, %v2978
        %v3011 = vmul.f32 %v2979, %v2979
        %v3012 = vmul.f32 %v2980, %v2980
        %v3013 = vmul.f32 %v2981, %v2981
        %v3014 = vmul.f32 %v2982, %v2982
        %v3015 = vmul.f32 %v2983, %v2983
        %v3016 = vmul.f32 %v2984, %v2984
        %v3017 = vmul.f32 %v2985, %v2985
        %v3018 = vmul.f32 %v2986, %v2986
        %v3019 = vmul.f32 %v2987, %v2987
        %v3020 = vmul.f32 %v2988, %v2988
        %v3021 = vmul.f32 %v2989, %v2989
        %v3022 = vmul.f32 %v2990, %v2990
        %v3023 = vmul.f32 %v2991, %v2991
        %v3024 = vmul.f32 %v2992, %v2992
        %v3025 = vmul.f32 %v2993, %v2993
        %v3026 = vmul.f32 %v2994, %v2994
        %v3027 = vmul.f32 %v2995, %v2995
        %v3028 = vmul.f32 %v2996, %v2996
        %v3029 = vmul.f32 %v2997, %v2997
        %v3030 = vmul.f32 %v2998, %v2998
        %v3031 = vmul.f32 %v2999, %v2999
        %v3032 = vmul.f32 %v3000, %v3000
        %v3033 = vmul.f32 %v3001, %v3001
        %v3034 = vmul.f32 %v3002, %v3002
        %v3035 = vmul.f32 %v3003, %v3003
        %3036 = vadd.xlane.f32.xlu0 %v3004
        %v3037 = vpop.xlane.xlu0 %3036
        %3038 = vadd.xlane.f32.xlu0 %v3005
        %v3039 = vpop.xlane.xlu0 %3038
        %3040 = vadd.xlane.f32.xlu0 %v3006
        %v3041 = vpop.xlane.xlu0 %3040
        %3042 = vadd.xlane.f32.xlu0 %v3007
        %v3043 = vpop.xlane.xlu0 %3042
        %3044 = vadd.xlane.f32.xlu0 %v3008
        %v3045 = vpop.xlane.xlu0 %3044
        %3046 = vadd.xlane.f32.xlu0 %v3009
        %v3047 = vpop.xlane.xlu0 %3046
        %3048 = vadd.xlane.f32.xlu0 %v3010
        %v3049 = vpop.xlane.xlu0 %3048
        %3050 = vadd.xlane.f32.xlu0 %v3011
        %v3051 = vpop.xlane.xlu0 %3050
        %3052 = vadd.xlane.f32.xlu0 %v3012
        %v3053 = vpop.xlane.xlu0 %3052
        %3054 = vadd.xlane.f32.xlu0 %v3013
        %v3055 = vpop.xlane.xlu0 %3054
        %3056 = vadd.xlane.f32.xlu0 %v3014
        %v3057 = vpop.xlane.xlu0 %3056
        %3058 = vadd.xlane.f32.xlu0 %v3015
        %v3059 = vpop.xlane.xlu0 %3058
        %3060 = vadd.xlane.f32.xlu0 %v3016
        %v3061 = vpop.xlane.xlu0 %3060
        %3062 = vadd.xlane.f32.xlu0 %v3017
        %v3063 = vpop.xlane.xlu0 %3062
        %3064 = vadd.xlane.f32.xlu0 %v3018
        %v3065 = vpop.xlane.xlu0 %3064
        %3066 = vadd.xlane.f32.xlu0 %v3019
        %v3067 = vpop.xlane.xlu0 %3066
        %3068 = vadd.xlane.f32.xlu0 %v3020
        %v3069 = vpop.xlane.xlu0 %3068
        %3070 = vadd.xlane.f32.xlu0 %v3021
        %v3071 = vpop.xlane.xlu0 %3070
        %3072 = vadd.xlane.f32.xlu0 %v3022
        %v3073 = vpop.xlane.xlu0 %3072
        %3074 = vadd.xlane.f32.xlu0 %v3023
        %v3075 = vpop.xlane.xlu0 %3074
        %3076 = vadd.xlane.f32.xlu0 %v3024
        %v3077 = vpop.xlane.xlu0 %3076
        %3078 = vadd.xlane.f32.xlu0 %v3025
        %v3079 = vpop.xlane.xlu0 %3078
        %3080 = vadd.xlane.f32.xlu0 %v3026
        %v3081 = vpop.xlane.xlu0 %3080
        %3082 = vadd.xlane.f32.xlu0 %v3027
        %v3083 = vpop.xlane.xlu0 %3082
        %3084 = vadd.xlane.f32.xlu0 %v3028
        %v3085 = vpop.xlane.xlu0 %3084
        %3086 = vadd.xlane.f32.xlu0 %v3029
        %v3087 = vpop.xlane.xlu0 %3086
        %3088 = vadd.xlane.f32.xlu0 %v3030
        %v3089 = vpop.xlane.xlu0 %3088
        %3090 = vadd.xlane.f32.xlu0 %v3031
        %v3091 = vpop.xlane.xlu0 %3090
        %3092 = vadd.xlane.f32.xlu0 %v3032
        %v3093 = vpop.xlane.xlu0 %3092
        %3094 = vadd.xlane.f32.xlu0 %v3033
        %v3095 = vpop.xlane.xlu0 %3094
        %3096 = vadd.xlane.f32.xlu0 %v3034
        %v3097 = vpop.xlane.xlu0 %3096
        %3098 = vadd.xlane.f32.xlu0 %v3035
        %v3099 = vpop.xlane.xlu0 %3098
        %v3100 = vmul.f32 %v3037, %v1889
        %v3101 = vmul.f32 %v3039, %v1889
        %v3102 = vmul.f32 %v3041, %v1889
        %v3103 = vmul.f32 %v3043, %v1889
        %v3104 = vmul.f32 %v3045, %v1889
        %v3105 = vmul.f32 %v3047, %v1889
        %v3106 = vmul.f32 %v3049, %v1889
        %v3107 = vmul.f32 %v3051, %v1889
        %v3108 = vmul.f32 %v3053, %v1889
        %v3109 = vmul.f32 %v3055, %v1889
        %v3110 = vmul.f32 %v3057, %v1889
        %v3111 = vmul.f32 %v3059, %v1889
        %v3112 = vmul.f32 %v3061, %v1889
        %v3113 = vmul.f32 %v3063, %v1889
        %v3114 = vmul.f32 %v3065, %v1889
        %v3115 = vmul.f32 %v3067, %v1889
        %v3116 = vmul.f32 %v3069, %v1889
        %v3117 = vmul.f32 %v3071, %v1889
        %v3118 = vmul.f32 %v3073, %v1889
        %v3119 = vmul.f32 %v3075, %v1889
        %v3120 = vmul.f32 %v3077, %v1889
        %v3121 = vmul.f32 %v3079, %v1889
        %v3122 = vmul.f32 %v3081, %v1889
        %v3123 = vmul.f32 %v3083, %v1889
        %v3124 = vmul.f32 %v3085, %v1889
        %v3125 = vmul.f32 %v3087, %v1889
        %v3126 = vmul.f32 %v3089, %v1889
        %v3127 = vmul.f32 %v3091, %v1889
        %v3128 = vmul.f32 %v3093, %v1889
        %v3129 = vmul.f32 %v3095, %v1889
        %v3130 = vmul.f32 %v3097, %v1889
        %v3131 = vmul.f32 %v3099, %v1889
        %v3132 = vadd.f32 %v3100, 1e-05
        %v3133 = vadd.f32 %v3101, 1e-05
        %v3134 = vadd.f32 %v3102, 1e-05
        %v3135 = vadd.f32 %v3103, 1e-05
        %v3136 = vadd.f32 %v3104, 1e-05
        %v3137 = vadd.f32 %v3105, 1e-05
        %v3138 = vadd.f32 %v3106, 1e-05
        %v3139 = vadd.f32 %v3107, 1e-05
        %v3140 = vadd.f32 %v3108, 1e-05
        %v3141 = vadd.f32 %v3109, 1e-05
        %v3142 = vadd.f32 %v3110, 1e-05
        %v3143 = vadd.f32 %v3111, 1e-05
        %v3144 = vadd.f32 %v3112, 1e-05
        %v3145 = vadd.f32 %v3113, 1e-05
        %v3146 = vadd.f32 %v3114, 1e-05
        %v3147 = vadd.f32 %v3115, 1e-05
        %v3148 = vadd.f32 %v3116, 1e-05
        %v3149 = vadd.f32 %v3117, 1e-05
        %v3150 = vadd.f32 %v3118, 1e-05
        %v3151 = vadd.f32 %v3119, 1e-05
        %v3152 = vadd.f32 %v3120, 1e-05
        %v3153 = vadd.f32 %v3121, 1e-05
        %v3154 = vadd.f32 %v3122, 1e-05
        %v3155 = vadd.f32 %v3123, 1e-05
        %v3156 = vadd.f32 %v3124, 1e-05
        %v3157 = vadd.f32 %v3125, 1e-05
        %v3158 = vadd.f32 %v3126, 1e-05
        %v3159 = vadd.f32 %v3127, 1e-05
        %v3160 = vadd.f32 %v3128, 1e-05
        %v3161 = vadd.f32 %v3129, 1e-05
        %v3162 = vadd.f32 %v3130, 1e-05
        %v3163 = vadd.f32 %v3131, 1e-05
        %v3164 = vrsqrt.pop %v3132
        %v3165 = vrsqrt.pop %v3133
        %v3166 = vrsqrt.pop %v3134
        %v3167 = vrsqrt.pop %v3135
        %v3168 = vrsqrt.pop %v3136
        %v3169 = vrsqrt.pop %v3137
        %v3170 = vrsqrt.pop %v3138
        %v3171 = vrsqrt.pop %v3139
        %v3172 = vrsqrt.pop %v3140
        %v3173 = vrsqrt.pop %v3141
        %v3174 = vrsqrt.pop %v3142
        %v3175 = vrsqrt.pop %v3143
        %v3176 = vrsqrt.pop %v3144
        %v3177 = vrsqrt.pop %v3145
        %v3178 = vrsqrt.pop %v3146
        %v3179 = vrsqrt.pop %v3147
        %v3180 = vrsqrt.pop %v3148
        %v3181 = vrsqrt.pop %v3149
        %v3182 = vrsqrt.pop %v3150
        %v3183 = vrsqrt.pop %v3151
        %v3184 = vrsqrt.pop %v3152
        %v3185 = vrsqrt.pop %v3153
        %v3186 = vrsqrt.pop %v3154
        %v3187 = vrsqrt.pop %v3155
        %v3188 = vrsqrt.pop %v3156
        %v3189 = vrsqrt.pop %v3157
        %v3190 = vrsqrt.pop %v3158
        %v3191 = vrsqrt.pop %v3159
        %v3192 = vrsqrt.pop %v3160
        %v3193 = vrsqrt.pop %v3161
        %v3194 = vrsqrt.pop %v3162
        %v3195 = vrsqrt.pop %v3163
        %v3196 = vmul.f32 %v2972, %v3164
        %v3197 = vmul.f32 %v2973, %v3165
        %v3198 = vmul.f32 %v2974, %v3166
        %v3199 = vmul.f32 %v2975, %v3167
        %v3200 = vmul.f32 %v2976, %v3168
        %v3201 = vmul.f32 %v2977, %v3169
        %v3202 = vmul.f32 %v2978, %v3170
        %v3203 = vmul.f32 %v2979, %v3171
        %v3204 = vmul.f32 %v2980, %v3172
        %v3205 = vmul.f32 %v2981, %v3173
        %v3206 = vmul.f32 %v2982, %v3174
        %v3207 = vmul.f32 %v2983, %v3175
        %v3208 = vmul.f32 %v2984, %v3176
        %v3209 = vmul.f32 %v2985, %v3177
        %v3210 = vmul.f32 %v2986, %v3178
        %v3211 = vmul.f32 %v2987, %v3179
        %v3212 = vmul.f32 %v2988, %v3180
        %v3213 = vmul.f32 %v2989, %v3181
        %v3214 = vmul.f32 %v2990, %v3182
        %v3215 = vmul.f32 %v2991, %v3183
        %v3216 = vmul.f32 %v2992, %v3184
        %v3217 = vmul.f32 %v2993, %v3185
        %v3218 = vmul.f32 %v2994, %v3186
        %v3219 = vmul.f32 %v2995, %v3187
        %v3220 = vmul.f32 %v2996, %v3188
        %v3221 = vmul.f32 %v2997, %v3189
        %v3222 = vmul.f32 %v2998, %v3190
        %v3223 = vmul.f32 %v2999, %v3191
        %v3224 = vmul.f32 %v3000, %v3192
        %v3225 = vmul.f32 %v3001, %v3193
        %v3226 = vmul.f32 %v3002, %v3194
        %v3227 = vmul.f32 %v3003, %v3195
        %s3228 = scalar_lea.vmem %s6, 1
        %v3229 = vld [vmem:[%s3228] sm:$0x1]
        %v3231 = vlaneseq
        %v3232 = vshrl.u32 %v3231, 7
        %v3233 = vsub.s32 0, %v3232
        %v3234 = vrot.slane %v3229, %v3233
        %v3236 = vmul.f32 %v3196, %v3234
        %v3237 = vmul.f32 %v3197, %v3234
        %v3238 = vmul.f32 %v3198, %v3234
        %v3239 = vmul.f32 %v3199, %v3234
        %v3240 = vmul.f32 %v3200, %v3234
        %v3241 = vmul.f32 %v3201, %v3234
        %v3242 = vmul.f32 %v3202, %v3234
        %v3243 = vmul.f32 %v3203, %v3234
        %v3244 = vmul.f32 %v3204, %v3234
        %v3245 = vmul.f32 %v3205, %v3234
        %v3246 = vmul.f32 %v3206, %v3234
        %v3247 = vmul.f32 %v3207, %v3234
        %v3248 = vmul.f32 %v3208, %v3234
        %v3249 = vmul.f32 %v3209, %v3234
        %v3250 = vmul.f32 %v3210, %v3234
        %v3251 = vmul.f32 %v3211, %v3234
        %v3252 = vmul.f32 %v3212, %v3234
        %v3253 = vmul.f32 %v3213, %v3234
        %v3254 = vmul.f32 %v3214, %v3234
        %v3255 = vmul.f32 %v3215, %v3234
        %v3256 = vmul.f32 %v3216, %v3234
        %v3257 = vmul.f32 %v3217, %v3234
        %v3258 = vmul.f32 %v3218, %v3234
        %v3259 = vmul.f32 %v3219, %v3234
        %v3260 = vmul.f32 %v3220, %v3234
        %v3261 = vmul.f32 %v3221, %v3234
        %v3262 = vmul.f32 %v3222, %v3234
        %v3263 = vmul.f32 %v3223, %v3234
        %v3264 = vmul.f32 %v3224, %v3234
        %v3265 = vmul.f32 %v3225, %v3234
        %v3266 = vmul.f32 %v3226, %v3234
        %v3267 = vmul.f32 %v3227, %v3234
        %s3268 = scalar_lea.vmem %s7, 1
        %v3269 = vld [vmem:[%s3268] sm:$0x1]
        %v3271 = vlaneseq
        %v3272 = vshrl.u32 %v3271, 7
        %v3273 = vsub.s32 0, %v3272
        %v3274 = vrot.slane %v3269, %v3273
        %v3276 = vadd.f32 %v3236, %v3274
        %v3277 = vadd.f32 %v3237, %v3274
        %v3278 = vadd.f32 %v3238, %v3274
        %v3279 = vadd.f32 %v3239, %v3274
        %v3280 = vadd.f32 %v3240, %v3274
        %v3281 = vadd.f32 %v3241, %v3274
        %v3282 = vadd.f32 %v3242, %v3274
        %v3283 = vadd.f32 %v3243, %v3274
        %v3284 = vadd.f32 %v3244, %v3274
        %v3285 = vadd.f32 %v3245, %v3274
        %v3286 = vadd.f32 %v3246, %v3274
        %v3287 = vadd.f32 %v3247, %v3274
        %v3288 = vadd.f32 %v3248, %v3274
        %v3289 = vadd.f32 %v3249, %v3274
        %v3290 = vadd.f32 %v3250, %v3274
        %v3291 = vadd.f32 %v3251, %v3274
        %v3292 = vadd.f32 %v3252, %v3274
        %v3293 = vadd.f32 %v3253, %v3274
        %v3294 = vadd.f32 %v3254, %v3274
        %v3295 = vadd.f32 %v3255, %v3274
        %v3296 = vadd.f32 %v3256, %v3274
        %v3297 = vadd.f32 %v3257, %v3274
        %v3298 = vadd.f32 %v3258, %v3274
        %v3299 = vadd.f32 %v3259, %v3274
        %v3300 = vadd.f32 %v3260, %v3274
        %v3301 = vadd.f32 %v3261, %v3274
        %v3302 = vadd.f32 %v3262, %v3274
        %v3303 = vadd.f32 %v3263, %v3274
        %v3304 = vadd.f32 %v3264, %v3274
        %v3305 = vadd.f32 %v3265, %v3274
        %v3306 = vadd.f32 %v3266, %v3274
        %v3307 = vadd.f32 %v3267, %v3274
        %v3308 = vld [vmem:[#allocation2 + $0x18] sm:$0xff]
        %v3309 = vld [vmem:[#allocation2 + $0x38] sm:$0xff]
        %v3310 = vld [vmem:[#allocation2 + $0x58] sm:$0xff]
        %v3311 = vld [vmem:[#allocation2 + $0x78] sm:$0xff]
        %v3312 = vld [vmem:[#allocation2 + $0x98] sm:$0xff]
        %v3313 = vld [vmem:[#allocation2 + $0xb8] sm:$0xff]
        %v3314 = vld [vmem:[#allocation2 + $0xd8] sm:$0xff]
        %v3315 = vld [vmem:[#allocation2 + $0xf8] sm:$0xff]
        %v3316 = vld [vmem:[#allocation2 + $0x118] sm:$0xff]
        %v3317 = vld [vmem:[#allocation2 + $0x138] sm:$0xff]
        %v3318 = vld [vmem:[#allocation2 + $0x158] sm:$0xff]
        %v3319 = vld [vmem:[#allocation2 + $0x178] sm:$0xff]
        %v3320 = vld [vmem:[#allocation2 + $0x198] sm:$0xff]
        %v3321 = vld [vmem:[#allocation2 + $0x1b8] sm:$0xff]
        %v3322 = vld [vmem:[#allocation2 + $0x1d8] sm:$0xff]
        %v3323 = vld [vmem:[#allocation2 + $0x1f8] sm:$0xff]
        %v3324 = vld [vmem:[#allocation2 + $0x218] sm:$0xff]
        %v3325 = vld [vmem:[#allocation2 + $0x238] sm:$0xff]
        %v3326 = vld [vmem:[#allocation2 + $0x258] sm:$0xff]
        %v3327 = vld [vmem:[#allocation2 + $0x278] sm:$0xff]
        %v3328 = vld [vmem:[#allocation2 + $0x298] sm:$0xff]
        %v3329 = vld [vmem:[#allocation2 + $0x2b8] sm:$0xff]
        %v3330 = vld [vmem:[#allocation2 + $0x2d8] sm:$0xff]
        %v3331 = vld [vmem:[#allocation2 + $0x2f8] sm:$0xff]
        %v3332 = vld [vmem:[#allocation2 + $0x318] sm:$0xff]
        %v3333 = vld [vmem:[#allocation2 + $0x338] sm:$0xff]
        %v3334 = vld [vmem:[#allocation2 + $0x358] sm:$0xff]
        %v3335 = vld [vmem:[#allocation2 + $0x378] sm:$0xff]
        %v3336 = vld [vmem:[#allocation2 + $0x398] sm:$0xff]
        %v3337 = vld [vmem:[#allocation2 + $0x3b8] sm:$0xff]
        %v3338 = vld [vmem:[#allocation2 + $0x3d8] sm:$0xff]
        %v3339 = vld [vmem:[#allocation2 + $0x3f8] sm:$0xff]
        %v3340 = vpack.c.bf16 %v3277, %v3276
        %v3341 = vpack.c.bf16 %v3279, %v3278
        %v3342 = vpack.c.bf16 %v3281, %v3280
        %v3343 = vpack.c.bf16 %v3283, %v3282
        %v3344 = vpack.c.bf16 %v3285, %v3284
        %v3345 = vpack.c.bf16 %v3287, %v3286
        %v3346 = vpack.c.bf16 %v3289, %v3288
        %v3347 = vpack.c.bf16 %v3291, %v3290
        %v3348 = vpack.c.bf16 %v3293, %v3292
        %v3349 = vpack.c.bf16 %v3295, %v3294
        %v3350 = vpack.c.bf16 %v3297, %v3296
        %v3351 = vpack.c.bf16 %v3299, %v3298
        %v3352 = vpack.c.bf16 %v3301, %v3300
        %v3353 = vpack.c.bf16 %v3303, %v3302
        %v3354 = vpack.c.bf16 %v3305, %v3304
        %v3355 = vpack.c.bf16 %v3307, %v3306
        %s3356 = scalar_lea.vmem %s3, 128
        %v3357 = vld [vmem:[%s3356] sm:$0xf]
        %v3358 = vld [vmem:[%s3356 + $0x4] sm:$0xf]
        %v3359 = vld [vmem:[%s3356 + $0x8] sm:$0xf]
        %v3360 = vld [vmem:[%s3356 + $0xc] sm:$0xf]
        %v3361 = vld [vmem:[%s3356 + $0x10] sm:$0xf]
        %v3362 = vld [vmem:[%s3356 + $0x14] sm:$0xf]
        %v3363 = vld [vmem:[%s3356 + $0x18] sm:$0xf]
        %v3364 = vld [vmem:[%s3356 + $0x1c] sm:$0xf]
        %v3365 = vld [vmem:[%s3356 + $0x20] sm:$0xf]
        %v3366 = vld [vmem:[%s3356 + $0x24] sm:$0xf]
        %v3367 = vld [vmem:[%s3356 + $0x28] sm:$0xf]
        %v3368 = vld [vmem:[%s3356 + $0x2c] sm:$0xf]
        %v3369 = vld [vmem:[%s3356 + $0x30] sm:$0xf]
        %v3370 = vld [vmem:[%s3356 + $0x34] sm:$0xf]
        %v3371 = vld [vmem:[%s3356 + $0x38] sm:$0xf]
        %v3372 = vld [vmem:[%s3356 + $0x3c] sm:$0xf]
        %v3389 = vunpack.c.l.b16 %v3357
        %v3390 = vunpack.c.l.b16 %v3358
        %v3391 = vunpack.c.l.b16 %v3359
        %v3392 = vunpack.c.l.b16 %v3360
        %v3393 = vunpack.c.l.b16 %v3361
        %v3394 = vunpack.c.l.b16 %v3362
        %v3395 = vunpack.c.l.b16 %v3363
        %v3396 = vunpack.c.l.b16 %v3364
        %v3397 = vunpack.c.l.b16 %v3365
        %v3398 = vunpack.c.l.b16 %v3366
        %v3399 = vunpack.c.l.b16 %v3367
        %v3400 = vunpack.c.l.b16 %v3368
        %v3401 = vunpack.c.l.b16 %v3369
        %v3402 = vunpack.c.l.b16 %v3370
        %v3403 = vunpack.c.l.b16 %v3371
        %v3404 = vunpack.c.l.b16 %v3372
        %v3405 = vpack.c.b16 %v3390, %v3389
        %v3406 = vpack.c.b16 %v3392, %v3391
        %v3407 = vpack.c.b16 %v3394, %v3393
        %v3408 = vpack.c.b16 %v3396, %v3395
        %v3409 = vpack.c.b16 %v3398, %v3397
        %v3410 = vpack.c.b16 %v3400, %v3399
        %v3411 = vpack.c.b16 %v3402, %v3401
        %v3412 = vpack.c.b16 %v3404, %v3403
        %3421 = vmatprep.subr.bf16.mxu0 0
        %3422 = vmatpush1.bf16.msra.mxu0 %v3405
        %3423 = vmatprep.subr.bf16.mxu0 0
        %3424 = vmatpush1.bf16.msra.mxu0 %v3406
        %3425 = vmatprep.subr.bf16.mxu0 0
        %3426 = vmatpush1.bf16.msra.mxu0 %v3407
        %3427 = vmatprep.subr.bf16.mxu0 0
        %3428 = vmatpush1.bf16.msra.mxu0 %v3408
        %3429 = vmatprep.subr.bf16.mxu0 0
        %3430 = vmatpush1.bf16.msra.mxu0 %v3409
        %3431 = vmatprep.subr.bf16.mxu0 0
        %3432 = vmatpush1.bf16.msra.mxu0 %v3410
        %3433 = vmatprep.subr.bf16.mxu0 0
        %3434 = vmatpush1.bf16.msra.mxu0 %v3411
        %3435 = vmatprep.subr.bf16.mxu0 0
        %3436 = vmatpush1.bf16.msra.mxu0 %v3412
        %3437 = vmatprep.subr.bf16.mxu0 0
        %3438 = vmatpush1.bf16.msra.mxu0 0
        %3439 = vmatprep.subr.bf16.mxu0 0
        %3440 = vmatpush1.bf16.msra.mxu0 0
        %3441 = vmatprep.subr.bf16.mxu0 0
        %3442 = vmatpush1.bf16.msra.mxu0 0
        %3443 = vmatprep.subr.bf16.mxu0 0
        %3444 = vmatpush1.bf16.msra.mxu0 0
        %3445 = vmatprep.subr.bf16.mxu0 0
        %3446 = vmatpush1.bf16.msra.mxu0 0
        %3447 = vmatprep.subr.bf16.mxu0 0
        %3448 = vmatpush1.bf16.msra.mxu0 0
        %3449 = vmatprep.subr.bf16.mxu0 0
        %3450 = vmatpush1.bf16.msra.mxu0 0
        %3451 = vmatprep.subr.bf16.mxu0 0
        %3452 = vmatpush1.bf16.msra.mxu0 0
        %3453 = vmatprep.mubr.bf16.mxu0 0
        %3454 = vmatmul.mubr.bf16.gmra.mrb[0].mxu0 %v3340
        %v3455 = vpop.f32.mrb[0].mxu0
        %v3456 = vadd.f32 0.0, %v3455
        %v3457 = vpop.f32.mrb[0].mxu0
        %v3458 = vpop.f32.mrb[0].mxu0
        %v3459 = vadd.f32 0.0, %v3458
        %v3460 = vpop.f32.mrb[0].mxu0
        %3461 = vmatprep.mubr.bf16.mxu0 0
        %3462 = vmatmul.mubr.bf16.gmra.mrb[0].mxu0 %v3341
        %v3463 = vpop.f32.mrb[0].mxu0
        %v3464 = vadd.f32 0.0, %v3463
        %v3465 = vpop.f32.mrb[0].mxu0
        %v3466 = vpop.f32.mrb[0].mxu0
        %v3467 = vadd.f32 0.0, %v3466
        %v3468 = vpop.f32.mrb[0].mxu0
        %3469 = vmatprep.mubr.bf16.mxu0 0
        %3470 = vmatmul.mubr.bf16.gmra.mrb[0].mxu0 %v3342
        %v3471 = vpop.f32.mrb[0].mxu0
        %v3472 = vadd.f32 0.0, %v3471
        %v3473 = vpop.f32.mrb[0].mxu0
        %v3474 = vpop.f32.mrb[0].mxu0
        %v3475 = vadd.f32 0.0, %v3474
        %v3476 = vpop.f32.mrb[0].mxu0
        %3477 = vmatprep.mubr.bf16.mxu0 0
        %3478 = vmatmul.mubr.bf16.gmra.mrb[0].mxu0 %v3343
        %v3479 = vpop.f32.mrb[0].mxu0
        %v3480 = vadd.f32 0.0, %v3479
        %v3481 = vpop.f32.mrb[0].mxu0
        %v3482 = vpop.f32.mrb[0].mxu0
        %v3483 = vadd.f32 0.0, %v3482
        %v3484 = vpop.f32.mrb[0].mxu0
        %3485 = vmatprep.mubr.bf16.mxu0 0
        %3486 = vmatmul.mubr.bf16.gmra.mrb[0].mxu0 %v3344
        %v3487 = vpop.f32.mrb[0].mxu0
        %v3488 = vadd.f32 0.0, %v3487
        %v3489 = vpop.f32.mrb[0].mxu0
        %v3490 = vpop.f32.mrb[0].mxu0
        %v3491 = vadd.f32 0.0, %v3490
        %v3492 = vpop.f32.mrb[0].mxu0
        %3493 = vmatprep.mubr.bf16.mxu0 0
        %3494 = vmatmul.mubr.bf16.gmra.mrb[0].mxu0 %v3345
        %v3495 = vpop.f32.mrb[0].mxu0
        %v3496 = vadd.f32 0.0, %v3495
        %v3497 = vpop.f32.mrb[0].mxu0
        %v3498 = vpop.f32.mrb[0].mxu0
        %v3499 = vadd.f32 0.0, %v3498
        %v3500 = vpop.f32.mrb[0].mxu0
        %3501 = vmatprep.mubr.bf16.mxu0 0
        %3502 = vmatmul.mubr.bf16.gmra.mrb[0].mxu0 %v3346
        %v3503 = vpop.f32.mrb[0].mxu0
        %v3504 = vadd.f32 0.0, %v3503
        %v3505 = vpop.f32.mrb[0].mxu0
        %v3506 = vpop.f32.mrb[0].mxu0
        %v3507 = vadd.f32 0.0, %v3506
        %v3508 = vpop.f32.mrb[0].mxu0
        %3509 = vmatprep.mubr.bf16.mxu0 0
        %3510 = vmatmul.mubr.bf16.gmra.mrb[0].mxu0 %v3347
        %v3511 = vpop.f32.mrb[0].mxu0
        %v3512 = vadd.f32 0.0, %v3511
        %v3513 = vpop.f32.mrb[0].mxu0
        %v3514 = vpop.f32.mrb[0].mxu0
        %v3515 = vadd.f32 0.0, %v3514
        %v3516 = vpop.f32.mrb[0].mxu0
        %3517 = vmatprep.mubr.bf16.mxu0 0
        %3518 = vmatmul.mubr.bf16.gmra.mrb[0].mxu0 %v3348
        %v3519 = vpop.f32.mrb[0].mxu0
        %v3520 = vadd.f32 0.0, %v3519
        %v3521 = vpop.f32.mrb[0].mxu0
        %v3522 = vpop.f32.mrb[0].mxu0
        %v3523 = vadd.f32 0.0, %v3522
        %v3524 = vpop.f32.mrb[0].mxu0
        %3525 = vmatprep.mubr.bf16.mxu0 0
        %3526 = vmatmul.mubr.bf16.gmra.mrb[0].mxu0 %v3349
        %v3527 = vpop.f32.mrb[0].mxu0
        %v3528 = vadd.f32 0.0, %v3527
        %v3529 = vpop.f32.mrb[0].mxu0
        %v3530 = vpop.f32.mrb[0].mxu0
        %v3531 = vadd.f32 0.0, %v3530
        %v3532 = vpop.f32.mrb[0].mxu0
        %3533 = vmatprep.mubr.bf16.mxu0 0
        %3534 = vmatmul.mubr.bf16.gmra.mrb[0].mxu0 %v3350
        %v3535 = vpop.f32.mrb[0].mxu0
        %v3536 = vadd.f32 0.0, %v3535
        %v3537 = vpop.f32.mrb[0].mxu0
        %v3538 = vpop.f32.mrb[0].mxu0
        %v3539 = vadd.f32 0.0, %v3538
        %v3540 = vpop.f32.mrb[0].mxu0
        %3541 = vmatprep.mubr.bf16.mxu0 0
        %3542 = vmatmul.mubr.bf16.gmra.mrb[0].mxu0 %v3351
        %v3543 = vpop.f32.mrb[0].mxu0
        %v3544 = vadd.f32 0.0, %v3543
        %v3545 = vpop.f32.mrb[0].mxu0
        %v3546 = vpop.f32.mrb[0].mxu0
        %v3547 = vadd.f32 0.0, %v3546
        %v3548 = vpop.f32.mrb[0].mxu0
        %3549 = vmatprep.mubr.bf16.mxu0 0
        %3550 = vmatmul.mubr.bf16.gmra.mrb[0].mxu0 %v3352
        %v3551 = vpop.f32.mrb[0].mxu0
        %v3552 = vadd.f32 0.0, %v3551
        %v3553 = vpop.f32.mrb[0].mxu0
        %v3554 = vpop.f32.mrb[0].mxu0
        %v3555 = vadd.f32 0.0, %v3554
        %v3556 = vpop.f32.mrb[0].mxu0
        %3557 = vmatprep.mubr.bf16.mxu0 0
        %3558 = vmatmul.mubr.bf16.gmra.mrb[0].mxu0 %v3353
        %v3559 = vpop.f32.mrb[0].mxu0
        %v3560 = vadd.f32 0.0, %v3559
        %v3561 = vpop.f32.mrb[0].mxu0
        %v3562 = vpop.f32.mrb[0].mxu0
        %v3563 = vadd.f32 0.0, %v3562
        %v3564 = vpop.f32.mrb[0].mxu0
        %3565 = vmatprep.mubr.bf16.mxu0 0
        %3566 = vmatmul.mubr.bf16.gmra.mrb[0].mxu0 %v3354
        %v3567 = vpop.f32.mrb[0].mxu0
        %v3568 = vadd.f32 0.0, %v3567
        %v3569 = vpop.f32.mrb[0].mxu0
        %v3570 = vpop.f32.mrb[0].mxu0
        %v3571 = vadd.f32 0.0, %v3570
        %v3572 = vpop.f32.mrb[0].mxu0
        %3573 = vmatprep.mubr.bf16.mxu0 0
        %3574 = vmatmul.mubr.bf16.gmra.mrb[0].mxu0 %v3355
        %v3575 = vpop.f32.mrb[0].mxu0
        %v3576 = vadd.f32 0.0, %v3575
        %v3577 = vpop.f32.mrb[0].mxu0
        %v3578 = vpop.f32.mrb[0].mxu0
        %v3579 = vadd.f32 0.0, %v3578
        %v3580 = vpop.f32.mrb[0].mxu0
        %3581 = vdwg.mxu0
        %v3582 = vadd.f32 %v3308, %v3456
        %v3583 = vadd.f32 %v3309, %v3459
        %v3584 = vadd.f32 %v3310, %v3464
        %v3585 = vadd.f32 %v3311, %v3467
        %v3586 = vadd.f32 %v3312, %v3472
        %v3587 = vadd.f32 %v3313, %v3475
        %v3588 = vadd.f32 %v3314, %v3480
        %v3589 = vadd.f32 %v3315, %v3483
        %v3590 = vadd.f32 %v3316, %v3488
        %v3591 = vadd.f32 %v3317, %v3491
        %v3592 = vadd.f32 %v3318, %v3496
        %v3593 = vadd.f32 %v3319, %v3499
        %v3594 = vadd.f32 %v3320, %v3504
        %v3595 = vadd.f32 %v3321, %v3507
        %v3596 = vadd.f32 %v3322, %v3512
        %v3597 = vadd.f32 %v3323, %v3515
        %v3598 = vadd.f32 %v3324, %v3520
        %v3599 = vadd.f32 %v3325, %v3523
        %v3600 = vadd.f32 %v3326, %v3528
        %v3601 = vadd.f32 %v3327, %v3531
        %v3602 = vadd.f32 %v3328, %v3536
        %v3603 = vadd.f32 %v3329, %v3539
        %v3604 = vadd.f32 %v3330, %v3544
        %v3605 = vadd.f32 %v3331, %v3547
        %v3606 = vadd.f32 %v3332, %v3552
        %v3607 = vadd.f32 %v3333, %v3555
        %v3608 = vadd.f32 %v3334, %v3560
        %v3609 = vadd.f32 %v3335, %v3563
        %v3610 = vadd.f32 %v3336, %v3568
        %v3611 = vadd.f32 %v3337, %v3571
        %v3612 = vadd.f32 %v3338, %v3576
        %v3613 = vadd.f32 %v3339, %v3579
        %v3614 = vmul.f32 %v3582, 0.01
        %v3615 = vmul.f32 %v3583, 0.01
        %v3616 = vmul.f32 %v3584, 0.01
        %v3617 = vmul.f32 %v3585, 0.01
        %v3618 = vmul.f32 %v3586, 0.01
        %v3619 = vmul.f32 %v3587, 0.01
        %v3620 = vmul.f32 %v3588, 0.01
        %v3621 = vmul.f32 %v3589, 0.01
        %v3622 = vmul.f32 %v3590, 0.01
        %v3623 = vmul.f32 %v3591, 0.01
        %v3624 = vmul.f32 %v3592, 0.01
        %v3625 = vmul.f32 %v3593, 0.01
        %v3626 = vmul.f32 %v3594, 0.01
        %v3627 = vmul.f32 %v3595, 0.01
        %v3628 = vmul.f32 %v3596, 0.01
        %v3629 = vmul.f32 %v3597, 0.01
        %v3630 = vmul.f32 %v3598, 0.01
        %v3631 = vmul.f32 %v3599, 0.01
        %v3632 = vmul.f32 %v3600, 0.01
        %v3633 = vmul.f32 %v3601, 0.01
        %v3634 = vmul.f32 %v3602, 0.01
        %v3635 = vmul.f32 %v3603, 0.01
        %v3636 = vmul.f32 %v3604, 0.01
        %v3637 = vmul.f32 %v3605, 0.01
        %v3638 = vmul.f32 %v3606, 0.01
        %v3639 = vmul.f32 %v3607, 0.01
        %v3640 = vmul.f32 %v3608, 0.01
        %v3641 = vmul.f32 %v3609, 0.01
        %v3642 = vmul.f32 %v3610, 0.01
        %v3643 = vmul.f32 %v3611, 0.01
        %v3644 = vmul.f32 %v3612, 0.01
        %v3645 = vmul.f32 %v3613, 0.01
        %v3646 = vmax.f32 %v3582, %v3614
        %v3647 = vmax.f32 %v3583, %v3615
        %v3648 = vmax.f32 %v3584, %v3616
        %v3649 = vmax.f32 %v3585, %v3617
        %v3650 = vmax.f32 %v3586, %v3618
        %v3651 = vmax.f32 %v3587, %v3619
        %v3652 = vmax.f32 %v3588, %v3620
        %v3653 = vmax.f32 %v3589, %v3621
        %v3654 = vmax.f32 %v3590, %v3622
        %v3655 = vmax.f32 %v3591, %v3623
        %v3656 = vmax.f32 %v3592, %v3624
        %v3657 = vmax.f32 %v3593, %v3625
        %v3658 = vmax.f32 %v3594, %v3626
        %v3659 = vmax.f32 %v3595, %v3627
        %v3660 = vmax.f32 %v3596, %v3628
        %v3661 = vmax.f32 %v3597, %v3629
        %v3662 = vmax.f32 %v3598, %v3630
        %v3663 = vmax.f32 %v3599, %v3631
        %v3664 = vmax.f32 %v3600, %v3632
        %v3665 = vmax.f32 %v3601, %v3633
        %v3666 = vmax.f32 %v3602, %v3634
        %v3667 = vmax.f32 %v3603, %v3635
        %v3668 = vmax.f32 %v3604, %v3636
        %v3669 = vmax.f32 %v3605, %v3637
        %v3670 = vmax.f32 %v3606, %v3638
        %v3671 = vmax.f32 %v3607, %v3639
        %v3672 = vmax.f32 %v3608, %v3640
        %v3673 = vmax.f32 %v3609, %v3641
        %v3674 = vmax.f32 %v3610, %v3642
        %v3675 = vmax.f32 %v3611, %v3643
        %v3676 = vmax.f32 %v3612, %v3644
        %v3677 = vmax.f32 %v3613, %v3645
        %v3678 = vpack.c.bf16 %v3647, %v3646
        %v3679 = vpack.c.bf16 %v3649, %v3648
        %v3680 = vpack.c.bf16 %v3651, %v3650
        %v3681 = vpack.c.bf16 %v3653, %v3652
        %v3682 = vpack.c.bf16 %v3655, %v3654
        %v3683 = vpack.c.bf16 %v3657, %v3656
        %v3684 = vpack.c.bf16 %v3659, %v3658
        %v3685 = vpack.c.bf16 %v3661, %v3660
        %v3686 = vpack.c.bf16 %v3663, %v3662
        %v3687 = vpack.c.bf16 %v3665, %v3664
        %v3688 = vpack.c.bf16 %v3667, %v3666
        %v3689 = vpack.c.bf16 %v3669, %v3668
        %v3690 = vpack.c.bf16 %v3671, %v3670
        %v3691 = vpack.c.bf16 %v3673, %v3672
        %v3692 = vpack.c.bf16 %v3675, %v3674
        %v3693 = vpack.c.bf16 %v3677, %v3676
        %s3694 = scalar_lea.vmem [#allocation6], 128
        %v3695 = vld [vmem:[%s3694] sm:$0xf]
        %v3696 = vld [vmem:[%s3694 + $0x4] sm:$0xf]
        %v3697 = vld [vmem:[%s3694 + $0x8] sm:$0xf]
        %v3698 = vld [vmem:[%s3694 + $0xc] sm:$0xf]
        %v3699 = vld [vmem:[%s3694 + $0x10] sm:$0xf]
        %v3700 = vld [vmem:[%s3694 + $0x14] sm:$0xf]
        %v3701 = vld [vmem:[%s3694 + $0x18] sm:$0xf]
        %v3702 = vld [vmem:[%s3694 + $0x1c] sm:$0xf]
        %v3703 = vld [vmem:[%s3694 + $0x20] sm:$0xf]
        %v3704 = vld [vmem:[%s3694 + $0x24] sm:$0xf]
        %v3705 = vld [vmem:[%s3694 + $0x28] sm:$0xf]
        %v3706 = vld [vmem:[%s3694 + $0x2c] sm:$0xf]
        %v3707 = vld [vmem:[%s3694 + $0x30] sm:$0xf]
        %v3708 = vld [vmem:[%s3694 + $0x34] sm:$0xf]
        %v3709 = vld [vmem:[%s3694 + $0x38] sm:$0xf]
        %v3710 = vld [vmem:[%s3694 + $0x3c] sm:$0xf]
        %s3711 = scalar_lea.vmem [#allocation8], 2
        %v3712 = vld [vmem:[%s3711] sm:$0x1]
        %v3714 = vlaneseq
        %v3715 = vshrl.u32 %v3714, 7
        %v3716 = vsub.s32 0, %v3715
        %v3717 = vrot.slane %v3712, %v3716
        %v3735 = vunpack.c.l.b16 %v3695
        %v3736 = vunpack.c.l.b16 %v3696
        %v3737 = vunpack.c.l.b16 %v3697
        %v3738 = vunpack.c.l.b16 %v3698
        %v3739 = vunpack.c.l.b16 %v3699
        %v3740 = vunpack.c.l.b16 %v3700
        %v3741 = vunpack.c.l.b16 %v3701
        %v3742 = vunpack.c.l.b16 %v3702
        %v3743 = vunpack.c.l.b16 %v3703
        %v3744 = vunpack.c.l.b16 %v3704
        %v3745 = vunpack.c.l.b16 %v3705
        %v3746 = vunpack.c.l.b16 %v3706
        %v3747 = vunpack.c.l.b16 %v3707
        %v3748 = vunpack.c.l.b16 %v3708
        %v3749 = vunpack.c.l.b16 %v3709
        %v3750 = vunpack.c.l.b16 %v3710
        %v3751 = vpack.c.b16 %v3736, %v3735
        %v3752 = vpack.c.b16 %v3738, %v3737
        %v3753 = vpack.c.b16 %v3740, %v3739
        %v3754 = vpack.c.b16 %v3742, %v3741
        %v3755 = vpack.c.b16 %v3744, %v3743
        %v3756 = vpack.c.b16 %v3746, %v3745
        %v3757 = vpack.c.b16 %v3748, %v3747
        %v3758 = vpack.c.b16 %v3750, %v3749
        %3767 = vmatprep.subr.bf16.mxu0 0
        %3768 = vmatpush1.bf16.msra.mxu0 %v3751
        %3769 = vmatprep.subr.bf16.mxu0 0
        %3770 = vmatpush1.bf16.msra.mxu0 %v3752
        %3771 = vmatprep.subr.bf16.mxu0 0
        %3772 = vmatpush1.bf16.msra.mxu0 %v3753
        %3773 = vmatprep.subr.bf16.mxu0 0
        %3774 = vmatpush1.bf16.msra.mxu0 %v3754
        %3775 = vmatprep.subr.bf16.mxu0 0
        %3776 = vmatpush1.bf16.msra.mxu0 %v3755
        %3777 = vmatprep.subr.bf16.mxu0 0
        %3778 = vmatpush1.bf16.msra.mxu0 %v3756
        %3779 = vmatprep.subr.bf16.mxu0 0
        %3780 = vmatpush1.bf16.msra.mxu0 %v3757
        %3781 = vmatprep.subr.bf16.mxu0 0
        %3782 = vmatpush1.bf16.msra.mxu0 %v3758
        %3783 = vmatprep.subr.bf16.mxu0 0
        %3784 = vmatpush1.bf16.msra.mxu0 0
        %3785 = vmatprep.subr.bf16.mxu0 0
        %3786 = vmatpush1.bf16.msra.mxu0 0
        %3787 = vmatprep.subr.bf16.mxu0 0
        %3788 = vmatpush1.bf16.msra.mxu0 0
        %3789 = vmatprep.subr.bf16.mxu0 0
        %3790 = vmatpush1.bf16.msra.mxu0 0
        %3791 = vmatprep.subr.bf16.mxu0 0
        %3792 = vmatpush1.bf16.msra.mxu0 0
        %3793 = vmatprep.subr.bf16.mxu0 0
        %3794 = vmatpush1.bf16.msra.mxu0 0
        %3795 = vmatprep.subr.bf16.mxu0 0
        %3796 = vmatpush1.bf16.msra.mxu0 0
        %3797 = vmatprep.subr.bf16.mxu0 0
        %3798 = vmatpush1.bf16.msra.mxu0 0
        %3799 = vmatprep.mubr.bf16.mxu0 0
        %3800 = vmatmul.mubr.bf16.gmra.mrb[0].mxu0 %v3678
        %v3801 = vpop.f32.mrb[0].mxu0
        %v3802 = vadd.f32 %v3717, %v3801
        %v3803 = vpop.f32.mrb[0].mxu0
        %v3804 = vpop.f32.mrb[0].mxu0
        %v3805 = vadd.f32 %v3717, %v3804
        %v3806 = vpop.f32.mrb[0].mxu0
        %3807 = vmatprep.mubr.bf16.mxu0 0
        %3808 = vmatmul.mubr.bf16.gmra.mrb[0].mxu0 %v3679
        %v3809 = vpop.f32.mrb[0].mxu0
        %v3810 = vadd.f32 %v3717, %v3809
        %v3811 = vpop.f32.mrb[0].mxu0
        %v3812 = vpop.f32.mrb[0].mxu0
        %v3813 = vadd.f32 %v3717, %v3812
        %v3814 = vpop.f32.mrb[0].mxu0
        %3815 = vmatprep.mubr.bf16.mxu0 0
        %3816 = vmatmul.mubr.bf16.gmra.mrb[0].mxu0 %v3680
        %v3817 = vpop.f32.mrb[0].mxu0
        %v3818 = vadd.f32 %v3717, %v3817
        %v3819 = vpop.f32.mrb[0].mxu0
        %v3820 = vpop.f32.mrb[0].mxu0
        %v3821 = vadd.f32 %v3717, %v3820
        %v3822 = vpop.f32.mrb[0].mxu0
        %3823 = vmatprep.mubr.bf16.mxu0 0
        %3824 = vmatmul.mubr.bf16.gmra.mrb[0].mxu0 %v3681
        %v3825 = vpop.f32.mrb[0].mxu0
        %v3826 = vadd.f32 %v3717, %v3825
        %v3827 = vpop.f32.mrb[0].mxu0
        %v3828 = vpop.f32.mrb[0].mxu0
        %v3829 = vadd.f32 %v3717, %v3828
        %v3830 = vpop.f32.mrb[0].mxu0
        %3831 = vmatprep.mubr.bf16.mxu0 0
        %3832 = vmatmul.mubr.bf16.gmra.mrb[0].mxu0 %v3682
        %v3833 = vpop.f32.mrb[0].mxu0
        %v3834 = vadd.f32 %v3717, %v3833
        %v3835 = vpop.f32.mrb[0].mxu0
        %v3836 = vpop.f32.mrb[0].mxu0
        %v3837 = vadd.f32 %v3717, %v3836
        %v3838 = vpop.f32.mrb[0].mxu0
        %3839 = vmatprep.mubr.bf16.mxu0 0
        %3840 = vmatmul.mubr.bf16.gmra.mrb[0].mxu0 %v3683
        %v3841 = vpop.f32.mrb[0].mxu0
        %v3842 = vadd.f32 %v3717, %v3841
        %v3843 = vpop.f32.mrb[0].mxu0
        %v3844 = vpop.f32.mrb[0].mxu0
        %v3845 = vadd.f32 %v3717, %v3844
        %v3846 = vpop.f32.mrb[0].mxu0
        %3847 = vmatprep.mubr.bf16.mxu0 0
        %3848 = vmatmul.mubr.bf16.gmra.mrb[0].mxu0 %v3684
        %v3849 = vpop.f32.mrb[0].mxu0
        %v3850 = vadd.f32 %v3717, %v3849
        %v3851 = vpop.f32.mrb[0].mxu0
        %v3852 = vpop.f32.mrb[0].mxu0
        %v3853 = vadd.f32 %v3717, %v3852
        %v3854 = vpop.f32.mrb[0].mxu0
        %3855 = vmatprep.mubr.bf16.mxu0 0
        %3856 = vmatmul.mubr.bf16.gmra.mrb[0].mxu0 %v3685
        %v3857 = vpop.f32.mrb[0].mxu0
        %v3858 = vadd.f32 %v3717, %v3857
        %v3859 = vpop.f32.mrb[0].mxu0
        %v3860 = vpop.f32.mrb[0].mxu0
        %v3861 = vadd.f32 %v3717, %v3860
        %v3862 = vpop.f32.mrb[0].mxu0
        %3863 = vmatprep.mubr.bf16.mxu0 0
        %3864 = vmatmul.mubr.bf16.gmra.mrb[0].mxu0 %v3686
        %v3865 = vpop.f32.mrb[0].mxu0
        %v3866 = vadd.f32 %v3717, %v3865
        %v3867 = vpop.f32.mrb[0].mxu0
        %v3868 = vpop.f32.mrb[0].mxu0
        %v3869 = vadd.f32 %v3717, %v3868
        %v3870 = vpop.f32.mrb[0].mxu0
        %3871 = vmatprep.mubr.bf16.mxu0 0
        %3872 = vmatmul.mubr.bf16.gmra.mrb[0].mxu0 %v3687
        %v3873 = vpop.f32.mrb[0].mxu0
        %v3874 = vadd.f32 %v3717, %v3873
        %v3875 = vpop.f32.mrb[0].mxu0
        %v3876 = vpop.f32.mrb[0].mxu0
        %v3877 = vadd.f32 %v3717, %v3876
        %v3878 = vpop.f32.mrb[0].mxu0
        %3879 = vmatprep.mubr.bf16.mxu0 0
        %3880 = vmatmul.mubr.bf16.gmra.mrb[0].mxu0 %v3688
        %v3881 = vpop.f32.mrb[0].mxu0
        %v3882 = vadd.f32 %v3717, %v3881
        %v3883 = vpop.f32.mrb[0].mxu0
        %v3884 = vpop.f32.mrb[0].mxu0
        %v3885 = vadd.f32 %v3717, %v3884
        %v3886 = vpop.f32.mrb[0].mxu0
        %3887 = vmatprep.mubr.bf16.mxu0 0
        %3888 = vmatmul.mubr.bf16.gmra.mrb[0].mxu0 %v3689
        %v3889 = vpop.f32.mrb[0].mxu0
        %v3890 = vadd.f32 %v3717, %v3889
        %v3891 = vpop.f32.mrb[0].mxu0
        %v3892 = vpop.f32.mrb[0].mxu0
        %v3893 = vadd.f32 %v3717, %v3892
        %v3894 = vpop.f32.mrb[0].mxu0
        %3895 = vmatprep.mubr.bf16.mxu0 0
        %3896 = vmatmul.mubr.bf16.gmra.mrb[0].mxu0 %v3690
        %v3897 = vpop.f32.mrb[0].mxu0
        %v3898 = vadd.f32 %v3717, %v3897
        %v3899 = vpop.f32.mrb[0].mxu0
        %v3900 = vpop.f32.mrb[0].mxu0
        %v3901 = vadd.f32 %v3717, %v3900
        %v3902 = vpop.f32.mrb[0].mxu0
        %3903 = vmatprep.mubr.bf16.mxu0 0
        %3904 = vmatmul.mubr.bf16.gmra.mrb[0].mxu0 %v3691
        %v3905 = vpop.f32.mrb[0].mxu0
        %v3906 = vadd.f32 %v3717, %v3905
        %v3907 = vpop.f32.mrb[0].mxu0
        %v3908 = vpop.f32.mrb[0].mxu0
        %v3909 = vadd.f32 %v3717, %v3908
        %v3910 = vpop.f32.mrb[0].mxu0
        %3911 = vmatprep.mubr.bf16.mxu0 0
        %3912 = vmatmul.mubr.bf16.gmra.mrb[0].mxu0 %v3692
        %v3913 = vpop.f32.mrb[0].mxu0
        %v3914 = vadd.f32 %v3717, %v3913
        %v3915 = vpop.f32.mrb[0].mxu0
        %v3916 = vpop.f32.mrb[0].mxu0
        %v3917 = vadd.f32 %v3717, %v3916
        %v3918 = vpop.f32.mrb[0].mxu0
        %3919 = vmatprep.mubr.bf16.mxu0 0
        %3920 = vmatmul.mubr.bf16.gmra.mrb[0].mxu0 %v3693
        %v3921 = vpop.f32.mrb[0].mxu0
        %v3922 = vadd.f32 %v3717, %v3921
        %v3923 = vpop.f32.mrb[0].mxu0
        %v3924 = vpop.f32.mrb[0].mxu0
        %v3925 = vadd.f32 %v3717, %v3924
        %v3926 = vpop.f32.mrb[0].mxu0
        %3927 = vdwg.mxu0
        %3928 = vadd.xlane.f32.xlu0 %v3802
        %v3929 = vpop.xlane.xlu0 %3928
        %3930 = vadd.xlane.f32.xlu0 %v3805
        %v3931 = vpop.xlane.xlu0 %3930
        %3932 = vadd.xlane.f32.xlu0 %v3810
        %v3933 = vpop.xlane.xlu0 %3932
        %3934 = vadd.xlane.f32.xlu0 %v3813
        %v3935 = vpop.xlane.xlu0 %3934
        %3936 = vadd.xlane.f32.xlu0 %v3818
        %v3937 = vpop.xlane.xlu0 %3936
        %3938 = vadd.xlane.f32.xlu0 %v3821
        %v3939 = vpop.xlane.xlu0 %3938
        %3940 = vadd.xlane.f32.xlu0 %v3826
        %v3941 = vpop.xlane.xlu0 %3940
        %3942 = vadd.xlane.f32.xlu0 %v3829
        %v3943 = vpop.xlane.xlu0 %3942
        %3944 = vadd.xlane.f32.xlu0 %v3834
        %v3945 = vpop.xlane.xlu0 %3944
        %3946 = vadd.xlane.f32.xlu0 %v3837
        %v3947 = vpop.xlane.xlu0 %3946
        %3948 = vadd.xlane.f32.xlu0 %v3842
        %v3949 = vpop.xlane.xlu0 %3948
        %3950 = vadd.xlane.f32.xlu0 %v3845
        %v3951 = vpop.xlane.xlu0 %3950
        %3952 = vadd.xlane.f32.xlu0 %v3850
        %v3953 = vpop.xlane.xlu0 %3952
        %3954 = vadd.xlane.f32.xlu0 %v3853
        %v3955 = vpop.xlane.xlu0 %3954
        %3956 = vadd.xlane.f32.xlu0 %v3858
        %v3957 = vpop.xlane.xlu0 %3956
        %3958 = vadd.xlane.f32.xlu0 %v3861
        %v3959 = vpop.xlane.xlu0 %3958
        %3960 = vadd.xlane.f32.xlu0 %v3866
        %v3961 = vpop.xlane.xlu0 %3960
        %3962 = vadd.xlane.f32.xlu0 %v3869
        %v3963 = vpop.xlane.xlu0 %3962
        %3964 = vadd.xlane.f32.xlu0 %v3874
        %v3965 = vpop.xlane.xlu0 %3964
        %3966 = vadd.xlane.f32.xlu0 %v3877
        %v3967 = vpop.xlane.xlu0 %3966
        %3968 = vadd.xlane.f32.xlu0 %v3882
        %v3969 = vpop.xlane.xlu0 %3968
        %3970 = vadd.xlane.f32.xlu0 %v3885
        %v3971 = vpop.xlane.xlu0 %3970
        %3972 = vadd.xlane.f32.xlu0 %v3890
        %v3973 = vpop.xlane.xlu0 %3972
        %3974 = vadd.xlane.f32.xlu0 %v3893
        %v3975 = vpop.xlane.xlu0 %3974
        %3976 = vadd.xlane.f32.xlu0 %v3898
        %v3977 = vpop.xlane.xlu0 %3976
        %3978 = vadd.xlane.f32.xlu0 %v3901
        %v3979 = vpop.xlane.xlu0 %3978
        %3980 = vadd.xlane.f32.xlu0 %v3906
        %v3981 = vpop.xlane.xlu0 %3980
        %3982 = vadd.xlane.f32.xlu0 %v3909
        %v3983 = vpop.xlane.xlu0 %3982
        %3984 = vadd.xlane.f32.xlu0 %v3914
        %v3985 = vpop.xlane.xlu0 %3984
        %3986 = vadd.xlane.f32.xlu0 %v3917
        %v3987 = vpop.xlane.xlu0 %3986
        %3988 = vadd.xlane.f32.xlu0 %v3922
        %v3989 = vpop.xlane.xlu0 %3988
        %3990 = vadd.xlane.f32.xlu0 %v3925
        %v3991 = vpop.xlane.xlu0 %3990
        %v3992 = vmul.f32 %v3929, %v1889
        %v3993 = vmul.f32 %v3931, %v1889
        %v3994 = vmul.f32 %v3933, %v1889
        %v3995 = vmul.f32 %v3935, %v1889
        %v3996 = vmul.f32 %v3937, %v1889
        %v3997 = vmul.f32 %v3939, %v1889
        %v3998 = vmul.f32 %v3941, %v1889
        %v3999 = vmul.f32 %v3943, %v1889
        %v4000 = vmul.f32 %v3945, %v1889
        %v4001 = vmul.f32 %v3947, %v1889
        %v4002 = vmul.f32 %v3949, %v1889
        %v4003 = vmul.f32 %v3951, %v1889
        %v4004 = vmul.f32 %v3953, %v1889
        %v4005 = vmul.f32 %v3955, %v1889
        %v4006 = vmul.f32 %v3957, %v1889
        %v4007 = vmul.f32 %v3959, %v1889
        %v4008 = vmul.f32 %v3961, %v1889
        %v4009 = vmul.f32 %v3963, %v1889
        %v4010 = vmul.f32 %v3965, %v1889
        %v4011 = vmul.f32 %v3967, %v1889
        %v4012 = vmul.f32 %v3969, %v1889
        %v4013 = vmul.f32 %v3971, %v1889
        %v4014 = vmul.f32 %v3973, %v1889
        %v4015 = vmul.f32 %v3975, %v1889
        %v4016 = vmul.f32 %v3977, %v1889
        %v4017 = vmul.f32 %v3979, %v1889
        %v4018 = vmul.f32 %v3981, %v1889
        %v4019 = vmul.f32 %v3983, %v1889
        %v4020 = vmul.f32 %v3985, %v1889
        %v4021 = vmul.f32 %v3987, %v1889
        %v4022 = vmul.f32 %v3989, %v1889
        %v4023 = vmul.f32 %v3991, %v1889
        %v4024 = vsub.f32 %v3802, %v3992
        %v4025 = vsub.f32 %v3805, %v3993
        %v4026 = vsub.f32 %v3810, %v3994
        %v4027 = vsub.f32 %v3813, %v3995
        %v4028 = vsub.f32 %v3818, %v3996
        %v4029 = vsub.f32 %v3821, %v3997
        %v4030 = vsub.f32 %v3826, %v3998
        %v4031 = vsub.f32 %v3829, %v3999
        %v4032 = vsub.f32 %v3834, %v4000
        %v4033 = vsub.f32 %v3837, %v4001
        %v4034 = vsub.f32 %v3842, %v4002
        %v4035 = vsub.f32 %v3845, %v4003
        %v4036 = vsub.f32 %v3850, %v4004
        %v4037 = vsub.f32 %v3853, %v4005
        %v4038 = vsub.f32 %v3858, %v4006
        %v4039 = vsub.f32 %v3861, %v4007
        %v4040 = vsub.f32 %v3866, %v4008
        %v4041 = vsub.f32 %v3869, %v4009
        %v4042 = vsub.f32 %v3874, %v4010
        %v4043 = vsub.f32 %v3877, %v4011
        %v4044 = vsub.f32 %v3882, %v4012
        %v4045 = vsub.f32 %v3885, %v4013
        %v4046 = vsub.f32 %v3890, %v4014
        %v4047 = vsub.f32 %v3893, %v4015
        %v4048 = vsub.f32 %v3898, %v4016
        %v4049 = vsub.f32 %v3901, %v4017
        %v4050 = vsub.f32 %v3906, %v4018
        %v4051 = vsub.f32 %v3909, %v4019
        %v4052 = vsub.f32 %v3914, %v4020
        %v4053 = vsub.f32 %v3917, %v4021
        %v4054 = vsub.f32 %v3922, %v4022
        %v4055 = vsub.f32 %v3925, %v4023
        %v4056 = vmul.f32 %v4024, %v4024
        %v4057 = vmul.f32 %v4025, %v4025
        %v4058 = vmul.f32 %v4026, %v4026
        %v4059 = vmul.f32 %v4027, %v4027
        %v4060 = vmul.f32 %v4028, %v4028
        %v4061 = vmul.f32 %v4029, %v4029
        %v4062 = vmul.f32 %v4030, %v4030
        %v4063 = vmul.f32 %v4031, %v4031
        %v4064 = vmul.f32 %v4032, %v4032
        %v4065 = vmul.f32 %v4033, %v4033
        %v4066 = vmul.f32 %v4034, %v4034
        %v4067 = vmul.f32 %v4035, %v4035
        %v4068 = vmul.f32 %v4036, %v4036
        %v4069 = vmul.f32 %v4037, %v4037
        %v4070 = vmul.f32 %v4038, %v4038
        %v4071 = vmul.f32 %v4039, %v4039
        %v4072 = vmul.f32 %v4040, %v4040
        %v4073 = vmul.f32 %v4041, %v4041
        %v4074 = vmul.f32 %v4042, %v4042
        %v4075 = vmul.f32 %v4043, %v4043
        %v4076 = vmul.f32 %v4044, %v4044
        %v4077 = vmul.f32 %v4045, %v4045
        %v4078 = vmul.f32 %v4046, %v4046
        %v4079 = vmul.f32 %v4047, %v4047
        %v4080 = vmul.f32 %v4048, %v4048
        %v4081 = vmul.f32 %v4049, %v4049
        %v4082 = vmul.f32 %v4050, %v4050
        %v4083 = vmul.f32 %v4051, %v4051
        %v4084 = vmul.f32 %v4052, %v4052
        %v4085 = vmul.f32 %v4053, %v4053
        %v4086 = vmul.f32 %v4054, %v4054
        %v4087 = vmul.f32 %v4055, %v4055
        %4088 = vadd.xlane.f32.xlu0 %v4056
        %v4089 = vpop.xlane.xlu0 %4088
        %4090 = vadd.xlane.f32.xlu0 %v4057
        %v4091 = vpop.xlane.xlu0 %4090
        %4092 = vadd.xlane.f32.xlu0 %v4058
        %v4093 = vpop.xlane.xlu0 %4092
        %4094 = vadd.xlane.f32.xlu0 %v4059
        %v4095 = vpop.xlane.xlu0 %4094
        %4096 = vadd.xlane.f32.xlu0 %v4060
        %v4097 = vpop.xlane.xlu0 %4096
        %4098 = vadd.xlane.f32.xlu0 %v4061
        %v4099 = vpop.xlane.xlu0 %4098
        %4100 = vadd.xlane.f32.xlu0 %v4062
        %v4101 = vpop.xlane.xlu0 %4100
        %4102 = vadd.xlane.f32.xlu0 %v4063
        %v4103 = vpop.xlane.xlu0 %4102
        %4104 = vadd.xlane.f32.xlu0 %v4064
        %v4105 = vpop.xlane.xlu0 %4104
        %4106 = vadd.xlane.f32.xlu0 %v4065
        %v4107 = vpop.xlane.xlu0 %4106
        %4108 = vadd.xlane.f32.xlu0 %v4066
        %v4109 = vpop.xlane.xlu0 %4108
        %4110 = vadd.xlane.f32.xlu0 %v4067
        %v4111 = vpop.xlane.xlu0 %4110
        %4112 = vadd.xlane.f32.xlu0 %v4068
        %v4113 = vpop.xlane.xlu0 %4112
        %4114 = vadd.xlane.f32.xlu0 %v4069
        %v4115 = vpop.xlane.xlu0 %4114
        %4116 = vadd.xlane.f32.xlu0 %v4070
        %v4117 = vpop.xlane.xlu0 %4116
        %4118 = vadd.xlane.f32.xlu0 %v4071
        %v4119 = vpop.xlane.xlu0 %4118
        %4120 = vadd.xlane.f32.xlu0 %v4072
        %v4121 = vpop.xlane.xlu0 %4120
        %4122 = vadd.xlane.f32.xlu0 %v4073
        %v4123 = vpop.xlane.xlu0 %4122
        %4124 = vadd.xlane.f32.xlu0 %v4074
        %v4125 = vpop.xlane.xlu0 %4124
        %4126 = vadd.xlane.f32.xlu0 %v4075
        %v4127 = vpop.xlane.xlu0 %4126
        %4128 = vadd.xlane.f32.xlu0 %v4076
        %v4129 = vpop.xlane.xlu0 %4128
        %4130 = vadd.xlane.f32.xlu0 %v4077
        %v4131 = vpop.xlane.xlu0 %4130
        %4132 = vadd.xlane.f32.xlu0 %v4078
        %v4133 = vpop.xlane.xlu0 %4132
        %4134 = vadd.xlane.f32.xlu0 %v4079
        %v4135 = vpop.xlane.xlu0 %4134
        %4136 = vadd.xlane.f32.xlu0 %v4080
        %v4137 = vpop.xlane.xlu0 %4136
        %4138 = vadd.xlane.f32.xlu0 %v4081
        %v4139 = vpop.xlane.xlu0 %4138
        %4140 = vadd.xlane.f32.xlu0 %v4082
        %v4141 = vpop.xlane.xlu0 %4140
        %4142 = vadd.xlane.f32.xlu0 %v4083
        %v4143 = vpop.xlane.xlu0 %4142
        %4144 = vadd.xlane.f32.xlu0 %v4084
        %v4145 = vpop.xlane.xlu0 %4144
        %4146 = vadd.xlane.f32.xlu0 %v4085
        %v4147 = vpop.xlane.xlu0 %4146
        %4148 = vadd.xlane.f32.xlu0 %v4086
        %v4149 = vpop.xlane.xlu0 %4148
        %4150 = vadd.xlane.f32.xlu0 %v4087
        %v4151 = vpop.xlane.xlu0 %4150
        %v4152 = vmul.f32 %v4089, %v1889
        %v4153 = vmul.f32 %v4091, %v1889
        %v4154 = vmul.f32 %v4093, %v1889
        %v4155 = vmul.f32 %v4095, %v1889
        %v4156 = vmul.f32 %v4097, %v1889
        %v4157 = vmul.f32 %v4099, %v1889
        %v4158 = vmul.f32 %v4101, %v1889
        %v4159 = vmul.f32 %v4103, %v1889
        %v4160 = vmul.f32 %v4105, %v1889
        %v4161 = vmul.f32 %v4107, %v1889
        %v4162 = vmul.f32 %v4109, %v1889
        %v4163 = vmul.f32 %v4111, %v1889
        %v4164 = vmul.f32 %v4113, %v1889
        %v4165 = vmul.f32 %v4115, %v1889
        %v4166 = vmul.f32 %v4117, %v1889
        %v4167 = vmul.f32 %v4119, %v1889
        %v4168 = vmul.f32 %v4121, %v1889
        %v4169 = vmul.f32 %v4123, %v1889
        %v4170 = vmul.f32 %v4125, %v1889
        %v4171 = vmul.f32 %v4127, %v1889
        %v4172 = vmul.f32 %v4129, %v1889
        %v4173 = vmul.f32 %v4131, %v1889
        %v4174 = vmul.f32 %v4133, %v1889
        %v4175 = vmul.f32 %v4135, %v1889
        %v4176 = vmul.f32 %v4137, %v1889
        %v4177 = vmul.f32 %v4139, %v1889
        %v4178 = vmul.f32 %v4141, %v1889
        %v4179 = vmul.f32 %v4143, %v1889
        %v4180 = vmul.f32 %v4145, %v1889
        %v4181 = vmul.f32 %v4147, %v1889
        %v4182 = vmul.f32 %v4149, %v1889
        %v4183 = vmul.f32 %v4151, %v1889
        %v4184 = vadd.f32 %v4152, 1e-05
        %v4185 = vadd.f32 %v4153, 1e-05
        %v4186 = vadd.f32 %v4154, 1e-05
        %v4187 = vadd.f32 %v4155, 1e-05
        %v4188 = vadd.f32 %v4156, 1e-05
        %v4189 = vadd.f32 %v4157, 1e-05
        %v4190 = vadd.f32 %v4158, 1e-05
        %v4191 = vadd.f32 %v4159, 1e-05
        %v4192 = vadd.f32 %v4160, 1e-05
        %v4193 = vadd.f32 %v4161, 1e-05
        %v4194 = vadd.f32 %v4162, 1e-05
        %v4195 = vadd.f32 %v4163, 1e-05
        %v4196 = vadd.f32 %v4164, 1e-05
        %v4197 = vadd.f32 %v4165, 1e-05
        %v4198 = vadd.f32 %v4166, 1e-05
        %v4199 = vadd.f32 %v4167, 1e-05
        %v4200 = vadd.f32 %v4168, 1e-05
        %v4201 = vadd.f32 %v4169, 1e-05
        %v4202 = vadd.f32 %v4170, 1e-05
        %v4203 = vadd.f32 %v4171, 1e-05
        %v4204 = vadd.f32 %v4172, 1e-05
        %v4205 = vadd.f32 %v4173, 1e-05
        %v4206 = vadd.f32 %v4174, 1e-05
        %v4207 = vadd.f32 %v4175, 1e-05
        %v4208 = vadd.f32 %v4176, 1e-05
        %v4209 = vadd.f32 %v4177, 1e-05
        %v4210 = vadd.f32 %v4178, 1e-05
        %v4211 = vadd.f32 %v4179, 1e-05
        %v4212 = vadd.f32 %v4180, 1e-05
        %v4213 = vadd.f32 %v4181, 1e-05
        %v4214 = vadd.f32 %v4182, 1e-05
        %v4215 = vadd.f32 %v4183, 1e-05
        %v4216 = vrsqrt.pop %v4184
        %v4217 = vrsqrt.pop %v4185
        %v4218 = vrsqrt.pop %v4186
        %v4219 = vrsqrt.pop %v4187
        %v4220 = vrsqrt.pop %v4188
        %v4221 = vrsqrt.pop %v4189
        %v4222 = vrsqrt.pop %v4190
        %v4223 = vrsqrt.pop %v4191
        %v4224 = vrsqrt.pop %v4192
        %v4225 = vrsqrt.pop %v4193
        %v4226 = vrsqrt.pop %v4194
        %v4227 = vrsqrt.pop %v4195
        %v4228 = vrsqrt.pop %v4196
        %v4229 = vrsqrt.pop %v4197
        %v4230 = vrsqrt.pop %v4198
        %v4231 = vrsqrt.pop %v4199
        %v4232 = vrsqrt.pop %v4200
        %v4233 = vrsqrt.pop %v4201
        %v4234 = vrsqrt.pop %v4202
        %v4235 = vrsqrt.pop %v4203
        %v4236 = vrsqrt.pop %v4204
        %v4237 = vrsqrt.pop %v4205
        %v4238 = vrsqrt.pop %v4206
        %v4239 = vrsqrt.pop %v4207
        %v4240 = vrsqrt.pop %v4208
        %v4241 = vrsqrt.pop %v4209
        %v4242 = vrsqrt.pop %v4210
        %v4243 = vrsqrt.pop %v4211
        %v4244 = vrsqrt.pop %v4212
        %v4245 = vrsqrt.pop %v4213
        %v4246 = vrsqrt.pop %v4214
        %v4247 = vrsqrt.pop %v4215
        %v4248 = vmul.f32 %v4024, %v4216
        %v4249 = vmul.f32 %v4025, %v4217
        %v4250 = vmul.f32 %v4026, %v4218
        %v4251 = vmul.f32 %v4027, %v4219
        %v4252 = vmul.f32 %v4028, %v4220
        %v4253 = vmul.f32 %v4029, %v4221
        %v4254 = vmul.f32 %v4030, %v4222
        %v4255 = vmul.f32 %v4031, %v4223
        %v4256 = vmul.f32 %v4032, %v4224
        %v4257 = vmul.f32 %v4033, %v4225
        %v4258 = vmul.f32 %v4034, %v4226
        %v4259 = vmul.f32 %v4035, %v4227
        %v4260 = vmul.f32 %v4036, %v4228
        %v4261 = vmul.f32 %v4037, %v4229
        %v4262 = vmul.f32 %v4038, %v4230
        %v4263 = vmul.f32 %v4039, %v4231
        %v4264 = vmul.f32 %v4040, %v4232
        %v4265 = vmul.f32 %v4041, %v4233
        %v4266 = vmul.f32 %v4042, %v4234
        %v4267 = vmul.f32 %v4043, %v4235
        %v4268 = vmul.f32 %v4044, %v4236
        %v4269 = vmul.f32 %v4045, %v4237
        %v4270 = vmul.f32 %v4046, %v4238
        %v4271 = vmul.f32 %v4047, %v4239
        %v4272 = vmul.f32 %v4048, %v4240
        %v4273 = vmul.f32 %v4049, %v4241
        %v4274 = vmul.f32 %v4050, %v4242
        %v4275 = vmul.f32 %v4051, %v4243
        %v4276 = vmul.f32 %v4052, %v4244
        %v4277 = vmul.f32 %v4053, %v4245
        %v4278 = vmul.f32 %v4054, %v4246
        %v4279 = vmul.f32 %v4055, %v4247
        %s4280 = scalar_lea.vmem %s6, 2
        %v4281 = vld [vmem:[%s4280] sm:$0x1]
        %v4283 = vlaneseq
        %v4284 = vshrl.u32 %v4283, 7
        %v4285 = vsub.s32 0, %v4284
        %v4286 = vrot.slane %v4281, %v4285
        %v4288 = vmul.f32 %v4248, %v4286
        %v4289 = vmul.f32 %v4249, %v4286
        %v4290 = vmul.f32 %v4250, %v4286
        %v4291 = vmul.f32 %v4251, %v4286
        %v4292 = vmul.f32 %v4252, %v4286
        %v4293 = vmul.f32 %v4253, %v4286
        %v4294 = vmul.f32 %v4254, %v4286
        %v4295 = vmul.f32 %v4255, %v4286
        %v4296 = vmul.f32 %v4256, %v4286
        %v4297 = vmul.f32 %v4257, %v4286
        %v4298 = vmul.f32 %v4258, %v4286
        %v4299 = vmul.f32 %v4259, %v4286
        %v4300 = vmul.f32 %v4260, %v4286
        %v4301 = vmul.f32 %v4261, %v4286
        %v4302 = vmul.f32 %v4262, %v4286
        %v4303 = vmul.f32 %v4263, %v4286
        %v4304 = vmul.f32 %v4264, %v4286
        %v4305 = vmul.f32 %v4265, %v4286
        %v4306 = vmul.f32 %v4266, %v4286
        %v4307 = vmul.f32 %v4267, %v4286
        %v4308 = vmul.f32 %v4268, %v4286
        %v4309 = vmul.f32 %v4269, %v4286
        %v4310 = vmul.f32 %v4270, %v4286
        %v4311 = vmul.f32 %v4271, %v4286
        %v4312 = vmul.f32 %v4272, %v4286
        %v4313 = vmul.f32 %v4273, %v4286
        %v4314 = vmul.f32 %v4274, %v4286
        %v4315 = vmul.f32 %v4275, %v4286
        %v4316 = vmul.f32 %v4276, %v4286
        %v4317 = vmul.f32 %v4277, %v4286
        %v4318 = vmul.f32 %v4278, %v4286
        %v4319 = vmul.f32 %v4279, %v4286
        %s4320 = scalar_lea.vmem %s7, 2
        %v4321 = vld [vmem:[%s4320] sm:$0x1]
        %v4323 = vlaneseq
        %v4324 = vshrl.u32 %v4323, 7
        %v4325 = vsub.s32 0, %v4324
        %v4326 = vrot.slane %v4321, %v4325
        %v4328 = vadd.f32 %v4288, %v4326
        %v4329 = vadd.f32 %v4289, %v4326
        %v4330 = vadd.f32 %v4290, %v4326
        %v4331 = vadd.f32 %v4291, %v4326
        %v4332 = vadd.f32 %v4292, %v4326
        %v4333 = vadd.f32 %v4293, %v4326
        %v4334 = vadd.f32 %v4294, %v4326
        %v4335 = vadd.f32 %v4295, %v4326
        %v4336 = vadd.f32 %v4296, %v4326
        %v4337 = vadd.f32 %v4297, %v4326
        %v4338 = vadd.f32 %v4298, %v4326
        %v4339 = vadd.f32 %v4299, %v4326
        %v4340 = vadd.f32 %v4300, %v4326
        %v4341 = vadd.f32 %v4301, %v4326
        %v4342 = vadd.f32 %v4302, %v4326
        %v4343 = vadd.f32 %v4303, %v4326
        %v4344 = vadd.f32 %v4304, %v4326
        %v4345 = vadd.f32 %v4305, %v4326
        %v4346 = vadd.f32 %v4306, %v4326
        %v4347 = vadd.f32 %v4307, %v4326
        %v4348 = vadd.f32 %v4308, %v4326
        %v4349 = vadd.f32 %v4309, %v4326
        %v4350 = vadd.f32 %v4310, %v4326
        %v4351 = vadd.f32 %v4311, %v4326
        %v4352 = vadd.f32 %v4312, %v4326
        %v4353 = vadd.f32 %v4313, %v4326
        %v4354 = vadd.f32 %v4314, %v4326
        %v4355 = vadd.f32 %v4315, %v4326
        %v4356 = vadd.f32 %v4316, %v4326
        %v4357 = vadd.f32 %v4317, %v4326
        %v4358 = vadd.f32 %v4318, %v4326
        %v4359 = vadd.f32 %v4319, %v4326
        %v4360 = vld [vmem:[%s8] sm:$0xf]
        %v4361 = vld [vmem:[%s8 + $0x4] sm:$0xf]
        %v4362 = vld [vmem:[%s8 + $0x8] sm:$0xf]
        %v4363 = vld [vmem:[%s8 + $0xc] sm:$0xf]
        %v4364 = vpack.c.bf16 %v4329, %v4328
        %v4365 = vpack.c.bf16 %v4331, %v4330
        %v4366 = vpack.c.bf16 %v4333, %v4332
        %v4367 = vpack.c.bf16 %v4335, %v4334
        %v4368 = vpack.c.bf16 %v4337, %v4336
        %v4369 = vpack.c.bf16 %v4339, %v4338
        %v4370 = vpack.c.bf16 %v4341, %v4340
        %v4371 = vpack.c.bf16 %v4343, %v4342
        %v4372 = vpack.c.bf16 %v4345, %v4344
        %v4373 = vpack.c.bf16 %v4347, %v4346
        %v4374 = vpack.c.bf16 %v4349, %v4348
        %v4375 = vpack.c.bf16 %v4351, %v4350
        %v4376 = vpack.c.bf16 %v4353, %v4352
        %v4377 = vpack.c.bf16 %v4355, %v4354
        %v4378 = vpack.c.bf16 %v4357, %v4356
        %v4379 = vpack.c.bf16 %v4359, %v4358
        %v4380 = vld [vmem:[%s9] sm:$0xf]
        %v4381 = vld [vmem:[%s9 + $0x4] sm:$0xf]
        %v4382 = vld [vmem:[%s9 + $0x8] sm:$0xf]
        %v4383 = vld [vmem:[%s9 + $0xc] sm:$0xf]
        %v4384 = vld [vmem:[%s9 + $0x10] sm:$0xf]
        %v4385 = vld [vmem:[%s9 + $0x14] sm:$0xf]
        %v4386 = vld [vmem:[%s9 + $0x18] sm:$0xf]
        %v4387 = vld [vmem:[%s9 + $0x1c] sm:$0xf]
        %v4388 = vld [vmem:[%s9 + $0x20] sm:$0xf]
        %v4389 = vld [vmem:[%s9 + $0x24] sm:$0xf]
        %v4390 = vld [vmem:[%s9 + $0x28] sm:$0xf]
        %v4391 = vld [vmem:[%s9 + $0x2c] sm:$0xf]
        %v4392 = vld [vmem:[%s9 + $0x30] sm:$0xf]
        %v4393 = vld [vmem:[%s9 + $0x34] sm:$0xf]
        %v4394 = vld [vmem:[%s9 + $0x38] sm:$0xf]
        %v4395 = vld [vmem:[%s9 + $0x3c] sm:$0xf]
        %v4412 = vunpack.c.l.b16 %v4380
        %v4413 = vunpack.c.l.b16 %v4381
        %v4414 = vunpack.c.l.b16 %v4382
        %v4415 = vunpack.c.l.b16 %v4383
        %v4416 = vunpack.c.l.b16 %v4384
        %v4417 = vunpack.c.l.b16 %v4385
        %v4418 = vunpack.c.l.b16 %v4386
        %v4419 = vunpack.c.l.b16 %v4387
        %v4420 = vunpack.c.l.b16 %v4388
        %v4421 = vunpack.c.l.b16 %v4389
        %v4422 = vunpack.c.l.b16 %v4390
        %v4423 = vunpack.c.l.b16 %v4391
        %v4424 = vunpack.c.l.b16 %v4392
        %v4425 = vunpack.c.l.b16 %v4393
        %v4426 = vunpack.c.l.b16 %v4394
        %v4427 = vunpack.c.l.b16 %v4395
        %v4428 = vpack.c.b16 %v4413, %v4412
        %v4429 = vpack.c.b16 %v4415, %v4414
        %v4430 = vpack.c.b16 %v4417, %v4416
        %v4431 = vpack.c.b16 %v4419, %v4418
        %v4432 = vpack.c.b16 %v4421, %v4420
        %v4433 = vpack.c.b16 %v4423, %v4422
        %v4434 = vpack.c.b16 %v4425, %v4424
        %v4435 = vpack.c.b16 %v4427, %v4426
        %4444 = vmatprep.subr.bf16.mxu0 0
        %4445 = vmatpush1.bf16.msra.mxu0 %v4428
        %4446 = vmatprep.subr.bf16.mxu0 0
        %4447 = vmatpush1.bf16.msra.mxu0 %v4429
        %4448 = vmatprep.subr.bf16.mxu0 0
        %4449 = vmatpush1.bf16.msra.mxu0 %v4430
        %4450 = vmatprep.subr.bf16.mxu0 0
        %4451 = vmatpush1.bf16.msra.mxu0 %v4431
        %4452 = vmatprep.subr.bf16.mxu0 0
        %4453 = vmatpush1.bf16.msra.mxu0 %v4432
        %4454 = vmatprep.subr.bf16.mxu0 0
        %4455 = vmatpush1.bf16.msra.mxu0 %v4433
        %4456 = vmatprep.subr.bf16.mxu0 0
        %4457 = vmatpush1.bf16.msra.mxu0 %v4434
        %4458 = vmatprep.subr.bf16.mxu0 0
        %4459 = vmatpush1.bf16.msra.mxu0 %v4435
        %4460 = vmatprep.subr.bf16.mxu0 0
        %4461 = vmatpush1.bf16.msra.mxu0 0
        %4462 = vmatprep.subr.bf16.mxu0 0
        %4463 = vmatpush1.bf16.msra.mxu0 0
        %4464 = vmatprep.subr.bf16.mxu0 0
        %4465 = vmatpush1.bf16.msra.mxu0 0
        %4466 = vmatprep.subr.bf16.mxu0 0
        %4467 = vmatpush1.bf16.msra.mxu0 0
        %4468 = vmatprep.subr.bf16.mxu0 0
        %4469 = vmatpush1.bf16.msra.mxu0 0
        %4470 = vmatprep.subr.bf16.mxu0 0
        %4471 = vmatpush1.bf16.msra.mxu0 0
        %4472 = vmatprep.subr.bf16.mxu0 0
        %4473 = vmatpush1.bf16.msra.mxu0 0
        %4474 = vmatprep.subr.bf16.mxu0 0
        %4475 = vmatpush1.bf16.msra.mxu0 0
        %4476 = vmatprep.mubr.bf16.mxu0 0
        %4477 = vmatmul.mubr.bf16.gmra.mrb[0].mxu0 %v4364
        %v4478 = vpop.f32.mrb[0].mxu0
        %v4479 = vadd.f32 0.0, %v4478
        %v4480 = vpop.f32.mrb[0].mxu0
        %v4481 = vpop.f32.mrb[0].mxu0
        %v4482 = vadd.f32 0.0, %v4481
        %v4483 = vpop.f32.mrb[0].mxu0
        %4484 = vmatprep.mubr.bf16.mxu0 0
        %4485 = vmatmul.mubr.bf16.gmra.mrb[0].mxu0 %v4365
        %v4486 = vpop.f32.mrb[0].mxu0
        %v4487 = vadd.f32 0.0, %v4486
        %v4488 = vpop.f32.mrb[0].mxu0
        %v4489 = vpop.f32.mrb[0].mxu0
        %v4490 = vadd.f32 0.0, %v4489
        %v4491 = vpop.f32.mrb[0].mxu0
        %4492 = vmatprep.mubr.bf16.mxu0 0
        %4493 = vmatmul.mubr.bf16.gmra.mrb[0].mxu0 %v4366
        %v4494 = vpop.f32.mrb[0].mxu0
        %v4495 = vadd.f32 0.0, %v4494
        %v4496 = vpop.f32.mrb[0].mxu0
        %v4497 = vpop.f32.mrb[0].mxu0
        %v4498 = vadd.f32 0.0, %v4497
        %v4499 = vpop.f32.mrb[0].mxu0
        %4500 = vmatprep.mubr.bf16.mxu0 0
        %4501 = vmatmul.mubr.bf16.gmra.mrb[0].mxu0 %v4367
        %v4502 = vpop.f32.mrb[0].mxu0
        %v4503 = vadd.f32 0.0, %v4502
        %v4504 = vpop.f32.mrb[0].mxu0
        %v4505 = vpop.f32.mrb[0].mxu0
        %v4506 = vadd.f32 0.0, %v4505
        %v4507 = vpop.f32.mrb[0].mxu0
        %4508 = vmatprep.mubr.bf16.mxu0 0
        %4509 = vmatmul.mubr.bf16.gmra.mrb[0].mxu0 %v4368
        %v4510 = vpop.f32.mrb[0].mxu0
        %v4511 = vadd.f32 0.0, %v4510
        %v4512 = vpop.f32.mrb[0].mxu0
        %v4513 = vpop.f32.mrb[0].mxu0
        %v4514 = vadd.f32 0.0, %v4513
        %v4515 = vpop.f32.mrb[0].mxu0
        %4516 = vmatprep.mubr.bf16.mxu0 0
        %4517 = vmatmul.mubr.bf16.gmra.mrb[0].mxu0 %v4369
        %v4518 = vpop.f32.mrb[0].mxu0
        %v4519 = vadd.f32 0.0, %v4518
        %v4520 = vpop.f32.mrb[0].mxu0
        %v4521 = vpop.f32.mrb[0].mxu0
        %v4522 = vadd.f32 0.0, %v4521
        %v4523 = vpop.f32.mrb[0].mxu0
        %4524 = vmatprep.mubr.bf16.mxu0 0
        %4525 = vmatmul.mubr.bf16.gmra.mrb[0].mxu0 %v4370
        %v4526 = vpop.f32.mrb[0].mxu0
        %v4527 = vadd.f32 0.0, %v4526
        %v4528 = vpop.f32.mrb[0].mxu0
        %v4529 = vpop.f32.mrb[0].mxu0
        %v4530 = vadd.f32 0.0, %v4529
        %v4531 = vpop.f32.mrb[0].mxu0
        %4532 = vmatprep.mubr.bf16.mxu0 0
        %4533 = vmatmul.mubr.bf16.gmra.mrb[0].mxu0 %v4371
        %v4534 = vpop.f32.mrb[0].mxu0
        %v4535 = vadd.f32 0.0, %v4534
        %v4536 = vpop.f32.mrb[0].mxu0
        %v4537 = vpop.f32.mrb[0].mxu0
        %v4538 = vadd.f32 0.0, %v4537
        %v4539 = vpop.f32.mrb[0].mxu0
        %4540 = vmatprep.mubr.bf16.mxu0 0
        %4541 = vmatmul.mubr.bf16.gmra.mrb[0].mxu0 %v4372
        %v4542 = vpop.f32.mrb[0].mxu0
        %v4543 = vadd.f32 0.0, %v4542
        %v4544 = vpop.f32.mrb[0].mxu0
        %v4545 = vpop.f32.mrb[0].mxu0
        %v4546 = vadd.f32 0.0, %v4545
        %v4547 = vpop.f32.mrb[0].mxu0
        %4548 = vmatprep.mubr.bf16.mxu0 0
        %4549 = vmatmul.mubr.bf16.gmra.mrb[0].mxu0 %v4373
        %v4550 = vpop.f32.mrb[0].mxu0
        %v4551 = vadd.f32 0.0, %v4550
        %v4552 = vpop.f32.mrb[0].mxu0
        %v4553 = vpop.f32.mrb[0].mxu0
        %v4554 = vadd.f32 0.0, %v4553
        %v4555 = vpop.f32.mrb[0].mxu0
        %4556 = vmatprep.mubr.bf16.mxu0 0
        %4557 = vmatmul.mubr.bf16.gmra.mrb[0].mxu0 %v4374
        %v4558 = vpop.f32.mrb[0].mxu0
        %v4559 = vadd.f32 0.0, %v4558
        %v4560 = vpop.f32.mrb[0].mxu0
        %v4561 = vpop.f32.mrb[0].mxu0
        %v4562 = vadd.f32 0.0, %v4561
        %v4563 = vpop.f32.mrb[0].mxu0
        %4564 = vmatprep.mubr.bf16.mxu0 0
        %4565 = vmatmul.mubr.bf16.gmra.mrb[0].mxu0 %v4375
        %v4566 = vpop.f32.mrb[0].mxu0
        %v4567 = vadd.f32 0.0, %v4566
        %v4568 = vpop.f32.mrb[0].mxu0
        %v4569 = vpop.f32.mrb[0].mxu0
        %v4570 = vadd.f32 0.0, %v4569
        %v4571 = vpop.f32.mrb[0].mxu0
        %4572 = vmatprep.mubr.bf16.mxu0 0
        %4573 = vmatmul.mubr.bf16.gmra.mrb[0].mxu0 %v4376
        %v4574 = vpop.f32.mrb[0].mxu0
        %v4575 = vadd.f32 0.0, %v4574
        %v4576 = vpop.f32.mrb[0].mxu0
        %v4577 = vpop.f32.mrb[0].mxu0
        %v4578 = vadd.f32 0.0, %v4577
        %v4579 = vpop.f32.mrb[0].mxu0
        %4580 = vmatprep.mubr.bf16.mxu0 0
        %4581 = vmatmul.mubr.bf16.gmra.mrb[0].mxu0 %v4377
        %v4582 = vpop.f32.mrb[0].mxu0
        %v4583 = vadd.f32 0.0, %v4582
        %v4584 = vpop.f32.mrb[0].mxu0
        %v4585 = vpop.f32.mrb[0].mxu0
        %v4586 = vadd.f32 0.0, %v4585
        %v4587 = vpop.f32.mrb[0].mxu0
        %4588 = vmatprep.mubr.bf16.mxu0 0
        %4589 = vmatmul.mubr.bf16.gmra.mrb[0].mxu0 %v4378
        %v4590 = vpop.f32.mrb[0].mxu0
        %v4591 = vadd.f32 0.0, %v4590
        %v4592 = vpop.f32.mrb[0].mxu0
        %v4593 = vpop.f32.mrb[0].mxu0
        %v4594 = vadd.f32 0.0, %v4593
        %v4595 = vpop.f32.mrb[0].mxu0
        %4596 = vmatprep.mubr.bf16.mxu0 0
        %4597 = vmatmul.mubr.bf16.gmra.mrb[0].mxu0 %v4379
        %v4598 = vpop.f32.mrb[0].mxu0
        %v4599 = vadd.f32 0.0, %v4598
        %v4600 = vpop.f32.mrb[0].mxu0
        %v4601 = vpop.f32.mrb[0].mxu0
        %v4602 = vadd.f32 0.0, %v4601
        %v4603 = vpop.f32.mrb[0].mxu0
        %4604 = vdwg.mxu0
        %v4609 = vunpack.c.l.b16 %v4360
        %v4610 = vunpack.c.l.b16 %v4361
        %v4611 = vunpack.c.l.b16 %v4362
        %v4612 = vunpack.c.l.b16 %v4363
        %v4613 = vpack.c.b16 %v4610, %v4609
        %v4614 = vpack.c.b16 %v4612, %v4611
        %4617 = vmatprep.subr.bf16.mxu0 0
        %4618 = vmatpush1.bf16.msra.mxu0 %v4613
        %4619 = vmatprep.subr.bf16.mxu0 0
        %4620 = vmatpush1.bf16.msra.mxu0 %v4614
        %4621 = vmatprep.subr.bf16.mxu0 0
        %4622 = vmatpush1.bf16.msra.mxu0 0
        %4623 = vmatprep.subr.bf16.mxu0 0
        %4624 = vmatpush1.bf16.msra.mxu0 0
        %4625 = vmatprep.subr.bf16.mxu0 0
        %4626 = vmatpush1.bf16.msra.mxu0 0
        %4627 = vmatprep.subr.bf16.mxu0 0
        %4628 = vmatpush1.bf16.msra.mxu0 0
        %4629 = vmatprep.subr.bf16.mxu0 0
        %4630 = vmatpush1.bf16.msra.mxu0 0
        %4631 = vmatprep.subr.bf16.mxu0 0
        %4632 = vmatpush1.bf16.msra.mxu0 0
        %4633 = vmatprep.subr.bf16.mxu0 0
        %4634 = vmatpush1.bf16.msra.mxu0 0
        %4635 = vmatprep.subr.bf16.mxu0 0
        %4636 = vmatpush1.bf16.msra.mxu0 0
        %4637 = vmatprep.subr.bf16.mxu0 0
        %4638 = vmatpush1.bf16.msra.mxu0 0
        %4639 = vmatprep.subr.bf16.mxu0 0
        %4640 = vmatpush1.bf16.msra.mxu0 0
        %4641 = vmatprep.subr.bf16.mxu0 0
        %4642 = vmatpush1.bf16.msra.mxu0 0
        %4643 = vmatprep.subr.bf16.mxu0 0
        %4644 = vmatpush1.bf16.msra.mxu0 0
        %4645 = vmatprep.subr.bf16.mxu0 0
        %4646 = vmatpush1.bf16.msra.mxu0 0
        %4647 = vmatprep.subr.bf16.mxu0 0
        %4648 = vmatpush1.bf16.msra.mxu0 0
        %4649 = vmatprep.mubr.bf16.mxu0 0
        %4650 = vmatmul.mubr.bf16.gmra.mrb[0].mxu0 %v615
        %v4651 = vpop.f32.mrb[0].mxu0
        %v4652 = vadd.f32 %v4479, %v4651
        %v4653 = vpop.f32.mrb[0].mxu0
        %v4654 = vpop.f32.mrb[0].mxu0
        %v4655 = vadd.f32 %v4482, %v4654
        %v4656 = vpop.f32.mrb[0].mxu0
        %4657 = vmatprep.mubr.bf16.mxu0 0
        %4658 = vmatmul.mubr.bf16.gmra.mrb[0].mxu0 %v618
        %v4659 = vpop.f32.mrb[0].mxu0
        %v4660 = vadd.f32 %v4487, %v4659
        %v4661 = vpop.f32.mrb[0].mxu0
        %v4662 = vpop.f32.mrb[0].mxu0
        %v4663 = vadd.f32 %v4490, %v4662
        %v4664 = vpop.f32.mrb[0].mxu0
        %4665 = vmatprep.mubr.bf16.mxu0 0
        %4666 = vmatmul.mubr.bf16.gmra.mrb[0].mxu0 %v621
        %v4667 = vpop.f32.mrb[0].mxu0
        %v4668 = vadd.f32 %v4495, %v4667
        %v4669 = vpop.f32.mrb[0].mxu0
        %v4670 = vpop.f32.mrb[0].mxu0
        %v4671 = vadd.f32 %v4498, %v4670
        %v4672 = vpop.f32.mrb[0].mxu0
        %4673 = vmatprep.mubr.bf16.mxu0 0
        %4674 = vmatmul.mubr.bf16.gmra.mrb[0].mxu0 %v624
        %v4675 = vpop.f32.mrb[0].mxu0
        %v4676 = vadd.f32 %v4503, %v4675
        %v4677 = vpop.f32.mrb[0].mxu0
        %v4678 = vpop.f32.mrb[0].mxu0
        %v4679 = vadd.f32 %v4506, %v4678
        %v4680 = vpop.f32.mrb[0].mxu0
        %4681 = vmatprep.mubr.bf16.mxu0 0
        %4682 = vmatmul.mubr.bf16.gmra.mrb[0].mxu0 %v627
        %v4683 = vpop.f32.mrb[0].mxu0
        %v4684 = vadd.f32 %v4511, %v4683
        %v4685 = vpop.f32.mrb[0].mxu0
        %v4686 = vpop.f32.mrb[0].mxu0
        %v4687 = vadd.f32 %v4514, %v4686
        %v4688 = vpop.f32.mrb[0].mxu0
        %4689 = vmatprep.mubr.bf16.mxu0 0
        %4690 = vmatmul.mubr.bf16.gmra.mrb[0].mxu0 %v630
        %v4691 = vpop.f32.mrb[0].mxu0
        %v4692 = vadd.f32 %v4519, %v4691
        %v4693 = vpop.f32.mrb[0].mxu0
        %v4694 = vpop.f32.mrb[0].mxu0
        %v4695 = vadd.f32 %v4522, %v4694
        %v4696 = vpop.f32.mrb[0].mxu0
        %4697 = vmatprep.mubr.bf16.mxu0 0
        %4698 = vmatmul.mubr.bf16.gmra.mrb[0].mxu0 %v633
        %v4699 = vpop.f32.mrb[0].mxu0
        %v4700 = vadd.f32 %v4527, %v4699
        %v4701 = vpop.f32.mrb[0].mxu0
        %v4702 = vpop.f32.mrb[0].mxu0
        %v4703 = vadd.f32 %v4530, %v4702
        %v4704 = vpop.f32.mrb[0].mxu0
        %4705 = vmatprep.mubr.bf16.mxu0 0
        %4706 = vmatmul.mubr.bf16.gmra.mrb[0].mxu0 %v636
        %v4707 = vpop.f32.mrb[0].mxu0
        %v4708 = vadd.f32 %v4535, %v4707
        %v4709 = vpop.f32.mrb[0].mxu0
        %v4710 = vpop.f32.mrb[0].mxu0
        %v4711 = vadd.f32 %v4538, %v4710
        %v4712 = vpop.f32.mrb[0].mxu0
        %4713 = vmatprep.mubr.bf16.mxu0 0
        %4714 = vmatmul.mubr.bf16.gmra.mrb[0].mxu0 %v639
        %v4715 = vpop.f32.mrb[0].mxu0
        %v4716 = vadd.f32 %v4543, %v4715
        %v4717 = vpop.f32.mrb[0].mxu0
        %v4718 = vpop.f32.mrb[0].mxu0
        %v4719 = vadd.f32 %v4546, %v4718
        %v4720 = vpop.f32.mrb[0].mxu0
        %4721 = vmatprep.mubr.bf16.mxu0 0
        %4722 = vmatmul.mubr.bf16.gmra.mrb[0].mxu0 %v642
        %v4723 = vpop.f32.mrb[0].mxu0
        %v4724 = vadd.f32 %v4551, %v4723
        %v4725 = vpop.f32.mrb[0].mxu0
        %v4726 = vpop.f32.mrb[0].mxu0
        %v4727 = vadd.f32 %v4554, %v4726
        %v4728 = vpop.f32.mrb[0].mxu0
        %4729 = vmatprep.mubr.bf16.mxu0 0
        %4730 = vmatmul.mubr.bf16.gmra.mrb[0].mxu0 %v645
        %v4731 = vpop.f32.mrb[0].mxu0
        %v4732 = vadd.f32 %v4559, %v4731
        %v4733 = vpop.f32.mrb[0].mxu0
        %v4734 = vpop.f32.mrb[0].mxu0
        %v4735 = vadd.f32 %v4562, %v4734
        %v4736 = vpop.f32.mrb[0].mxu0
        %4737 = vmatprep.mubr.bf16.mxu0 0
        %4738 = vmatmul.mubr.bf16.gmra.mrb[0].mxu0 %v648
        %v4739 = vpop.f32.mrb[0].mxu0
        %v4740 = vadd.f32 %v4567, %v4739
        %v4741 = vpop.f32.mrb[0].mxu0
        %v4742 = vpop.f32.mrb[0].mxu0
        %v4743 = vadd.f32 %v4570, %v4742
        %v4744 = vpop.f32.mrb[0].mxu0
        %4745 = vmatprep.mubr.bf16.mxu0 0
        %4746 = vmatmul.mubr.bf16.gmra.mrb[0].mxu0 %v651
        %v4747 = vpop.f32.mrb[0].mxu0
        %v4748 = vadd.f32 %v4575, %v4747
        %v4749 = vpop.f32.mrb[0].mxu0
        %v4750 = vpop.f32.mrb[0].mxu0
        %v4751 = vadd.f32 %v4578, %v4750
        %v4752 = vpop.f32.mrb[0].mxu0
        %4753 = vmatprep.mubr.bf16.mxu0 0
        %4754 = vmatmul.mubr.bf16.gmra.mrb[0].mxu0 %v654
        %v4755 = vpop.f32.mrb[0].mxu0
        %v4756 = vadd.f32 %v4583, %v4755
        %v4757 = vpop.f32.mrb[0].mxu0
        %v4758 = vpop.f32.mrb[0].mxu0
        %v4759 = vadd.f32 %v4586, %v4758
        %v4760 = vpop.f32.mrb[0].mxu0
        %4761 = vmatprep.mubr.bf16.mxu0 0
        %4762 = vmatmul.mubr.bf16.gmra.mrb[0].mxu0 %v657
        %v4763 = vpop.f32.mrb[0].mxu0
        %v4764 = vadd.f32 %v4591, %v4763
        %v4765 = vpop.f32.mrb[0].mxu0
        %v4766 = vpop.f32.mrb[0].mxu0
        %v4767 = vadd.f32 %v4594, %v4766
        %v4768 = vpop.f32.mrb[0].mxu0
        %4769 = vmatprep.mubr.bf16.mxu0 0
        %4770 = vmatmul.mubr.bf16.gmra.mrb[0].mxu0 %v660
        %v4771 = vpop.f32.mrb[0].mxu0
        %v4772 = vadd.f32 %v4599, %v4771
        %v4773 = vpop.f32.mrb[0].mxu0
        %v4774 = vpop.f32.mrb[0].mxu0
        %v4775 = vadd.f32 %v4602, %v4774
        %v4776 = vpop.f32.mrb[0].mxu0
        %4777 = vdwg.mxu0
        %v4778 = vld [vmem:[%s10] sm:$0x1]
        %v4780 = vlaneseq
        %v4781 = vshrl.u32 %v4780, 7
        %v4782 = vsub.s32 0, %v4781
        %v4783 = vrot.slane %v4778, %v4782
        %v4785 = vadd.f32 %v4652, %v4783
        %v4786 = vadd.f32 %v4655, %v4783
        %v4787 = vadd.f32 %v4660, %v4783
        %v4788 = vadd.f32 %v4663, %v4783
        %v4789 = vadd.f32 %v4668, %v4783
        %v4790 = vadd.f32 %v4671, %v4783
        %v4791 = vadd.f32 %v4676, %v4783
        %v4792 = vadd.f32 %v4679, %v4783
        %v4793 = vadd.f32 %v4684, %v4783
        %v4794 = vadd.f32 %v4687, %v4783
        %v4795 = vadd.f32 %v4692, %v4783
        %v4796 = vadd.f32 %v4695, %v4783
        %v4797 = vadd.f32 %v4700, %v4783
        %v4798 = vadd.f32 %v4703, %v4783
        %v4799 = vadd.f32 %v4708, %v4783
        %v4800 = vadd.f32 %v4711, %v4783
        %v4801 = vadd.f32 %v4716, %v4783
        %v4802 = vadd.f32 %v4719, %v4783
        %v4803 = vadd.f32 %v4724, %v4783
        %v4804 = vadd.f32 %v4727, %v4783
        %v4805 = vadd.f32 %v4732, %v4783
        %v4806 = vadd.f32 %v4735, %v4783
        %v4807 = vadd.f32 %v4740, %v4783
        %v4808 = vadd.f32 %v4743, %v4783
        %v4809 = vadd.f32 %v4748, %v4783
        %v4810 = vadd.f32 %v4751, %v4783
        %v4811 = vadd.f32 %v4756, %v4783
        %v4812 = vadd.f32 %v4759, %v4783
        %v4813 = vadd.f32 %v4764, %v4783
        %v4814 = vadd.f32 %v4767, %v4783
        %v4815 = vadd.f32 %v4772, %v4783
        %v4816 = vadd.f32 %v4775, %v4783
        %4817 = vst [vmem:[%s422] sm:$0xff] %v4785
        %4818 = vst [vmem:[%s422 + $0x8] sm:$0xff] %v4786
        %4819 = vst [vmem:[%s422 + $0x10] sm:$0xff] %v4787
        %4820 = vst [vmem:[%s422 + $0x18] sm:$0xff] %v4788
        %4821 = vst [vmem:[%s422 + $0x20] sm:$0xff] %v4789
        %4822 = vst [vmem:[%s422 + $0x28] sm:$0xff] %v4790
        %4823 = vst [vmem:[%s422 + $0x30] sm:$0xff] %v4791
        %4824 = vst [vmem:[%s422 + $0x38] sm:$0xff] %v4792
        %4825 = vst [vmem:[%s422 + $0x40] sm:$0xff] %v4793
        %4826 = vst [vmem:[%s422 + $0x48] sm:$0xff] %v4794
        %4827 = vst [vmem:[%s422 + $0x50] sm:$0xff] %v4795
        %4828 = vst [vmem:[%s422 + $0x58] sm:$0xff] %v4796
        %4829 = vst [vmem:[%s422 + $0x60] sm:$0xff] %v4797
        %4830 = vst [vmem:[%s422 + $0x68] sm:$0xff] %v4798
        %4831 = vst [vmem:[%s422 + $0x70] sm:$0xff] %v4799
        %4832 = vst [vmem:[%s422 + $0x78] sm:$0xff] %v4800
        %4833 = vst [vmem:[%s422 + $0x80] sm:$0xff] %v4801
        %4834 = vst [vmem:[%s422 + $0x88] sm:$0xff] %v4802
        %4835 = vst [vmem:[%s422 + $0x90] sm:$0xff] %v4803
        %4836 = vst [vmem:[%s422 + $0x98] sm:$0xff] %v4804
        %4837 = vst [vmem:[%s422 + $0xa0] sm:$0xff] %v4805
        %4838 = vst [vmem:[%s422 + $0xa8] sm:$0xff] %v4806
        %4839 = vst [vmem:[%s422 + $0xb0] sm:$0xff] %v4807
        %4840 = vst [vmem:[%s422 + $0xb8] sm:$0xff] %v4808
        %4841 = vst [vmem:[%s422 + $0xc0] sm:$0xff] %v4809
        %4842 = vst [vmem:[%s422 + $0xc8] sm:$0xff] %v4810
        %4843 = vst [vmem:[%s422 + $0xd0] sm:$0xff] %v4811
        %4844 = vst [vmem:[%s422 + $0xd8] sm:$0xff] %v4812
        %4845 = vst [vmem:[%s422 + $0xe0] sm:$0xff] %v4813
        %4846 = vst [vmem:[%s422 + $0xe8] sm:$0xff] %v4814
        %4847 = vst [vmem:[%s422 + $0xf0] sm:$0xff] %v4815
        %4848 = vst [vmem:[%s422 + $0xf8] sm:$0xff] %v4816
        %s4849 = sand.u32 %s271, 1
        %s4850 = scalar_lea.sflag [#allocation5], %s4849
        %s4851 = sand.u32 %s271, 1
        %s4852 = smul.addr %s4851, 256
        %s4853 = scalar_lea.vmem [#allocation9], %s4852
        // Predicated region
        $region77: #{tpu_custom_call.1} parent=63 // pred_check
          %p4854 = pneg %p281
        $region78: #{tpu_custom_call.1} parent=63 // pred_check_branch
          %4856 = sbr.rel (%p4854) target = $region80
        $region79: #{tpu_custom_call.1} parent=63 // pred_region
          %s4857 = smul.u32 32, %s27
          %s4859 = ssub.s32 4096, 4096
          %4860 = vsyncadd %s4850, %s4859
          %s4861 = smul.addr %s4857, 128
          %s4862 = scalar_lea.hbm %s11, %s4861
          %s4863 = sshll.u32 %s4853, 4
          %s4864 = int_to_ptr.vmem [resolvable:$true] %s4863
          %4869 = dma.vmem_to_hbm [thread:$0]  %s4864, 4096, %s4862, %s4850, 128, 128, 8
        $region80: #{tpu_custom_call.1} parent=63 // pred_fallthru
          _
      $region64: #{tpu_custom_call.1} parent=5 // pred_fallthru
        _
      %p4870 = scmp.le.s32.totalorder 2, %s22
      // Predicated region
      $region81: #{tpu_custom_call.1} parent=5 // pred_check
        %p4871 = pneg %p4870
      $region82: #{tpu_custom_call.1} parent=5 // pred_check_branch
        %4873 = sbr.rel (%p4871) target = $region84
      $region83: #{tpu_custom_call.1} parent=5 // pred_region
        %s4874 = ssub.s32 %s22, 2
        // Predicated region
        $region85: #{tpu_custom_call.1} parent=83 // pred_check
          %p4875 = pneg %p287
        $region86: #{tpu_custom_call.1} parent=83 // pred_check_branch
          %4877 = sbr.rel (%p4875) target = $region88
        $region87: #{tpu_custom_call.1} parent=83 // pred_region
          %s4878 = sand.u32 %s272, 1
          %s4879 = scalar_lea.sflag [#allocation5], %s4878
          %s4880 = sand.u32 %s272, 1
          %s4881 = smul.addr %s4880, 256
          %s4882 = scalar_lea.vmem [#allocation9], %s4881
          %4883 = dma.done %s4879, 4096
        $region88: #{tpu_custom_call.1} parent=83 // pred_fallthru
          _
      $region84: #{tpu_custom_call.1} parent=5 // pred_fallthru
        _
    $region6: #{tpu_custom_call.1} parent=1 // loop_footer
      %s26 = sadd.s32 1, %s22
    $region7: #{tpu_custom_call.1} parent=1 // loop_footer_branch
      %21 = sbr.rel target = $region3
    $region8: #{tpu_custom_call.1} parent=1 // loop_exit
      _
    %4884 = vsyncpa [#allocation4], 1
    %s4885 = scalar_lea.sflag [#allocation4], 1
    %4886 = vsyncpa %s4885, 1
    %4887 = vsyncpa [#allocation7], 1
    %4888 = vsyncpa [#allocation5], 1
    %s4889 = scalar_lea.sflag [#allocation5], 1
    %4890 = vsyncpa %s4889, 1

</llo_original>
